<compile_context>
chip_gen: v6e
topology: v6e:2x2x1
jax: 0.10.0
libtpu: 0.0.40
codegen_flags: <defaults>
</compile_context>

<pallas_src>
import math

import jax
import jax.numpy as jnp
from jax.experimental import pallas as pl
from jax.experimental.pallas import tpu as pltpu


# ----------------------------------------------------------------------------
# Kernel 1: one direction of a bidirectional GRU encoder layer.
#   grid=(2,) over directions ("parallel"); inputs for the backward direction are
#   pre-reversed in the wrapper, so the whole time loop uses static indices only.
# ----------------------------------------------------------------------------

def _enc_gru_kernel(gi_ref, valid_ref, whh_ref, bhh_ref, out_ref):
    # gi:    (T, B, 3H)  precomputed x @ Wih + bih (time-reversed for the bwd direction)
    # valid: (T, B, 1)   length mask (emulates pack_padded_sequence)
    # whh:   (H, 3H), bhh: (1, 3H); gate order [r | z | n] on lanes.
    # out:   (T, B, H)
    T, B, _ = gi_ref.shape
    H = whh_ref.shape[0]

    whh = whh_ref[...]
    bhh = bhh_ref[...]

    h = jnp.zeros((B, H), jnp.float32)
    for t in range(T):                       # static loop: all indices concrete
        gi = gi_ref[t]                       # (B, 3H)  hoisted input projection
        v = valid_ref[t]                     # (B, 1)
        gh = jnp.dot(h, whh, preferred_element_type=jnp.float32) + bhh
        r = jax.nn.sigmoid(gi[:, :H] + gh[:, :H])
        z = jax.nn.sigmoid(gi[:, H:2 * H] + gh[:, H:2 * H])
        n = jnp.tanh(gi[:, 2 * H:] + r * gh[:, 2 * H:])
        h_new = (1.0 - z) * n + z * h
        h = v * h_new + (1.0 - v) * h        # freeze state past sequence end
        out_ref[t] = v * h                   # padded steps emit zeros


def pallas_bigru_layer(gi_stack, valid_stack, whh2, bhh2):
    """gi_stack: (2, T, B, 3H) (dir 1 pre-reversed); returns (2, T, B, H)."""
    _, T, B, threeH = gi_stack.shape
    H = whh2.shape[1]
    return pl.pallas_call(
        _enc_gru_kernel,
        out_shape=jax.ShapeDtypeStruct((2, T, B, H), jnp.float32),
        grid=(2,),
        in_specs=[
            pl.BlockSpec((None, T, B, threeH), lambda d: (d, 0, 0, 0)),
            pl.BlockSpec((None, T, B, 1), lambda d: (d, 0, 0, 0)),
            pl.BlockSpec((None, H, threeH), lambda d: (d, 0, 0)),
            pl.BlockSpec((None, 1, threeH), lambda d: (d, 0, 0)),
        ],
        out_specs=pl.BlockSpec((None, T, B, H), lambda d: (d, 0, 0, 0)),
        compiler_params=pltpu.CompilerParams(dimension_semantics=("parallel",)),
    )(gi_stack, valid_stack, whh2, bhh2)


# ----------------------------------------------------------------------------
# Kernel 2: fused decoder layer (attention + softmax + context + GRU per step).
#   Key projection Ua(keys)+bu, initial state s0 and the teacher-forced input
#   projection x@Wih_x+bih are all hoisted (computed once per layer in the wrapper).
# ----------------------------------------------------------------------------

def _dec_layer_kernel(gix_ref, keys_ref, kp_ref, wa_ref, ba_ref, va_ref,
                      wihc_ref, whh_ref, bhh_ref, s0_ref, out_ref):
    # gix: (Tt, B, 3H) = x @ Wih_x + bih, keys: (B, Ts, 2H), kp: (B, Ts, H) = Ua(keys)+bu,
    # wa: (H, H), ba/va: (1, H), wihc: (2H, 3H), whh: (H, 3H), bhh: (1, 3H), s0: (B, H).
    # out: (Tt, B, H)
    Tt = gix_ref.shape[0]
    H = whh_ref.shape[0]

    keys = keys_ref[...]
    kp = kp_ref[...]
    wa = wa_ref[...]
    ba = ba_ref[...]
    va = va_ref[...]
    wihc = wihc_ref[...]
    whh = whh_ref[...]
    bhh = bhh_ref[...]

    s = s0_ref[...]
    for t in range(Tt):                      # static loop: all indices concrete
        # --- additive attention (masked_fill is a no-op in the PyTorch code) ---
        qp = jnp.dot(s, wa, preferred_element_type=jnp.float32) + ba          # (B, H)
        e = jnp.tanh(qp[:, None, :] + kp)                                     # (B, Ts, H)
        scores = jnp.sum(e * va[None, :, :], axis=-1)                         # (B, Ts)
        m = jnp.max(scores, axis=-1, keepdims=True)
        w = jnp.exp(scores - m)
        w = w * pl.reciprocal(jnp.sum(w, axis=-1, keepdims=True), approx=True)
        # VPU/XLU weighted reduce instead of B separate M=1 MXU matmuls.
        ctx = jnp.sum(w[:, :, None] * keys, axis=1)                           # (B, 2H)
        # --- GRU cell; x-part of the gates was precomputed (gix), ctx-part here ---
        gi = gix_ref[t] + jnp.dot(ctx, wihc, preferred_element_type=jnp.float32)  # (B, 3H)
        gh = jnp.dot(s, whh, preferred_element_type=jnp.float32) + bhh            # (B, 3H)
        r = jax.nn.sigmoid(gi[:, :H] + gh[:, :H])
        z = jax.nn.sigmoid(gi[:, H:2 * H] + gh[:, H:2 * H])
        n = jnp.tanh(gi[:, 2 * H:] + r * gh[:, 2 * H:])
        s = (1.0 - z) * n + z * s
        out_ref[t] = s


def pallas_decoder_layer(gix, keys, kp, wa, ba, va, wihc, whh, bhh, s0):
    Tt, B, _ = gix.shape
    H = whh.shape[0]
    vmem = pl.BlockSpec(memory_space=pltpu.MemorySpace.VMEM)
    return pl.pallas_call(
        _dec_layer_kernel,
        out_shape=jax.ShapeDtypeStruct((Tt, B, H), jnp.float32),
        in_specs=[vmem] * 10,
        out_specs=vmem,
    )(gix, keys, kp, wa, ba, va, wihc, whh, bhh, s0)


# ----------------------------------------------------------------------------
# Kernel 3: dense projection (output vocabulary logits).
# ----------------------------------------------------------------------------

def _dense_kernel(x_ref, w_ref, b_ref, o_ref):
    o_ref[...] = (jnp.dot(x_ref[...], w_ref[...],
                          preferred_element_type=jnp.float32) + b_ref[...])


def pallas_dense(x, w, b):
    # TODO(synk): at realistic vocab sizes tile the N axis in 128-multiples with a grid
    # (smaller N tiles on v7x, 64 MiB VMEM) and add a row-grid for megacore.
    M = x.shape[0]
    N = w.shape[1]
    vmem = pl.BlockSpec(memory_space=pltpu.MemorySpace.VMEM)
    return pl.pallas_call(
        _dense_kernel,
        out_shape=jax.ShapeDtypeStruct((M, N), jnp.float32),
        in_specs=[vmem] * 3,
        out_specs=vmem,
    )(x, w, b)


# ----------------------------------------------------------------------------
# Model forward (glue in plain JAX, recurrent hot loops in the kernels above)
# ----------------------------------------------------------------------------

def encoder_forward(x_s, params, n_layers):
    """EncoderND.forward: returns all_nh of shape (n_layers, B, T, 2H)."""
    B, T = x_s.shape
    lens = jnp.sum((x_s != 0).astype(jnp.int32), axis=1)
    emb = jnp.take(params["emb_s"], x_s, axis=0)                    # (B, T, E)
    # nn.Embedding(max_norm=1): renormalize looked-up rows to L2-norm <= 1.
    norm = jnp.sqrt(jnp.sum(emb * emb, axis=-1, keepdims=True))
    emb = emb * jnp.where(norm > 1.0, 1.0 / (norm + 1e-7), 1.0)

    valid = (jnp.arange(T)[:, None] < lens[None, :]).astype(jnp.float32)[:, :, None]  # (T,B,1)
    # Direction-stacked mask; dir 1 is time-reversed (so the kernel never needs T-1-t).
    valid_stack = jnp.stack([valid, jnp.flip(valid, axis=0)], axis=0)          # (2,T,B,1)
    # TODO(synk): scalar-prefetch `lens` and bound the time loop at max length for
    # heavily padded batches instead of masking every step.

    all_nh = []
    inp = jnp.transpose(emb, (1, 0, 2))                             # (T, B, E)
    for l in range(n_layers):
        p = params["enc_gru"][l]
        # Hoisted input projection for BOTH directions: one tall matmul per direction,
        # outside the recurrent loop.  Backward copy is pre-reversed on the time axis.
        gi = jnp.einsum('tbi,dih->dtbh', inp, p["wih"]) + p["bih"][:, None]    # (2,T,B,3H)
        gi_stack = jnp.concatenate([gi[:1], jnp.flip(gi[1:], axis=1)], axis=0)
        outs = pallas_bigru_layer(gi_stack, valid_stack, p["whh"], p["bhh"])   # (2,T,B,H)
        out = jnp.concatenate([outs[0], jnp.flip(outs[1], axis=0)], axis=-1)   # (T,B,2H)
        all_nh.append(jnp.transpose(out, (1, 0, 2)))                # (B,T,2H); dropout=identity
        inp = out
    return jnp.stack(all_nh, axis=0)


def decoder_forward(x_t, all_nh, params, n_layers, H):
    """DecoderND.forward: returns logits (B, T_t, V_t)."""
    B, Tt = x_t.shape
    att = params["att"]
    emb = jnp.take(params["emb_t"], x_t, axis=0)                    # (B, Tt, E), dropout=identity

    skip = jnp.zeros((Tt, B, H), jnp.float32)
    x = jnp.transpose(emb, (1, 0, 2))                               # (Tt, B, E)
    for l in range(n_layers):
        henc = all_nh[l]                                            # (B, Ts, 2H)
        # Hoisted key projection (once per layer, not per decoder step).
        kp = jnp.einsum('btk,kh->bth', henc, att["ua"]) + att["bu"] # (B, Ts, H)
        # s_prev0 = hidden_encoder[:, :1, H:] @ initialWs[l] (too small for a kernel).
        s0 = jnp.dot(henc[:, 0, H:], params["initialWs"][l])        # (B, H)
        gp = params["dec_gru"][l]
        in_x = x.shape[2]
        # Hoisted teacher-forced input projection for all steps (x-part of fused Wih);
        # the ctx-part stays inside the per-step loop in the kernel.
        gix = jnp.einsum('tbi,ig->tbg', x, gp["wih"][:in_x]) + gp["bih"]       # (Tt,B,3H)
        wihc = gp["wih"][in_x:]                                     # ctx-part of fused Wih
        hdec = pallas_decoder_layer(gix, henc, kp, att["wa"], att["ba"], att["va"],
                                    wihc, gp["whh"], gp["bhh"], s0)
        skip = skip + hdec                                          # (Tt, B, H)
        x = hdec                                                    # dropout = identity

    V_t = params["w_out"].shape[1]
    out = pallas_dense(skip.reshape(Tt * B, H), params["w_out"], params["b_out"])
    return jnp.transpose(out.reshape(Tt, B, V_t), (1, 0, 2))        # (B, Tt, V_t)


def translation_dnn_forward(x_s, x_t, params, n_layers, H):
    all_nh = encoder_forward(x_s, params, n_layers)
    return decoder_forward(x_t, all_nh, params, n_layers, H)


# ----------------------------------------------------------------------------
# Deterministic parameter init (shapes match the PyTorch __init__, gates fused)
# ----------------------------------------------------------------------------

def init_params(key, V_s, V_t, E, H, n_layers):
    keys = iter(jax.random.split(key, 128))

    def nrm(shape, std=0.02):
        return (jax.random.normal(next(keys), shape, jnp.float32) * std).astype(jnp.float32)

    k = 1.0 / math.sqrt(H)

    def uni(shape):
        return jax.random.uniform(next(keys), shape, jnp.float32, -k, k)

    def gru_params(in_dim):
        # gate order [r | z | n] concatenated on the output (lane) axis
        return dict(wih=uni((in_dim, 3 * H)), whh=uni((H, 3 * H)),
                    bih=uni((1, 3 * H)), bhh=uni((1, 3 * H)))

    params = {}
    params["emb_s"] = nrm((V_s, E))
    params["emb_t"] = nrm((V_t, E))

    params["enc_gru"] = []
    for l in range(n_layers):
        in_dim = E if l == 0 else 2 * H
        fwd, bwd = gru_params(in_dim), gru_params(in_dim)
        params["enc_gru"].append(dict(
            wih=jnp.stack([fwd["wih"], bwd["wih"]]),   # (2, In, 3H)
            whh=jnp.stack([fwd["whh"], bwd["whh"]]),   # (2, H, 3H)
            bih=jnp.stack([fwd["bih"], bwd["bih"]]),   # (2, 1, 3H)
            bhh=jnp.stack([fwd["bhh"], bwd["bhh"]]),   # (2, 1, 3H)
        ))

    params["dec_gru"] = []
    for l in range(n_layers):
        in_dim = E + 2 * H if l == 0 else 3 * H
        params["dec_gru"].append(gru_params(in_dim))

    # Single AddAttention instance shared across decoder layers (as in PyTorch).
    params["att"] = dict(wa=nrm((H, H)), ba=jnp.zeros((1, H), jnp.float32),
                         ua=nrm((2 * H, H)), bu=jnp.zeros((1, H), jnp.float32),
                         va=nrm((1, H)))

    params["w_out"] = nrm((H, V_t))
    params["b_out"] = jnp.zeros((1, V_t), jnp.float32)
    params["initialWs"] = jax.random.normal(next(keys), (n_layers, H, H), jnp.float32)
    return params


# ----------------------------------------------------------------------------
# Main
# ----------------------------------------------------------------------------

if __name__ == "__main__":
    V_s, V_t, E, H = 40, 48, 16, 32
    n_layers = 2
    B, T_s, T_t = 2, 8, 6

    root = jax.random.PRNGKey(0)
    pkey, dk1, dk2 = jax.random.split(root, 3)
    params = init_params(pkey, V_s, V_t, E, H, n_layers)

    # Source tokens: nonzero, with the second sequence padded (zeros) at the end.
    x_s = jax.random.randint(dk1, (B, T_s), 1, V_s).astype(jnp.int32)
    x_s = x_s.at[1, T_s - 2:].set(0)          # batch 0 keeps full length (max len == T_s)
    # Target tokens (decoder input).
    x_t = jax.random.randint(dk2, (B, T_t), 1, V_t).astype(jnp.int32)

    fwd = jax.jit(lambda xs, xt: translation_dnn_forward(xs, xt, params, n_layers, H))
    out = fwd(x_s, x_t)
    out = jax.block_until_ready(out)

    assert out.shape == (B, T_t, V_t), out.shape
    assert out.dtype == jnp.float32
    assert bool(jnp.all(jnp.isfinite(out)))
    print("KERNEL_OK")
</pallas_src>

<mosaic_0001>
module attributes {stable_mosaic.version = 11 : i64} {
  func.func @_enc_gru_kernel(%arg0: i32, %arg1: memref<1x8x2x96xf32, #tpu.memory_space<vmem>>, %arg2: memref<1x8x2x1xf32, #tpu.memory_space<vmem>>, %arg3: memref<1x32x96xf32, #tpu.memory_space<vmem>>, %arg4: memref<1x1x96xf32, #tpu.memory_space<vmem>>, %arg5: memref<1x8x2x32xf32, #tpu.memory_space<vmem>>) attributes {dimension_semantics = [#tpu.dimension_semantics<parallel>], iteration_bounds = array<i64: 2>, scalar_prefetch = 0 : i64, scratch_operands = 0 : i64, tpu.core_type = #tpu.core_type<tc>, window_params = [{transform_indices = @transform_0, window_bounds = array<i64: 1, 8, 2, 96>}, {transform_indices = @transform_1, window_bounds = array<i64: 1, 8, 2, 1>}, {transform_indices = @transform_2, window_bounds = array<i64: 1, 32, 96>}, {transform_indices = @transform_3, window_bounds = array<i64: 1, 1, 96>}, {transform_indices = @transform_4, window_bounds = array<i64: 1, 8, 2, 32>}]} {
    %c0 = arith.constant 0 : index
    %c0_0 = arith.constant 0 : index
    %c0_1 = arith.constant 0 : index
    %0 = vector.load %arg3[%c0, %c0_0, %c0_1] : memref<1x32x96xf32, #tpu.memory_space<vmem>>, vector<1x32x96xf32>
    %1 = vector.shape_cast %0 : vector<1x32x96xf32> to vector<32x96xf32>
    %c0_2 = arith.constant 0 : index
    %c0_3 = arith.constant 0 : index
    %c0_4 = arith.constant 0 : index
    %2 = vector.load %arg4[%c0_2, %c0_3, %c0_4] : memref<1x1x96xf32, #tpu.memory_space<vmem>>, vector<1x1x96xf32>
    %3 = vector.shape_cast %2 : vector<1x1x96xf32> to vector<1x96xf32>
    %cst = arith.constant 0.000000e+00 : f32
    %4 = vector.broadcast %cst : f32 to vector<2x32xf32>
    %c0_5 = arith.constant 0 : index
    %c0_6 = arith.constant 0 : index
    %c0_7 = arith.constant 0 : index
    %c0_8 = arith.constant 0 : index
    %5 = vector.load %arg1[%c0_5, %c0_6, %c0_7, %c0_8] : memref<1x8x2x96xf32, #tpu.memory_space<vmem>>, vector<1x1x2x96xf32>
    %6 = vector.shape_cast %5 : vector<1x1x2x96xf32> to vector<2x96xf32>
    %c0_9 = arith.constant 0 : index
    %c0_10 = arith.constant 0 : index
    %c0_11 = arith.constant 0 : index
    %c0_12 = arith.constant 0 : index
    %7 = vector.load %arg2[%c0_9, %c0_10, %c0_11, %c0_12] : memref<1x8x2x1xf32, #tpu.memory_space<vmem>>, vector<1x1x2x1xf32>
    %8 = vector.shape_cast %7 : vector<1x1x2x1xf32> to vector<2x1xf32>
    %cst_13 = arith.constant dense<0.000000e+00> : vector<2x96xf32>
    %9 = tpu.matmul %4, %1, %cst_13 {dimension_numbers = #tpu.dot_dimension_numbers<[1], [0], [0], [1], [0, 0, 1, 1], [], []>} : vector<2x32xf32>, vector<32x96xf32>, vector<2x96xf32> -> vector<2x96xf32>
    %10 = vector.broadcast %3 : vector<1x96xf32> to vector<2x96xf32>
    %11 = arith.addf %9, %10 : vector<2x96xf32>
    %12 = vector.extract_strided_slice %6 {offsets = [0, 0], sizes = [2, 32], strides = [1, 1]} : vector<2x96xf32> to vector<2x32xf32>
    %13 = vector.extract_strided_slice %11 {offsets = [0, 0], sizes = [2, 32], strides = [1, 1]} : vector<2x96xf32> to vector<2x32xf32>
    %14 = arith.addf %12, %13 : vector<2x32xf32>
    %15 = arith.negf %14 : vector<2x32xf32>
    %16 = math.exp %15 : vector<2x32xf32>
    %cst_14 = arith.constant 1.000000e+00 : f32
    %17 = vector.broadcast %cst_14 : f32 to vector<2x32xf32>
    %18 = arith.addf %17, %16 : vector<2x32xf32>
    %19 = arith.divf %17, %18 : vector<2x32xf32>
    %20 = vector.extract_strided_slice %6 {offsets = [0, 32], sizes = [2, 32], strides = [1, 1]} : vector<2x96xf32> to vector<2x32xf32>
    %21 = vector.extract_strided_slice %11 {offsets = [0, 32], sizes = [2, 32], strides = [1, 1]} : vector<2x96xf32> to vector<2x32xf32>
    %22 = arith.addf %20, %21 : vector<2x32xf32>
    %23 = arith.negf %22 : vector<2x32xf32>
    %24 = math.exp %23 : vector<2x32xf32>
    %cst_15 = arith.constant 1.000000e+00 : f32
    %25 = vector.broadcast %cst_15 : f32 to vector<2x32xf32>
    %26 = arith.addf %25, %24 : vector<2x32xf32>
    %27 = arith.divf %25, %26 : vector<2x32xf32>
    %28 = vector.extract_strided_slice %6 {offsets = [0, 64], sizes = [2, 32], strides = [1, 1]} : vector<2x96xf32> to vector<2x32xf32>
    %29 = vector.extract_strided_slice %11 {offsets = [0, 64], sizes = [2, 32], strides = [1, 1]} : vector<2x96xf32> to vector<2x32xf32>
    %30 = arith.mulf %19, %29 : vector<2x32xf32>
    %31 = arith.addf %28, %30 : vector<2x32xf32>
    %32 = math.tanh %31 : vector<2x32xf32>
    %cst_16 = arith.constant 1.000000e+00 : f32
    %33 = vector.broadcast %cst_16 : f32 to vector<2x32xf32>
    %34 = arith.subf %33, %27 : vector<2x32xf32>
    %35 = arith.mulf %34, %32 : vector<2x32xf32>
    %36 = arith.mulf %27, %4 : vector<2x32xf32>
    %37 = arith.addf %35, %36 : vector<2x32xf32>
    %38 = vector.broadcast %8 : vector<2x1xf32> to vector<2x32xf32>
    %39 = arith.mulf %38, %37 : vector<2x32xf32>
    %cst_17 = arith.constant 1.000000e+00 : f32
    %40 = vector.broadcast %cst_17 : f32 to vector<2x1xf32>
    %41 = arith.subf %40, %8 : vector<2x1xf32>
    %42 = vector.broadcast %41 : vector<2x1xf32> to vector<2x32xf32>
    %43 = arith.mulf %42, %4 : vector<2x32xf32>
    %44 = arith.addf %39, %43 : vector<2x32xf32>
    %45 = vector.broadcast %8 : vector<2x1xf32> to vector<2x32xf32>
    %46 = arith.mulf %45, %44 : vector<2x32xf32>
    %c0_18 = arith.constant 0 : index
    %c0_19 = arith.constant 0 : index
    %c0_20 = arith.constant 0 : index
    %c0_21 = arith.constant 0 : index
    %47 = vector.load %arg5[%c0_18, %c0_19, %c0_20, %c0_21] : memref<1x8x2x32xf32, #tpu.memory_space<vmem>>, vector<1x1x2x32xf32>
    %48 = vector.shape_cast %47 : vector<1x1x2x32xf32> to vector<2x32xf32>
    %49 = vector.shape_cast %46 : vector<2x32xf32> to vector<1x1x2x32xf32>
    tpu.vector_store %arg5[%c0_18, %c0_19, %c0_20, %c0_21], %49 {strides = array<i32>} : memref<1x8x2x32xf32, #tpu.memory_space<vmem>>, vector<1x1x2x32xf32>,
    %c0_22 = arith.constant 0 : index
    %c1 = arith.constant 1 : index
    %c0_23 = arith.constant 0 : index
    %c0_24 = arith.constant 0 : index
    %50 = vector.load %arg1[%c0_22, %c1, %c0_23, %c0_24] : memref<1x8x2x96xf32, #tpu.memory_space<vmem>>, vector<1x1x2x96xf32>
    %51 = vector.shape_cast %50 : vector<1x1x2x96xf32> to vector<2x96xf32>
    %c0_25 = arith.constant 0 : index
    %c1_26 = arith.constant 1 : index
    %c0_27 = arith.constant 0 : index
    %c0_28 = arith.constant 0 : index
    %52 = vector.load %arg2[%c0_25, %c1_26, %c0_27, %c0_28] : memref<1x8x2x1xf32, #tpu.memory_space<vmem>>, vector<1x1x2x1xf32>
    %53 = vector.shape_cast %52 : vector<1x1x2x1xf32> to vector<2x1xf32>
    %cst_29 = arith.constant dense<0.000000e+00> : vector<2x96xf32>
    %54 = tpu.matmul %44, %1, %cst_29 {dimension_numbers = #tpu.dot_dimension_numbers<[1], [0], [0], [1], [0, 0, 1, 1], [], []>} : vector<2x32xf32>, vector<32x96xf32>, vector<2x96xf32> -> vector<2x96xf32>
    %55 = vector.broadcast %3 : vector<1x96xf32> to vector<2x96xf32>
    %56 = arith.addf %54, %55 : vector<2x96xf32>
    %57 = vector.extract_strided_slice %51 {offsets = [0, 0], sizes = [2, 32], strides = [1, 1]} : vector<2x96xf32> to vector<2x32xf32>
    %58 = vector.extract_strided_slice %56 {offsets = [0, 0], sizes = [2, 32], strides = [1, 1]} : vector<2x96xf32> to vector<2x32xf32>
    %59 = arith.addf %57, %58 : vector<2x32xf32>
    %60 = arith.negf %59 : vector<2x32xf32>
    %61 = math.exp %60 : vector<2x32xf32>
    %cst_30 = arith.constant 1.000000e+00 : f32
    %62 = vector.broadcast %cst_30 : f32 to vector<2x32xf32>
    %63 = arith.addf %62, %61 : vector<2x32xf32>
    %64 = arith.divf %62, %63 : vector<2x32xf32>
    %65 = vector.extract_strided_slice %51 {offsets = [0, 32], sizes = [2, 32], strides = [1, 1]} : vector<2x96xf32> to vector<2x32xf32>
    %66 = vector.extract_strided_slice %56 {offsets = [0, 32], sizes = [2, 32], strides = [1, 1]} : vector<2x96xf32> to vector<2x32xf32>
    %67 = arith.addf %65, %66 : vector<2x32xf32>
    %68 = arith.negf %67 : vector<2x32xf32>
    %69 = math.exp %68 : vector<2x32xf32>
    %cst_31 = arith.constant 1.000000e+00 : f32
    %70 = vector.broadcast %cst_31 : f32 to vector<2x32xf32>
    %71 = arith.addf %70, %69 : vector<2x32xf32>
    %72 = arith.divf %70, %71 : vector<2x32xf32>
    %73 = vector.extract_strided_slice %51 {offsets = [0, 64], sizes = [2, 32], strides = [1, 1]} : vector<2x96xf32> to vector<2x32xf32>
    %74 = vector.extract_strided_slice %56 {offsets = [0, 64], sizes = [2, 32], strides = [1, 1]} : vector<2x96xf32> to vector<2x32xf32>
    %75 = arith.mulf %64, %74 : vector<2x32xf32>
    %76 = arith.addf %73, %75 : vector<2x32xf32>
    %77 = math.tanh %76 : vector<2x32xf32>
    %cst_32 = arith.constant 1.000000e+00 : f32
    %78 = vector.broadcast %cst_32 : f32 to vector<2x32xf32>
    %79 = arith.subf %78, %72 : vector<2x32xf32>
    %80 = arith.mulf %79, %77 : vector<2x32xf32>
    %81 = arith.mulf %72, %44 : vector<2x32xf32>
    %82 = arith.addf %80, %81 : vector<2x32xf32>
    %83 = vector.broadcast %53 : vector<2x1xf32> to vector<2x32xf32>
    %84 = arith.mulf %83, %82 : vector<2x32xf32>
    %cst_33 = arith.constant 1.000000e+00 : f32
    %85 = vector.broadcast %cst_33 : f32 to vector<2x1xf32>
    %86 = arith.subf %85, %53 : vector<2x1xf32>
    %87 = vector.broadcast %86 : vector<2x1xf32> to vector<2x32xf32>
    %88 = arith.mulf %87, %44 : vector<2x32xf32>
    %89 = arith.addf %84, %88 : vector<2x32xf32>
    %90 = vector.broadcast %53 : vector<2x1xf32> to vector<2x32xf32>
    %91 = arith.mulf %90, %89 : vector<2x32xf32>
    %c0_34 = arith.constant 0 : index
    %c1_35 = arith.constant 1 : index
    %c0_36 = arith.constant 0 : index
    %c0_37 = arith.constant 0 : index
    %92 = vector.load %arg5[%c0_34, %c1_35, %c0_36, %c0_37] : memref<1x8x2x32xf32, #tpu.memory_space<vmem>>, vector<1x1x2x32xf32>
    %93 = vector.shape_cast %92 : vector<1x1x2x32xf32> to vector<2x32xf32>
    %94 = vector.shape_cast %91 : vector<2x32xf32> to vector<1x1x2x32xf32>
    tpu.vector_store %arg5[%c0_34, %c1_35, %c0_36, %c0_37], %94 {strides = array<i32>} : memref<1x8x2x32xf32, #tpu.memory_space<vmem>>, vector<1x1x2x32xf32>,
    %c0_38 = arith.constant 0 : index
    %c2 = arith.constant 2 : index
    %c0_39 = arith.constant 0 : index
    %c0_40 = arith.constant 0 : index
    %95 = vector.load %arg1[%c0_38, %c2, %c0_39, %c0_40] : memref<1x8x2x96xf32, #tpu.memory_space<vmem>>, vector<1x1x2x96xf32>
    %96 = vector.shape_cast %95 : vector<1x1x2x96xf32> to vector<2x96xf32>
    %c0_41 = arith.constant 0 : index
    %c2_42 = arith.constant 2 : index
    %c0_43 = arith.constant 0 : index
    %c0_44 = arith.constant 0 : index
    %97 = vector.load %arg2[%c0_41, %c2_42, %c0_43, %c0_44] : memref<1x8x2x1xf32, #tpu.memory_space<vmem>>, vector<1x1x2x1xf32>
    %98 = vector.shape_cast %97 : vector<1x1x2x1xf32> to vector<2x1xf32>
    %cst_45 = arith.constant dense<0.000000e+00> : vector<2x96xf32>
    %99 = tpu.matmul %89, %1, %cst_45 {dimension_numbers = #tpu.dot_dimension_numbers<[1], [0], [0], [1], [0, 0, 1, 1], [], []>} : vector<2x32xf32>, vector<32x96xf32>, vector<2x96xf32> -> vector<2x96xf32>
    %100 = vector.broadcast %3 : vector<1x96xf32> to vector<2x96xf32>
    %101 = arith.addf %99, %100 : vector<2x96xf32>
    %102 = vector.extract_strided_slice %96 {offsets = [0, 0], sizes = [2, 32], strides = [1, 1]} : vector<2x96xf32> to vector<2x32xf32>
    %103 = vector.extract_strided_slice %101 {offsets = [0, 0], sizes = [2, 32], strides = [1, 1]} : vector<2x96xf32> to vector<2x32xf32>
    %104 = arith.addf %102, %103 : vector<2x32xf32>
    %105 = arith.negf %104 : vector<2x32xf32>
    %106 = math.exp %105 : vector<2x32xf32>
    %cst_46 = arith.constant 1.000000e+00 : f32
    %107 = vector.broadcast %cst_46 : f32 to vector<2x32xf32>
    %108 = arith.addf %107, %106 : vector<2x32xf32>
    %109 = arith.divf %107, %108 : vector<2x32xf32>
    %110 = vector.extract_strided_slice %96 {offsets = [0, 32], sizes = [2, 32], strides = [1, 1]} : vector<2x96xf32> to vector<2x32xf32>
    %111 = vector.extract_strided_slice %101 {offsets = [0, 32], sizes = [2, 32], strides = [1, 1]} : vector<2x96xf32> to vector<2x32xf32>
    %112 = arith.addf %110, %111 : vector<2x32xf32>
    %113 = arith.negf %112 : vector<2x32xf32>
    %114 = math.exp %113 : vector<2x32xf32>
    %cst_47 = arith.constant 1.000000e+00 : f32
    %115 = vector.broadcast %cst_47 : f32 to vector<2x32xf32>
    %116 = arith.addf %115, %114 : vector<2x32xf32>
    %117 = arith.divf %115, %116 : vector<2x32xf32>
    %118 = vector.extract_strided_slice %96 {offsets = [0, 64], sizes = [2, 32], strides = [1, 1]} : vector<2x96xf32> to vector<2x32xf32>
    %119 = vector.extract_strided_slice %101 {offsets = [0, 64], sizes = [2, 32], strides = [1, 1]} : vector<2x96xf32> to vector<2x32xf32>
    %120 = arith.mulf %109, %119 : vector<2x32xf32>
    %121 = arith.addf %118, %120 : vector<2x32xf32>
    %122 = math.tanh %121 : vector<2x32xf32>
    %cst_48 = arith.constant 1.000000e+00 : f32
    %123 = vector.broadcast %cst_48 : f32 to vector<2x32xf32>
    %124 = arith.subf %123, %117 : vector<2x32xf32>
    %125 = arith.mulf %124, %122 : vector<2x32xf32>
    %126 = arith.mulf %117, %89 : vector<2x32xf32>
    %127 = arith.addf %125, %126 : vector<2x32xf32>
    %128 = vector.broadcast %98 : vector<2x1xf32> to vector<2x32xf32>
    %129 = arith.mulf %128, %127 : vector<2x32xf32>
    %cst_49 = arith.constant 1.000000e+00 : f32
    %130 = vector.broadcast %cst_49 : f32 to vector<2x1xf32>
    %131 = arith.subf %130, %98 : vector<2x1xf32>
    %132 = vector.broadcast %131 : vector<2x1xf32> to vector<2x32xf32>
    %133 = arith.mulf %132, %89 : vector<2x32xf32>
    %134 = arith.addf %129, %133 : vector<2x32xf32>
    %135 = vector.broadcast %98 : vector<2x1xf32> to vector<2x32xf32>
    %136 = arith.mulf %135, %134 : vector<2x32xf32>
    %c0_50 = arith.constant 0 : index
    %c2_51 = arith.constant 2 : index
    %c0_52 = arith.constant 0 : index
    %c0_53 = arith.constant 0 : index
    %137 = vector.load %arg5[%c0_50, %c2_51, %c0_52, %c0_53] : memref<1x8x2x32xf32, #tpu.memory_space<vmem>>, vector<1x1x2x32xf32>
    %138 = vector.shape_cast %137 : vector<1x1x2x32xf32> to vector<2x32xf32>
    %139 = vector.shape_cast %136 : vector<2x32xf32> to vector<1x1x2x32xf32>
    tpu.vector_store %arg5[%c0_50, %c2_51, %c0_52, %c0_53], %139 {strides = array<i32>} : memref<1x8x2x32xf32, #tpu.memory_space<vmem>>, vector<1x1x2x32xf32>,
    %c0_54 = arith.constant 0 : index
    %c3 = arith.constant 3 : index
    %c0_55 = arith.constant 0 : index
    %c0_56 = arith.constant 0 : index
    %140 = vector.load %arg1[%c0_54, %c3, %c0_55, %c0_56] : memref<1x8x2x96xf32, #tpu.memory_space<vmem>>, vector<1x1x2x96xf32>
    %141 = vector.shape_cast %140 : vector<1x1x2x96xf32> to vector<2x96xf32>
    %c0_57 = arith.constant 0 : index
    %c3_58 = arith.constant 3 : index
    %c0_59 = arith.constant 0 : index
    %c0_60 = arith.constant 0 : index
    %142 = vector.load %arg2[%c0_57, %c3_58, %c0_59, %c0_60] : memref<1x8x2x1xf32, #tpu.memory_space<vmem>>, vector<1x1x2x1xf32>
    %143 = vector.shape_cast %142 : vector<1x1x2x1xf32> to vector<2x1xf32>
    %cst_61 = arith.constant dense<0.000000e+00> : vector<2x96xf32>
    %144 = tpu.matmul %134, %1, %cst_61 {dimension_numbers = #tpu.dot_dimension_numbers<[1], [0], [0], [1], [0, 0, 1, 1], [], []>} : vector<2x32xf32>, vector<32x96xf32>, vector<2x96xf32> -> vector<2x96xf32>
    %145 = vector.broadcast %3 : vector<1x96xf32> to vector<2x96xf32>
    %146 = arith.addf %144, %145 : vector<2x96xf32>
    %147 = vector.extract_strided_slice %141 {offsets = [0, 0], sizes = [2, 32], strides = [1, 1]} : vector<2x96xf32> to vector<2x32xf32>
    %148 = vector.extract_strided_slice %146 {offsets = [0, 0], sizes = [2, 32], strides = [1, 1]} : vector<2x96xf32> to vector<2x32xf32>
    %149 = arith.addf %147, %148 : vector<2x32xf32>
    %150 = arith.negf %149 : vector<2x32xf32>
    %151 = math.exp %150 : vector<2x32xf32>
    %cst_62 = arith.constant 1.000000e+00 : f32
    %152 = vector.broadcast %cst_62 : f32 to vector<2x32xf32>
    %153 = arith.addf %152, %151 : vector<2x32xf32>
    %154 = arith.divf %152, %153 : vector<2x32xf32>
    %155 = vector.extract_strided_slice %141 {offsets = [0, 32], sizes = [2, 32], strides = [1, 1]} : vector<2x96xf32> to vector<2x32xf32>
    %156 = vector.extract_strided_slice %146 {offsets = [0, 32], sizes = [2, 32], strides = [1, 1]} : vector<2x96xf32> to vector<2x32xf32>
    %157 = arith.addf %155, %156 : vector<2x32xf32>
    %158 = arith.negf %157 : vector<2x32xf32>
    %159 = math.exp %158 : vector<2x32xf32>
    %cst_63 = arith.constant 1.000000e+00 : f32
    %160 = vector.broadcast %cst_63 : f32 to vector<2x32xf32>
    %161 = arith.addf %160, %159 : vector<2x32xf32>
    %162 = arith.divf %160, %161 : vector<2x32xf32>
    %163 = vector.extract_strided_slice %141 {offsets = [0, 64], sizes = [2, 32], strides = [1, 1]} : vector<2x96xf32> to vector<2x32xf32>
    %164 = vector.extract_strided_slice %146 {offsets = [0, 64], sizes = [2, 32], strides = [1, 1]} : vector<2x96xf32> to vector<2x32xf32>
    %165 = arith.mulf %154, %164 : vector<2x32xf32>
    %166 = arith.addf %163, %165 : vector<2x32xf32>
    %167 = math.tanh %166 : vector<2x32xf32>
    %cst_64 = arith.constant 1.000000e+00 : f32
    %168 = vector.broadcast %cst_64 : f32 to vector<2x32xf32>
    %169 = arith.subf %168, %162 : vector<2x32xf32>
    %170 = arith.mulf %169, %167 : vector<2x32xf32>
    %171 = arith.mulf %162, %134 : vector<2x32xf32>
    %172 = arith.addf %170, %171 : vector<2x32xf32>
    %173 = vector.broadcast %143 : vector<2x1xf32> to vector<2x32xf32>
    %174 = arith.mulf %173, %172 : vector<2x32xf32>
    %cst_65 = arith.constant 1.000000e+00 : f32
    %175 = vector.broadcast %cst_65 : f32 to vector<2x1xf32>
    %176 = arith.subf %175, %143 : vector<2x1xf32>
    %177 = vector.broadcast %176 : vector<2x1xf32> to vector<2x32xf32>
    %178 = arith.mulf %177, %134 : vector<2x32xf32>
    %179 = arith.addf %174, %178 : vector<2x32xf32>
    %180 = vector.broadcast %143 : vector<2x1xf32> to vector<2x32xf32>
    %181 = arith.mulf %180, %179 : vector<2x32xf32>
    %c0_66 = arith.constant 0 : index
    %c3_67 = arith.constant 3 : index
    %c0_68 = arith.constant 0 : index
    %c0_69 = arith.constant 0 : index
    %182 = vector.load %arg5[%c0_66, %c3_67, %c0_68, %c0_69] : memref<1x8x2x32xf32, #tpu.memory_space<vmem>>, vector<1x1x2x32xf32>
    %183 = vector.shape_cast %182 : vector<1x1x2x32xf32> to vector<2x32xf32>
    %184 = vector.shape_cast %181 : vector<2x32xf32> to vector<1x1x2x32xf32>
    tpu.vector_store %arg5[%c0_66, %c3_67, %c0_68, %c0_69], %184 {strides = array<i32>} : memref<1x8x2x32xf32, #tpu.memory_space<vmem>>, vector<1x1x2x32xf32>,
    %c0_70 = arith.constant 0 : index
    %c4 = arith.constant 4 : index
    %c0_71 = arith.constant 0 : index
    %c0_72 = arith.constant 0 : index
    %185 = vector.load %arg1[%c0_70, %c4, %c0_71, %c0_72] : memref<1x8x2x96xf32, #tpu.memory_space<vmem>>, vector<1x1x2x96xf32>
    %186 = vector.shape_cast %185 : vector<1x1x2x96xf32> to vector<2x96xf32>
    %c0_73 = arith.constant 0 : index
    %c4_74 = arith.constant 4 : index
    %c0_75 = arith.constant 0 : index
    %c0_76 = arith.constant 0 : index
    %187 = vector.load %arg2[%c0_73, %c4_74, %c0_75, %c0_76] : memref<1x8x2x1xf32, #tpu.memory_space<vmem>>, vector<1x1x2x1xf32>
    %188 = vector.shape_cast %187 : vector<1x1x2x1xf32> to vector<2x1xf32>
    %cst_77 = arith.constant dense<0.000000e+00> : vector<2x96xf32>
    %189 = tpu.matmul %179, %1, %cst_77 {dimension_numbers = #tpu.dot_dimension_numbers<[1], [0], [0], [1], [0, 0, 1, 1], [], []>} : vector<2x32xf32>, vector<32x96xf32>, vector<2x96xf32> -> vector<2x96xf32>
    %190 = vector.broadcast %3 : vector<1x96xf32> to vector<2x96xf32>
    %191 = arith.addf %189, %190 : vector<2x96xf32>
    %192 = vector.extract_strided_slice %186 {offsets = [0, 0], sizes = [2, 32], strides = [1, 1]} : vector<2x96xf32> to vector<2x32xf32>
    %193 = vector.extract_strided_slice %191 {offsets = [0, 0], sizes = [2, 32], strides = [1, 1]} : vector<2x96xf32> to vector<2x32xf32>
    %194 = arith.addf %192, %193 : vector<2x32xf32>
    %195 = arith.negf %194 : vector<2x32xf32>
    %196 = math.exp %195 : vector<2x32xf32>
    %cst_78 = arith.constant 1.000000e+00 : f32
    %197 = vector.broadcast %cst_78 : f32 to vector<2x32xf32>
    %198 = arith.addf %197, %196 : vector<2x32xf32>
    %199 = arith.divf %197, %198 : vector<2x32xf32>
    %200 = vector.extract_strided_slice %186 {offsets = [0, 32], sizes = [2, 32], strides = [1, 1]} : vector<2x96xf32> to vector<2x32xf32>
    %201 = vector.extract_strided_slice %191 {offsets = [0, 32], sizes = [2, 32], strides = [1, 1]} : vector<2x96xf32> to vector<2x32xf32>
    %202 = arith.addf %200, %201 : vector<2x32xf32>
    %203 = arith.negf %202 : vector<2x32xf32>
    %204 = math.exp %203 : vector<2x32xf32>
    %cst_79 = arith.constant 1.000000e+00 : f32
    %205 = vector.broadcast %cst_79 : f32 to vector<2x32xf32>
    %206 = arith.addf %205, %204 : vector<2x32xf32>
    %207 = arith.divf %205, %206 : vector<2x32xf32>
    %208 = vector.extract_strided_slice %186 {offsets = [0, 64], sizes = [2, 32], strides = [1, 1]} : vector<2x96xf32> to vector<2x32xf32>
    %209 = vector.extract_strided_slice %191 {offsets = [0, 64], sizes = [2, 32], strides = [1, 1]} : vector<2x96xf32> to vector<2x32xf32>
    %210 = arith.mulf %199, %209 : vector<2x32xf32>
    %211 = arith.addf %208, %210 : vector<2x32xf32>
    %212 = math.tanh %211 : vector<2x32xf32>
    %cst_80 = arith.constant 1.000000e+00 : f32
    %213 = vector.broadcast %cst_80 : f32 to vector<2x32xf32>
    %214 = arith.subf %213, %207 : vector<2x32xf32>
    %215 = arith.mulf %214, %212 : vector<2x32xf32>
    %216 = arith.mulf %207, %179 : vector<2x32xf32>
    %217 = arith.addf %215, %216 : vector<2x32xf32>
    %218 = vector.broadcast %188 : vector<2x1xf32> to vector<2x32xf32>
    %219 = arith.mulf %218, %217 : vector<2x32xf32>
    %cst_81 = arith.constant 1.000000e+00 : f32
    %220 = vector.broadcast %cst_81 : f32 to vector<2x1xf32>
    %221 = arith.subf %220, %188 : vector<2x1xf32>
    %222 = vector.broadcast %221 : vector<2x1xf32> to vector<2x32xf32>
    %223 = arith.mulf %222, %179 : vector<2x32xf32>
    %224 = arith.addf %219, %223 : vector<2x32xf32>
    %225 = vector.broadcast %188 : vector<2x1xf32> to vector<2x32xf32>
    %226 = arith.mulf %225, %224 : vector<2x32xf32>
    %c0_82 = arith.constant 0 : index
    %c4_83 = arith.constant 4 : index
    %c0_84 = arith.constant 0 : index
    %c0_85 = arith.constant 0 : index
    %227 = vector.load %arg5[%c0_82, %c4_83, %c0_84, %c0_85] : memref<1x8x2x32xf32, #tpu.memory_space<vmem>>, vector<1x1x2x32xf32>
    %228 = vector.shape_cast %227 : vector<1x1x2x32xf32> to vector<2x32xf32>
    %229 = vector.shape_cast %226 : vector<2x32xf32> to vector<1x1x2x32xf32>
    tpu.vector_store %arg5[%c0_82, %c4_83, %c0_84, %c0_85], %229 {strides = array<i32>} : memref<1x8x2x32xf32, #tpu.memory_space<vmem>>, vector<1x1x2x32xf32>,
    %c0_86 = arith.constant 0 : index
    %c5 = arith.constant 5 : index
    %c0_87 = arith.constant 0 : index
    %c0_88 = arith.constant 0 : index
    %230 = vector.load %arg1[%c0_86, %c5, %c0_87, %c0_88] : memref<1x8x2x96xf32, #tpu.memory_space<vmem>>, vector<1x1x2x96xf32>
    %231 = vector.shape_cast %230 : vector<1x1x2x96xf32> to vector<2x96xf32>
    %c0_89 = arith.constant 0 : index
    %c5_90 = arith.constant 5 : index
    %c0_91 = arith.constant 0 : index
    %c0_92 = arith.constant 0 : index
    %232 = vector.load %arg2[%c0_89, %c5_90, %c0_91, %c0_92] : memref<1x8x2x1xf32, #tpu.memory_space<vmem>>, vector<1x1x2x1xf32>
    %233 = vector.shape_cast %232 : vector<1x1x2x1xf32> to vector<2x1xf32>
    %cst_93 = arith.constant dense<0.000000e+00> : vector<2x96xf32>
    %234 = tpu.matmul %224, %1, %cst_93 {dimension_numbers = #tpu.dot_dimension_numbers<[1], [0], [0], [1], [0, 0, 1, 1], [], []>} : vector<2x32xf32>, vector<32x96xf32>, vector<2x96xf32> -> vector<2x96xf32>
    %235 = vector.broadcast %3 : vector<1x96xf32> to vector<2x96xf32>
    %236 = arith.addf %234, %235 : vector<2x96xf32>
    %237 = vector.extract_strided_slice %231 {offsets = [0, 0], sizes = [2, 32], strides = [1, 1]} : vector<2x96xf32> to vector<2x32xf32>
    %238 = vector.extract_strided_slice %236 {offsets = [0, 0], sizes = [2, 32], strides = [1, 1]} : vector<2x96xf32> to vector<2x32xf32>
    %239 = arith.addf %237, %238 : vector<2x32xf32>
    %240 = arith.negf %239 : vector<2x32xf32>
    %241 = math.exp %240 : vector<2x32xf32>
    %cst_94 = arith.constant 1.000000e+00 : f32
    %242 = vector.broadcast %cst_94 : f32 to vector<2x32xf32>
    %243 = arith.addf %242, %241 : vector<2x32xf32>
    %244 = arith.divf %242, %243 : vector<2x32xf32>
    %245 = vector.extract_strided_slice %231 {offsets = [0, 32], sizes = [2, 32], strides = [1, 1]} : vector<2x96xf32> to vector<2x32xf32>
    %246 = vector.extract_strided_slice %236 {offsets = [0, 32], sizes = [2, 32], strides = [1, 1]} : vector<2x96xf32> to vector<2x32xf32>
    %247 = arith.addf %245, %246 : vector<2x32xf32>
    %248 = arith.negf %247 : vector<2x32xf32>
    %249 = math.exp %248 : vector<2x32xf32>
    %cst_95 = arith.constant 1.000000e+00 : f32
    %250 = vector.broadcast %cst_95 : f32 to vector<2x32xf32>
    %251 = arith.addf %250, %249 : vector<2x32xf32>
    %252 = arith.divf %250, %251 : vector<2x32xf32>
    %253 = vector.extract_strided_slice %231 {offsets = [0, 64], sizes = [2, 32], strides = [1, 1]} : vector<2x96xf32> to vector<2x32xf32>
    %254 = vector.extract_strided_slice %236 {offsets = [0, 64], sizes = [2, 32], strides = [1, 1]} : vector<2x96xf32> to vector<2x32xf32>
    %255 = arith.mulf %244, %254 : vector<2x32xf32>
    %256 = arith.addf %253, %255 : vector<2x32xf32>
    %257 = math.tanh %256 : vector<2x32xf32>
    %cst_96 = arith.constant 1.000000e+00 : f32
    %258 = vector.broadcast %cst_96 : f32 to vector<2x32xf32>
    %259 = arith.subf %258, %252 : vector<2x32xf32>
    %260 = arith.mulf %259, %257 : vector<2x32xf32>
    %261 = arith.mulf %252, %224 : vector<2x32xf32>
    %262 = arith.addf %260, %261 : vector<2x32xf32>
    %263 = vector.broadcast %233 : vector<2x1xf32> to vector<2x32xf32>
    %264 = arith.mulf %263, %262 : vector<2x32xf32>
    %cst_97 = arith.constant 1.000000e+00 : f32
    %265 = vector.broadcast %cst_97 : f32 to vector<2x1xf32>
    %266 = arith.subf %265, %233 : vector<2x1xf32>
    %267 = vector.broadcast %266 : vector<2x1xf32> to vector<2x32xf32>
    %268 = arith.mulf %267, %224 : vector<2x32xf32>
    %269 = arith.addf %264, %268 : vector<2x32xf32>
    %270 = vector.broadcast %233 : vector<2x1xf32> to vector<2x32xf32>
    %271 = arith.mulf %270, %269 : vector<2x32xf32>
    %c0_98 = arith.constant 0 : index
    %c5_99 = arith.constant 5 : index
    %c0_100 = arith.constant 0 : index
    %c0_101 = arith.constant 0 : index
    %272 = vector.load %arg5[%c0_98, %c5_99, %c0_100, %c0_101] : memref<1x8x2x32xf32, #tpu.memory_space<vmem>>, vector<1x1x2x32xf32>
    %273 = vector.shape_cast %272 : vector<1x1x2x32xf32> to vector<2x32xf32>
    %274 = vector.shape_cast %271 : vector<2x32xf32> to vector<1x1x2x32xf32>
    tpu.vector_store %arg5[%c0_98, %c5_99, %c0_100, %c0_101], %274 {strides = array<i32>} : memref<1x8x2x32xf32, #tpu.memory_space<vmem>>, vector<1x1x2x32xf32>,
    %c0_102 = arith.constant 0 : index
    %c6 = arith.constant 6 : index
    %c0_103 = arith.constant 0 : index
    %c0_104 = arith.constant 0 : index
    %275 = vector.load %arg1[%c0_102, %c6, %c0_103, %c0_104] : memref<1x8x2x96xf32, #tpu.memory_space<vmem>>, vector<1x1x2x96xf32>
    %276 = vector.shape_cast %275 : vector<1x1x2x96xf32> to vector<2x96xf32>
    %c0_105 = arith.constant 0 : index
    %c6_106 = arith.constant 6 : index
    %c0_107 = arith.constant 0 : index
    %c0_108 = arith.constant 0 : index
    %277 = vector.load %arg2[%c0_105, %c6_106, %c0_107, %c0_108] : memref<1x8x2x1xf32, #tpu.memory_space<vmem>>, vector<1x1x2x1xf32>
    %278 = vector.shape_cast %277 : vector<1x1x2x1xf32> to vector<2x1xf32>
    %cst_109 = arith.constant dense<0.000000e+00> : vector<2x96xf32>
    %279 = tpu.matmul %269, %1, %cst_109 {dimension_numbers = #tpu.dot_dimension_numbers<[1], [0], [0], [1], [0, 0, 1, 1], [], []>} : vector<2x32xf32>, vector<32x96xf32>, vector<2x96xf32> -> vector<2x96xf32>
    %280 = vector.broadcast %3 : vector<1x96xf32> to vector<2x96xf32>
    %281 = arith.addf %279, %280 : vector<2x96xf32>
    %282 = vector.extract_strided_slice %276 {offsets = [0, 0], sizes = [2, 32], strides = [1, 1]} : vector<2x96xf32> to vector<2x32xf32>
    %283 = vector.extract_strided_slice %281 {offsets = [0, 0], sizes = [2, 32], strides = [1, 1]} : vector<2x96xf32> to vector<2x32xf32>
    %284 = arith.addf %282, %283 : vector<2x32xf32>
    %285 = arith.negf %284 : vector<2x32xf32>
    %286 = math.exp %285 : vector<2x32xf32>
    %cst_110 = arith.constant 1.000000e+00 : f32
    %287 = vector.broadcast %cst_110 : f32 to vector<2x32xf32>
    %288 = arith.addf %287, %286 : vector<2x32xf32>
    %289 = arith.divf %287, %288 : vector<2x32xf32>
    %290 = vector.extract_strided_slice %276 {offsets = [0, 32], sizes = [2, 32], strides = [1, 1]} : vector<2x96xf32> to vector<2x32xf32>
    %291 = vector.extract_strided_slice %281 {offsets = [0, 32], sizes = [2, 32], strides = [1, 1]} : vector<2x96xf32> to vector<2x32xf32>
    %292 = arith.addf %290, %291 : vector<2x32xf32>
    %293 = arith.negf %292 : vector<2x32xf32>
    %294 = math.exp %293 : vector<2x32xf32>
    %cst_111 = arith.constant 1.000000e+00 : f32
    %295 = vector.broadcast %cst_111 : f32 to vector<2x32xf32>
    %296 = arith.addf %295, %294 : vector<2x32xf32>
    %297 = arith.divf %295, %296 : vector<2x32xf32>
    %298 = vector.extract_strided_slice %276 {offsets = [0, 64], sizes = [2, 32], strides = [1, 1]} : vector<2x96xf32> to vector<2x32xf32>
    %299 = vector.extract_strided_slice %281 {offsets = [0, 64], sizes = [2, 32], strides = [1, 1]} : vector<2x96xf32> to vector<2x32xf32>
    %300 = arith.mulf %289, %299 : vector<2x32xf32>
    %301 = arith.addf %298, %300 : vector<2x32xf32>
    %302 = math.tanh %301 : vector<2x32xf32>
    %cst_112 = arith.constant 1.000000e+00 : f32
    %303 = vector.broadcast %cst_112 : f32 to vector<2x32xf32>
    %304 = arith.subf %303, %297 : vector<2x32xf32>
    %305 = arith.mulf %304, %302 : vector<2x32xf32>
    %306 = arith.mulf %297, %269 : vector<2x32xf32>
    %307 = arith.addf %305, %306 : vector<2x32xf32>
    %308 = vector.broadcast %278 : vector<2x1xf32> to vector<2x32xf32>
    %309 = arith.mulf %308, %307 : vector<2x32xf32>
    %cst_113 = arith.constant 1.000000e+00 : f32
    %310 = vector.broadcast %cst_113 : f32 to vector<2x1xf32>
    %311 = arith.subf %310, %278 : vector<2x1xf32>
    %312 = vector.broadcast %311 : vector<2x1xf32> to vector<2x32xf32>
    %313 = arith.mulf %312, %269 : vector<2x32xf32>
    %314 = arith.addf %309, %313 : vector<2x32xf32>
    %315 = vector.broadcast %278 : vector<2x1xf32> to vector<2x32xf32>
    %316 = arith.mulf %315, %314 : vector<2x32xf32>
    %c0_114 = arith.constant 0 : index
    %c6_115 = arith.constant 6 : index
    %c0_116 = arith.constant 0 : index
    %c0_117 = arith.constant 0 : index
    %317 = vector.load %arg5[%c0_114, %c6_115, %c0_116, %c0_117] : memref<1x8x2x32xf32, #tpu.memory_space<vmem>>, vector<1x1x2x32xf32>
    %318 = vector.shape_cast %317 : vector<1x1x2x32xf32> to vector<2x32xf32>
    %319 = vector.shape_cast %316 : vector<2x32xf32> to vector<1x1x2x32xf32>
    tpu.vector_store %arg5[%c0_114, %c6_115, %c0_116, %c0_117], %319 {strides = array<i32>} : memref<1x8x2x32xf32, #tpu.memory_space<vmem>>, vector<1x1x2x32xf32>,
    %c0_118 = arith.constant 0 : index
    %c7 = arith.constant 7 : index
    %c0_119 = arith.constant 0 : index
    %c0_120 = arith.constant 0 : index
    %320 = vector.load %arg1[%c0_118, %c7, %c0_119, %c0_120] : memref<1x8x2x96xf32, #tpu.memory_space<vmem>>, vector<1x1x2x96xf32>
    %321 = vector.shape_cast %320 : vector<1x1x2x96xf32> to vector<2x96xf32>
    %c0_121 = arith.constant 0 : index
    %c7_122 = arith.constant 7 : index
    %c0_123 = arith.constant 0 : index
    %c0_124 = arith.constant 0 : index
    %322 = vector.load %arg2[%c0_121, %c7_122, %c0_123, %c0_124] : memref<1x8x2x1xf32, #tpu.memory_space<vmem>>, vector<1x1x2x1xf32>
    %323 = vector.shape_cast %322 : vector<1x1x2x1xf32> to vector<2x1xf32>
    %cst_125 = arith.constant dense<0.000000e+00> : vector<2x96xf32>
    %324 = tpu.matmul %314, %1, %cst_125 {dimension_numbers = #tpu.dot_dimension_numbers<[1], [0], [0], [1], [0, 0, 1, 1], [], []>} : vector<2x32xf32>, vector<32x96xf32>, vector<2x96xf32> -> vector<2x96xf32>
    %325 = vector.broadcast %3 : vector<1x96xf32> to vector<2x96xf32>
    %326 = arith.addf %324, %325 : vector<2x96xf32>
    %327 = vector.extract_strided_slice %321 {offsets = [0, 0], sizes = [2, 32], strides = [1, 1]} : vector<2x96xf32> to vector<2x32xf32>
    %328 = vector.extract_strided_slice %326 {offsets = [0, 0], sizes = [2, 32], strides = [1, 1]} : vector<2x96xf32> to vector<2x32xf32>
    %329 = arith.addf %327, %328 : vector<2x32xf32>
    %330 = arith.negf %329 : vector<2x32xf32>
    %331 = math.exp %330 : vector<2x32xf32>
    %cst_126 = arith.constant 1.000000e+00 : f32
    %332 = vector.broadcast %cst_126 : f32 to vector<2x32xf32>
    %333 = arith.addf %332, %331 : vector<2x32xf32>
    %334 = arith.divf %332, %333 : vector<2x32xf32>
    %335 = vector.extract_strided_slice %321 {offsets = [0, 32], sizes = [2, 32], strides = [1, 1]} : vector<2x96xf32> to vector<2x32xf32>
    %336 = vector.extract_strided_slice %326 {offsets = [0, 32], sizes = [2, 32], strides = [1, 1]} : vector<2x96xf32> to vector<2x32xf32>
    %337 = arith.addf %335, %336 : vector<2x32xf32>
    %338 = arith.negf %337 : vector<2x32xf32>
    %339 = math.exp %338 : vector<2x32xf32>
    %cst_127 = arith.constant 1.000000e+00 : f32
    %340 = vector.broadcast %cst_127 : f32 to vector<2x32xf32>
    %341 = arith.addf %340, %339 : vector<2x32xf32>
    %342 = arith.divf %340, %341 : vector<2x32xf32>
    %343 = vector.extract_strided_slice %321 {offsets = [0, 64], sizes = [2, 32], strides = [1, 1]} : vector<2x96xf32> to vector<2x32xf32>
    %344 = vector.extract_strided_slice %326 {offsets = [0, 64], sizes = [2, 32], strides = [1, 1]} : vector<2x96xf32> to vector<2x32xf32>
    %345 = arith.mulf %334, %344 : vector<2x32xf32>
    %346 = arith.addf %343, %345 : vector<2x32xf32>
    %347 = math.tanh %346 : vector<2x32xf32>
    %cst_128 = arith.constant 1.000000e+00 : f32
    %348 = vector.broadcast %cst_128 : f32 to vector<2x32xf32>
    %349 = arith.subf %348, %342 : vector<2x32xf32>
    %350 = arith.mulf %349, %347 : vector<2x32xf32>
    %351 = arith.mulf %342, %314 : vector<2x32xf32>
    %352 = arith.addf %350, %351 : vector<2x32xf32>
    %353 = vector.broadcast %323 : vector<2x1xf32> to vector<2x32xf32>
    %354 = arith.mulf %353, %352 : vector<2x32xf32>
    %cst_129 = arith.constant 1.000000e+00 : f32
    %355 = vector.broadcast %cst_129 : f32 to vector<2x1xf32>
    %356 = arith.subf %355, %323 : vector<2x1xf32>
    %357 = vector.broadcast %356 : vector<2x1xf32> to vector<2x32xf32>
    %358 = arith.mulf %357, %314 : vector<2x32xf32>
    %359 = arith.addf %354, %358 : vector<2x32xf32>
    %360 = vector.broadcast %323 : vector<2x1xf32> to vector<2x32xf32>
    %361 = arith.mulf %360, %359 : vector<2x32xf32>
    %c0_130 = arith.constant 0 : index
    %c7_131 = arith.constant 7 : index
    %c0_132 = arith.constant 0 : index
    %c0_133 = arith.constant 0 : index
    %362 = vector.load %arg5[%c0_130, %c7_131, %c0_132, %c0_133] : memref<1x8x2x32xf32, #tpu.memory_space<vmem>>, vector<1x1x2x32xf32>
    %363 = vector.shape_cast %362 : vector<1x1x2x32xf32> to vector<2x32xf32>
    %364 = vector.shape_cast %361 : vector<2x32xf32> to vector<1x1x2x32xf32>
    tpu.vector_store %arg5[%c0_130, %c7_131, %c0_132, %c0_133], %364 {strides = array<i32>} : memref<1x8x2x32xf32, #tpu.memory_space<vmem>>, vector<1x1x2x32xf32>,
    return
  }
  func.func @transform_0(%arg0: i32) -> (i32, i32, i32, i32) {
    %c0_i32 = arith.constant 0 : i32
    %c0_i32_0 = arith.constant 0 : i32
    %c0_i32_1 = arith.constant 0 : i32
    %c0_i32_2 = arith.constant 0 : i32
    return %arg0, %c0_i32, %c0_i32_0, %c0_i32_1 : i32, i32, i32, i32
  }
  func.func @transform_1(%arg0: i32) -> (i32, i32, i32, i32) {
    %c0_i32 = arith.constant 0 : i32
    %c0_i32_0 = arith.constant 0 : i32
    %c0_i32_1 = arith.constant 0 : i32
    %c0_i32_2 = arith.constant 0 : i32
    return %arg0, %c0_i32, %c0_i32_0, %c0_i32_1 : i32, i32, i32, i32
  }
  func.func @transform_2(%arg0: i32) -> (i32, i32, i32) {
    %c0_i32 = arith.constant 0 : i32
    %c0_i32_0 = arith.constant 0 : i32
    %c0_i32_1 = arith.constant 0 : i32
    return %arg0, %c0_i32, %c0_i32_0 : i32, i32, i32
  }
  func.func @transform_3(%arg0: i32) -> (i32, i32, i32) {
    %c0_i32 = arith.constant 0 : i32
    %c0_i32_0 = arith.constant 0 : i32
    %c0_i32_1 = arith.constant 0 : i32
    return %arg0, %c0_i32, %c0_i32_0 : i32, i32, i32
  }
  func.func @transform_4(%arg0: i32) -> (i32, i32, i32, i32) {
    %c0_i32 = arith.constant 0 : i32
    %c0_i32_0 = arith.constant 0 : i32
    %c0_i32_1 = arith.constant 0 : i32
    %c0_i32_2 = arith.constant 0 : i32
    return %arg0, %c0_i32, %c0_i32_0, %c0_i32_1 : i32, i32, i32, i32
  }
}

module attributes {stable_mosaic.version = 11 : i64} {
  func.func @_dec_layer_kernel(%arg0: memref<6x2x96xf32, #tpu.memory_space<vmem>>, %arg1: memref<2x8x64xf32, #tpu.memory_space<vmem>>, %arg2: memref<2x8x32xf32, #tpu.memory_space<vmem>>, %arg3: memref<32x32xf32, #tpu.memory_space<vmem>>, %arg4: memref<1x32xf32, #tpu.memory_space<vmem>>, %arg5: memref<1x32xf32, #tpu.memory_space<vmem>>, %arg6: memref<64x96xf32, #tpu.memory_space<vmem>>, %arg7: memref<32x96xf32, #tpu.memory_space<vmem>>, %arg8: memref<1x96xf32, #tpu.memory_space<vmem>>, %arg9: memref<2x32xf32, #tpu.memory_space<vmem>>, %arg10: memref<6x2x32xf32, #tpu.memory_space<vmem>>) attributes {dimension_semantics = [], scalar_prefetch = 0 : i64, scratch_operands = 0 : i64, tpu.core_type = #tpu.core_type<tc>} {
    %c0 = arith.constant 0 : index
    %c0_0 = arith.constant 0 : index
    %c0_1 = arith.constant 0 : index
    %0 = vector.load %arg1[%c0, %c0_0, %c0_1] : memref<2x8x64xf32, #tpu.memory_space<vmem>>, vector<2x8x64xf32>
    %c0_2 = arith.constant 0 : index
    %c0_3 = arith.constant 0 : index
    %c0_4 = arith.constant 0 : index
    %1 = vector.load %arg2[%c0_2, %c0_3, %c0_4] : memref<2x8x32xf32, #tpu.memory_space<vmem>>, vector<2x8x32xf32>
    %c0_5 = arith.constant 0 : index
    %c0_6 = arith.constant 0 : index
    %2 = vector.load %arg3[%c0_5, %c0_6] : memref<32x32xf32, #tpu.memory_space<vmem>>, vector<32x32xf32>
    %c0_7 = arith.constant 0 : index
    %c0_8 = arith.constant 0 : index
    %3 = vector.load %arg4[%c0_7, %c0_8] : memref<1x32xf32, #tpu.memory_space<vmem>>, vector<1x32xf32>
    %c0_9 = arith.constant 0 : index
    %c0_10 = arith.constant 0 : index
    %4 = vector.load %arg5[%c0_9, %c0_10] : memref<1x32xf32, #tpu.memory_space<vmem>>, vector<1x32xf32>
    %c0_11 = arith.constant 0 : index
    %c0_12 = arith.constant 0 : index
    %5 = vector.load %arg6[%c0_11, %c0_12] : memref<64x96xf32, #tpu.memory_space<vmem>>, vector<64x96xf32>
    %c0_13 = arith.constant 0 : index
    %c0_14 = arith.constant 0 : index
    %6 = vector.load %arg7[%c0_13, %c0_14] : memref<32x96xf32, #tpu.memory_space<vmem>>, vector<32x96xf32>
    %c0_15 = arith.constant 0 : index
    %c0_16 = arith.constant 0 : index
    %7 = vector.load %arg8[%c0_15, %c0_16] : memref<1x96xf32, #tpu.memory_space<vmem>>, vector<1x96xf32>
    %c0_17 = arith.constant 0 : index
    %c0_18 = arith.constant 0 : index
    %8 = vector.load %arg9[%c0_17, %c0_18] : memref<2x32xf32, #tpu.memory_space<vmem>>, vector<2x32xf32>
    %cst = arith.constant dense<0.000000e+00> : vector<2x32xf32>
    %9 = tpu.matmul %8, %2, %cst {dimension_numbers = #tpu.dot_dimension_numbers<[1], [0], [0], [1], [0, 0, 1, 1], [], []>} : vector<2x32xf32>, vector<32x32xf32>, vector<2x32xf32> -> vector<2x32xf32>
    %10 = vector.broadcast %3 : vector<1x32xf32> to vector<2x32xf32>
    %11 = arith.addf %9, %10 : vector<2x32xf32>
    %12 = vector.shape_cast %11 : vector<2x32xf32> to vector<2x1x32xf32>
    %13 = vector.broadcast %12 : vector<2x1x32xf32> to vector<2x8x32xf32>
    %14 = arith.addf %13, %1 : vector<2x8x32xf32>
    %15 = math.tanh %14 : vector<2x8x32xf32>
    %16 = vector.shape_cast %4 : vector<1x32xf32> to vector<1x1x32xf32>
    %17 = vector.broadcast %16 : vector<1x1x32xf32> to vector<2x8x32xf32>
    %18 = arith.mulf %15, %17 : vector<2x8x32xf32>
    %cst_19 = arith.constant dense<0.000000e+00> : vector<2x8xf32>
    %19 = vector.multi_reduction <add>, %18, %cst_19 [2] : vector<2x8x32xf32> to vector<2x8xf32>
    %cst_20 = arith.constant dense<0xFF800000> : vector<2xf32>
    %20 = vector.multi_reduction <maximumf>, %19, %cst_20 [1] : vector<2x8xf32> to vector<2xf32>
    %21 = vector.shape_cast %20 : vector<2xf32> to vector<2x1xf32>
    %22 = vector.broadcast %21 : vector<2x1xf32> to vector<2x8xf32>
    %23 = arith.subf %19, %22 : vector<2x8xf32>
    %24 = math.exp %23 : vector<2x8xf32>
    %cst_21 = arith.constant dense<0.000000e+00> : vector<2xf32>
    %25 = vector.multi_reduction <add>, %24, %cst_21 [1] : vector<2x8xf32> to vector<2xf32>
    %26 = vector.shape_cast %25 : vector<2xf32> to vector<2x1xf32>
    %27 = tpu.reciprocal %26 {approx = true} : vector<2x1xf32> -> vector<2x1xf32>
    %28 = vector.broadcast %27 : vector<2x1xf32> to vector<2x8xf32>
    %29 = arith.mulf %24, %28 : vector<2x8xf32>
    %30 = vector.shape_cast %29 : vector<2x8xf32> to vector<2x8x1xf32>
    %31 = vector.broadcast %30 : vector<2x8x1xf32> to vector<2x8x64xf32>
    %32 = arith.mulf %31, %0 : vector<2x8x64xf32>
    %cst_22 = arith.constant dense<0.000000e+00> : vector<2x64xf32>
    %33 = vector.multi_reduction <add>, %32, %cst_22 [1] : vector<2x8x64xf32> to vector<2x64xf32>
    %c0_23 = arith.constant 0 : index
    %c0_24 = arith.constant 0 : index
    %c0_25 = arith.constant 0 : index
    %34 = vector.load %arg0[%c0_23, %c0_24, %c0_25] : memref<6x2x96xf32, #tpu.memory_space<vmem>>, vector<1x2x96xf32>
    %35 = vector.shape_cast %34 : vector<1x2x96xf32> to vector<2x96xf32>
    %cst_26 = arith.constant dense<0.000000e+00> : vector<2x96xf32>
    %36 = tpu.matmul %33, %5, %cst_26 {dimension_numbers = #tpu.dot_dimension_numbers<[1], [0], [0], [1], [0, 0, 1, 1], [], []>} : vector<2x64xf32>, vector<64x96xf32>, vector<2x96xf32> -> vector<2x96xf32>
    %37 = arith.addf %35, %36 : vector<2x96xf32>
    %cst_27 = arith.constant dense<0.000000e+00> : vector<2x96xf32>
    %38 = tpu.matmul %8, %6, %cst_27 {dimension_numbers = #tpu.dot_dimension_numbers<[1], [0], [0], [1], [0, 0, 1, 1], [], []>} : vector<2x32xf32>, vector<32x96xf32>, vector<2x96xf32> -> vector<2x96xf32>
    %39 = vector.broadcast %7 : vector<1x96xf32> to vector<2x96xf32>
    %40 = arith.addf %38, %39 : vector<2x96xf32>
    %41 = vector.extract_strided_slice %37 {offsets = [0, 0], sizes = [2, 32], strides = [1, 1]} : vector<2x96xf32> to vector<2x32xf32>
    %42 = vector.extract_strided_slice %40 {offsets = [0, 0], sizes = [2, 32], strides = [1, 1]} : vector<2x96xf32> to vector<2x32xf32>
    %43 = arith.addf %41, %42 : vector<2x32xf32>
    %44 = arith.negf %43 : vector<2x32xf32>
    %45 = math.exp %44 : vector<2x32xf32>
    %cst_28 = arith.constant 1.000000e+00 : f32
    %46 = vector.broadcast %cst_28 : f32 to vector<2x32xf32>
    %47 = arith.addf %46, %45 : vector<2x32xf32>
    %48 = arith.divf %46, %47 : vector<2x32xf32>
    %49 = vector.extract_strided_slice %37 {offsets = [0, 32], sizes = [2, 32], strides = [1, 1]} : vector<2x96xf32> to vector<2x32xf32>
    %50 = vector.extract_strided_slice %40 {offsets = [0, 32], sizes = [2, 32], strides = [1, 1]} : vector<2x96xf32> to vector<2x32xf32>
    %51 = arith.addf %49, %50 : vector<2x32xf32>
    %52 = arith.negf %51 : vector<2x32xf32>
    %53 = math.exp %52 : vector<2x32xf32>
    %cst_29 = arith.constant 1.000000e+00 : f32
    %54 = vector.broadcast %cst_29 : f32 to vector<2x32xf32>
    %55 = arith.addf %54, %53 : vector<2x32xf32>
    %56 = arith.divf %54, %55 : vector<2x32xf32>
    %57 = vector.extract_strided_slice %37 {offsets = [0, 64], sizes = [2, 32], strides = [1, 1]} : vector<2x96xf32> to vector<2x32xf32>
    %58 = vector.extract_strided_slice %40 {offsets = [0, 64], sizes = [2, 32], strides = [1, 1]} : vector<2x96xf32> to vector<2x32xf32>
    %59 = arith.mulf %48, %58 : vector<2x32xf32>
    %60 = arith.addf %57, %59 : vector<2x32xf32>
    %61 = math.tanh %60 : vector<2x32xf32>
    %cst_30 = arith.constant 1.000000e+00 : f32
    %62 = vector.broadcast %cst_30 : f32 to vector<2x32xf32>
    %63 = arith.subf %62, %56 : vector<2x32xf32>
    %64 = arith.mulf %63, %61 : vector<2x32xf32>
    %65 = arith.mulf %56, %8 : vector<2x32xf32>
    %66 = arith.addf %64, %65 : vector<2x32xf32>
    %c0_31 = arith.constant 0 : index
    %c0_32 = arith.constant 0 : index
    %c0_33 = arith.constant 0 : index
    %67 = vector.load %arg10[%c0_31, %c0_32, %c0_33] : memref<6x2x32xf32, #tpu.memory_space<vmem>>, vector<1x2x32xf32>
    %68 = vector.shape_cast %67 : vector<1x2x32xf32> to vector<2x32xf32>
    %69 = vector.shape_cast %66 : vector<2x32xf32> to vector<1x2x32xf32>
    tpu.vector_store %arg10[%c0_31, %c0_32, %c0_33], %69 {strides = array<i32>} : memref<6x2x32xf32, #tpu.memory_space<vmem>>, vector<1x2x32xf32>,
    %cst_34 = arith.constant dense<0.000000e+00> : vector<2x32xf32>
    %70 = tpu.matmul %66, %2, %cst_34 {dimension_numbers = #tpu.dot_dimension_numbers<[1], [0], [0], [1], [0, 0, 1, 1], [], []>} : vector<2x32xf32>, vector<32x32xf32>, vector<2x32xf32> -> vector<2x32xf32>
    %71 = vector.broadcast %3 : vector<1x32xf32> to vector<2x32xf32>
    %72 = arith.addf %70, %71 : vector<2x32xf32>
    %73 = vector.shape_cast %72 : vector<2x32xf32> to vector<2x1x32xf32>
    %74 = vector.broadcast %73 : vector<2x1x32xf32> to vector<2x8x32xf32>
    %75 = arith.addf %74, %1 : vector<2x8x32xf32>
    %76 = math.tanh %75 : vector<2x8x32xf32>
    %77 = vector.shape_cast %4 : vector<1x32xf32> to vector<1x1x32xf32>
    %78 = vector.broadcast %77 : vector<1x1x32xf32> to vector<2x8x32xf32>
    %79 = arith.mulf %76, %78 : vector<2x8x32xf32>
    %cst_35 = arith.constant dense<0.000000e+00> : vector<2x8xf32>
    %80 = vector.multi_reduction <add>, %79, %cst_35 [2] : vector<2x8x32xf32> to vector<2x8xf32>
    %cst_36 = arith.constant dense<0xFF800000> : vector<2xf32>
    %81 = vector.multi_reduction <maximumf>, %80, %cst_36 [1] : vector<2x8xf32> to vector<2xf32>
    %82 = vector.shape_cast %81 : vector<2xf32> to vector<2x1xf32>
    %83 = vector.broadcast %82 : vector<2x1xf32> to vector<2x8xf32>
    %84 = arith.subf %80, %83 : vector<2x8xf32>
    %85 = math.exp %84 : vector<2x8xf32>
    %cst_37 = arith.constant dense<0.000000e+00> : vector<2xf32>
    %86 = vector.multi_reduction <add>, %85, %cst_37 [1] : vector<2x8xf32> to vector<2xf32>
    %87 = vector.shape_cast %86 : vector<2xf32> to vector<2x1xf32>
    %88 = tpu.reciprocal %87 {approx = true} : vector<2x1xf32> -> vector<2x1xf32>
    %89 = vector.broadcast %88 : vector<2x1xf32> to vector<2x8xf32>
    %90 = arith.mulf %85, %89 : vector<2x8xf32>
    %91 = vector.shape_cast %90 : vector<2x8xf32> to vector<2x8x1xf32>
    %92 = vector.broadcast %91 : vector<2x8x1xf32> to vector<2x8x64xf32>
    %93 = arith.mulf %92, %0 : vector<2x8x64xf32>
    %cst_38 = arith.constant dense<0.000000e+00> : vector<2x64xf32>
    %94 = vector.multi_reduction <add>, %93, %cst_38 [1] : vector<2x8x64xf32> to vector<2x64xf32>
    %c1 = arith.constant 1 : index
    %c0_39 = arith.constant 0 : index
    %c0_40 = arith.constant 0 : index
    %95 = vector.load %arg0[%c1, %c0_39, %c0_40] : memref<6x2x96xf32, #tpu.memory_space<vmem>>, vector<1x2x96xf32>
    %96 = vector.shape_cast %95 : vector<1x2x96xf32> to vector<2x96xf32>
    %cst_41 = arith.constant dense<0.000000e+00> : vector<2x96xf32>
    %97 = tpu.matmul %94, %5, %cst_41 {dimension_numbers = #tpu.dot_dimension_numbers<[1], [0], [0], [1], [0, 0, 1, 1], [], []>} : vector<2x64xf32>, vector<64x96xf32>, vector<2x96xf32> -> vector<2x96xf32>
    %98 = arith.addf %96, %97 : vector<2x96xf32>
    %cst_42 = arith.constant dense<0.000000e+00> : vector<2x96xf32>
    %99 = tpu.matmul %66, %6, %cst_42 {dimension_numbers = #tpu.dot_dimension_numbers<[1], [0], [0], [1], [0, 0, 1, 1], [], []>} : vector<2x32xf32>, vector<32x96xf32>, vector<2x96xf32> -> vector<2x96xf32>
    %100 = vector.broadcast %7 : vector<1x96xf32> to vector<2x96xf32>
    %101 = arith.addf %99, %100 : vector<2x96xf32>
    %102 = vector.extract_strided_slice %98 {offsets = [0, 0], sizes = [2, 32], strides = [1, 1]} : vector<2x96xf32> to vector<2x32xf32>
    %103 = vector.extract_strided_slice %101 {offsets = [0, 0], sizes = [2, 32], strides = [1, 1]} : vector<2x96xf32> to vector<2x32xf32>
    %104 = arith.addf %102, %103 : vector<2x32xf32>
    %105 = arith.negf %104 : vector<2x32xf32>
    %106 = math.exp %105 : vector<2x32xf32>
    %cst_43 = arith.constant 1.000000e+00 : f32
    %107 = vector.broadcast %cst_43 : f32 to vector<2x32xf32>
    %108 = arith.addf %107, %106 : vector<2x32xf32>
    %109 = arith.divf %107, %108 : vector<2x32xf32>
    %110 = vector.extract_strided_slice %98 {offsets = [0, 32], sizes = [2, 32], strides = [1, 1]} : vector<2x96xf32> to vector<2x32xf32>
    %111 = vector.extract_strided_slice %101 {offsets = [0, 32], sizes = [2, 32], strides = [1, 1]} : vector<2x96xf32> to vector<2x32xf32>
    %112 = arith.addf %110, %111 : vector<2x32xf32>
    %113 = arith.negf %112 : vector<2x32xf32>
    %114 = math.exp %113 : vector<2x32xf32>
    %cst_44 = arith.constant 1.000000e+00 : f32
    %115 = vector.broadcast %cst_44 : f32 to vector<2x32xf32>
    %116 = arith.addf %115, %114 : vector<2x32xf32>
    %117 = arith.divf %115, %116 : vector<2x32xf32>
    %118 = vector.extract_strided_slice %98 {offsets = [0, 64], sizes = [2, 32], strides = [1, 1]} : vector<2x96xf32> to vector<2x32xf32>
    %119 = vector.extract_strided_slice %101 {offsets = [0, 64], sizes = [2, 32], strides = [1, 1]} : vector<2x96xf32> to vector<2x32xf32>
    %120 = arith.mulf %109, %119 : vector<2x32xf32>
    %121 = arith.addf %118, %120 : vector<2x32xf32>
    %122 = math.tanh %121 : vector<2x32xf32>
    %cst_45 = arith.constant 1.000000e+00 : f32
    %123 = vector.broadcast %cst_45 : f32 to vector<2x32xf32>
    %124 = arith.subf %123, %117 : vector<2x32xf32>
    %125 = arith.mulf %124, %122 : vector<2x32xf32>
    %126 = arith.mulf %117, %66 : vector<2x32xf32>
    %127 = arith.addf %125, %126 : vector<2x32xf32>
    %c1_46 = arith.constant 1 : index
    %c0_47 = arith.constant 0 : index
    %c0_48 = arith.constant 0 : index
    %128 = vector.load %arg10[%c1_46, %c0_47, %c0_48] : memref<6x2x32xf32, #tpu.memory_space<vmem>>, vector<1x2x32xf32>
    %129 = vector.shape_cast %128 : vector<1x2x32xf32> to vector<2x32xf32>
    %130 = vector.shape_cast %127 : vector<2x32xf32> to vector<1x2x32xf32>
    tpu.vector_store %arg10[%c1_46, %c0_47, %c0_48], %130 {strides = array<i32>} : memref<6x2x32xf32, #tpu.memory_space<vmem>>, vector<1x2x32xf32>,
    %cst_49 = arith.constant dense<0.000000e+00> : vector<2x32xf32>
    %131 = tpu.matmul %127, %2, %cst_49 {dimension_numbers = #tpu.dot_dimension_numbers<[1], [0], [0], [1], [0, 0, 1, 1], [], []>} : vector<2x32xf32>, vector<32x32xf32>, vector<2x32xf32> -> vector<2x32xf32>
    %132 = vector.broadcast %3 : vector<1x32xf32> to vector<2x32xf32>
    %133 = arith.addf %131, %132 : vector<2x32xf32>
    %134 = vector.shape_cast %133 : vector<2x32xf32> to vector<2x1x32xf32>
    %135 = vector.broadcast %134 : vector<2x1x32xf32> to vector<2x8x32xf32>
    %136 = arith.addf %135, %1 : vector<2x8x32xf32>
    %137 = math.tanh %136 : vector<2x8x32xf32>
    %138 = vector.shape_cast %4 : vector<1x32xf32> to vector<1x1x32xf32>
    %139 = vector.broadcast %138 : vector<1x1x32xf32> to vector<2x8x32xf32>
    %140 = arith.mulf %137, %139 : vector<2x8x32xf32>
    %cst_50 = arith.constant dense<0.000000e+00> : vector<2x8xf32>
    %141 = vector.multi_reduction <add>, %140, %cst_50 [2] : vector<2x8x32xf32> to vector<2x8xf32>
    %cst_51 = arith.constant dense<0xFF800000> : vector<2xf32>
    %142 = vector.multi_reduction <maximumf>, %141, %cst_51 [1] : vector<2x8xf32> to vector<2xf32>
    %143 = vector.shape_cast %142 : vector<2xf32> to vector<2x1xf32>
    %144 = vector.broadcast %143 : vector<2x1xf32> to vector<2x8xf32>
    %145 = arith.subf %141, %144 : vector<2x8xf32>
    %146 = math.exp %145 : vector<2x8xf32>
    %cst_52 = arith.constant dense<0.000000e+00> : vector<2xf32>
    %147 = vector.multi_reduction <add>, %146, %cst_52 [1] : vector<2x8xf32> to vector<2xf32>
    %148 = vector.shape_cast %147 : vector<2xf32> to vector<2x1xf32>
    %149 = tpu.reciprocal %148 {approx = true} : vector<2x1xf32> -> vector<2x1xf32>
    %150 = vector.broadcast %149 : vector<2x1xf32> to vector<2x8xf32>
    %151 = arith.mulf %146, %150 : vector<2x8xf32>
    %152 = vector.shape_cast %151 : vector<2x8xf32> to vector<2x8x1xf32>
    %153 = vector.broadcast %152 : vector<2x8x1xf32> to vector<2x8x64xf32>
    %154 = arith.mulf %153, %0 : vector<2x8x64xf32>
    %cst_53 = arith.constant dense<0.000000e+00> : vector<2x64xf32>
    %155 = vector.multi_reduction <add>, %154, %cst_53 [1] : vector<2x8x64xf32> to vector<2x64xf32>
    %c2 = arith.constant 2 : index
    %c0_54 = arith.constant 0 : index
    %c0_55 = arith.constant 0 : index
    %156 = vector.load %arg0[%c2, %c0_54, %c0_55] : memref<6x2x96xf32, #tpu.memory_space<vmem>>, vector<1x2x96xf32>
    %157 = vector.shape_cast %156 : vector<1x2x96xf32> to vector<2x96xf32>
    %cst_56 = arith.constant dense<0.000000e+00> : vector<2x96xf32>
    %158 = tpu.matmul %155, %5, %cst_56 {dimension_numbers = #tpu.dot_dimension_numbers<[1], [0], [0], [1], [0, 0, 1, 1], [], []>} : vector<2x64xf32>, vector<64x96xf32>, vector<2x96xf32> -> vector<2x96xf32>
    %159 = arith.addf %157, %158 : vector<2x96xf32>
    %cst_57 = arith.constant dense<0.000000e+00> : vector<2x96xf32>
    %160 = tpu.matmul %127, %6, %cst_57 {dimension_numbers = #tpu.dot_dimension_numbers<[1], [0], [0], [1], [0, 0, 1, 1], [], []>} : vector<2x32xf32>, vector<32x96xf32>, vector<2x96xf32> -> vector<2x96xf32>
    %161 = vector.broadcast %7 : vector<1x96xf32> to vector<2x96xf32>
    %162 = arith.addf %160, %161 : vector<2x96xf32>
    %163 = vector.extract_strided_slice %159 {offsets = [0, 0], sizes = [2, 32], strides = [1, 1]} : vector<2x96xf32> to vector<2x32xf32>
    %164 = vector.extract_strided_slice %162 {offsets = [0, 0], sizes = [2, 32], strides = [1, 1]} : vector<2x96xf32> to vector<2x32xf32>
    %165 = arith.addf %163, %164 : vector<2x32xf32>
    %166 = arith.negf %165 : vector<2x32xf32>
    %167 = math.exp %166 : vector<2x32xf32>
    %cst_58 = arith.constant 1.000000e+00 : f32
    %168 = vector.broadcast %cst_58 : f32 to vector<2x32xf32>
    %169 = arith.addf %168, %167 : vector<2x32xf32>
    %170 = arith.divf %168, %169 : vector<2x32xf32>
    %171 = vector.extract_strided_slice %159 {offsets = [0, 32], sizes = [2, 32], strides = [1, 1]} : vector<2x96xf32> to vector<2x32xf32>
    %172 = vector.extract_strided_slice %162 {offsets = [0, 32], sizes = [2, 32], strides = [1, 1]} : vector<2x96xf32> to vector<2x32xf32>
    %173 = arith.addf %171, %172 : vector<2x32xf32>
    %174 = arith.negf %173 : vector<2x32xf32>
    %175 = math.exp %174 : vector<2x32xf32>
    %cst_59 = arith.constant 1.000000e+00 : f32
    %176 = vector.broadcast %cst_59 : f32 to vector<2x32xf32>
    %177 = arith.addf %176, %175 : vector<2x32xf32>
    %178 = arith.divf %176, %177 : vector<2x32xf32>
    %179 = vector.extract_strided_slice %159 {offsets = [0, 64], sizes = [2, 32], strides = [1, 1]} : vector<2x96xf32> to vector<2x32xf32>
    %180 = vector.extract_strided_slice %162 {offsets = [0, 64], sizes = [2, 32], strides = [1, 1]} : vector<2x96xf32> to vector<2x32xf32>
    %181 = arith.mulf %170, %180 : vector<2x32xf32>
    %182 = arith.addf %179, %181 : vector<2x32xf32>
    %183 = math.tanh %182 : vector<2x32xf32>
    %cst_60 = arith.constant 1.000000e+00 : f32
    %184 = vector.broadcast %cst_60 : f32 to vector<2x32xf32>
    %185 = arith.subf %184, %178 : vector<2x32xf32>
    %186 = arith.mulf %185, %183 : vector<2x32xf32>
    %187 = arith.mulf %178, %127 : vector<2x32xf32>
    %188 = arith.addf %186, %187 : vector<2x32xf32>
    %c2_61 = arith.constant 2 : index
    %c0_62 = arith.constant 0 : index
    %c0_63 = arith.constant 0 : index
    %189 = vector.load %arg10[%c2_61, %c0_62, %c0_63] : memref<6x2x32xf32, #tpu.memory_space<vmem>>, vector<1x2x32xf32>
    %190 = vector.shape_cast %189 : vector<1x2x32xf32> to vector<2x32xf32>
    %191 = vector.shape_cast %188 : vector<2x32xf32> to vector<1x2x32xf32>
    tpu.vector_store %arg10[%c2_61, %c0_62, %c0_63], %191 {strides = array<i32>} : memref<6x2x32xf32, #tpu.memory_space<vmem>>, vector<1x2x32xf32>,
    %cst_64 = arith.constant dense<0.000000e+00> : vector<2x32xf32>
    %192 = tpu.matmul %188, %2, %cst_64 {dimension_numbers = #tpu.dot_dimension_numbers<[1], [0], [0], [1], [0, 0, 1, 1], [], []>} : vector<2x32xf32>, vector<32x32xf32>, vector<2x32xf32> -> vector<2x32xf32>
    %193 = vector.broadcast %3 : vector<1x32xf32> to vector<2x32xf32>
    %194 = arith.addf %192, %193 : vector<2x32xf32>
    %195 = vector.shape_cast %194 : vector<2x32xf32> to vector<2x1x32xf32>
    %196 = vector.broadcast %195 : vector<2x1x32xf32> to vector<2x8x32xf32>
    %197 = arith.addf %196, %1 : vector<2x8x32xf32>
    %198 = math.tanh %197 : vector<2x8x32xf32>
    %199 = vector.shape_cast %4 : vector<1x32xf32> to vector<1x1x32xf32>
    %200 = vector.broadcast %199 : vector<1x1x32xf32> to vector<2x8x32xf32>
    %201 = arith.mulf %198, %200 : vector<2x8x32xf32>
    %cst_65 = arith.constant dense<0.000000e+00> : vector<2x8xf32>
    %202 = vector.multi_reduction <add>, %201, %cst_65 [2] : vector<2x8x32xf32> to vector<2x8xf32>
    %cst_66 = arith.constant dense<0xFF800000> : vector<2xf32>
    %203 = vector.multi_reduction <maximumf>, %202, %cst_66 [1] : vector<2x8xf32> to vector<2xf32>
    %204 = vector.shape_cast %203 : vector<2xf32> to vector<2x1xf32>
    %205 = vector.broadcast %204 : vector<2x1xf32> to vector<2x8xf32>
    %206 = arith.subf %202, %205 : vector<2x8xf32>
    %207 = math.exp %206 : vector<2x8xf32>
    %cst_67 = arith.constant dense<0.000000e+00> : vector<2xf32>
    %208 = vector.multi_reduction <add>, %207, %cst_67 [1] : vector<2x8xf32> to vector<2xf32>
    %209 = vector.shape_cast %208 : vector<2xf32> to vector<2x1xf32>
    %210 = tpu.reciprocal %209 {approx = true} : vector<2x1xf32> -> vector<2x1xf32>
    %211 = vector.broadcast %210 : vector<2x1xf32> to vector<2x8xf32>
    %212 = arith.mulf %207, %211 : vector<2x8xf32>
    %213 = vector.shape_cast %212 : vector<2x8xf32> to vector<2x8x1xf32>
    %214 = vector.broadcast %213 : vector<2x8x1xf32> to vector<2x8x64xf32>
    %215 = arith.mulf %214, %0 : vector<2x8x64xf32>
    %cst_68 = arith.constant dense<0.000000e+00> : vector<2x64xf32>
    %216 = vector.multi_reduction <add>, %215, %cst_68 [1] : vector<2x8x64xf32> to vector<2x64xf32>
    %c3 = arith.constant 3 : index
    %c0_69 = arith.constant 0 : index
    %c0_70 = arith.constant 0 : index
    %217 = vector.load %arg0[%c3, %c0_69, %c0_70] : memref<6x2x96xf32, #tpu.memory_space<vmem>>, vector<1x2x96xf32>
    %218 = vector.shape_cast %217 : vector<1x2x96xf32> to vector<2x96xf32>
    %cst_71 = arith.constant dense<0.000000e+00> : vector<2x96xf32>
    %219 = tpu.matmul %216, %5, %cst_71 {dimension_numbers = #tpu.dot_dimension_numbers<[1], [0], [0], [1], [0, 0, 1, 1], [], []>} : vector<2x64xf32>, vector<64x96xf32>, vector<2x96xf32> -> vector<2x96xf32>
    %220 = arith.addf %218, %219 : vector<2x96xf32>
    %cst_72 = arith.constant dense<0.000000e+00> : vector<2x96xf32>
    %221 = tpu.matmul %188, %6, %cst_72 {dimension_numbers = #tpu.dot_dimension_numbers<[1], [0], [0], [1], [0, 0, 1, 1], [], []>} : vector<2x32xf32>, vector<32x96xf32>, vector<2x96xf32> -> vector<2x96xf32>
    %222 = vector.broadcast %7 : vector<1x96xf32> to vector<2x96xf32>
    %223 = arith.addf %221, %222 : vector<2x96xf32>
    %224 = vector.extract_strided_slice %220 {offsets = [0, 0], sizes = [2, 32], strides = [1, 1]} : vector<2x96xf32> to vector<2x32xf32>
    %225 = vector.extract_strided_slice %223 {offsets = [0, 0], sizes = [2, 32], strides = [1, 1]} : vector<2x96xf32> to vector<2x32xf32>
    %226 = arith.addf %224, %225 : vector<2x32xf32>
    %227 = arith.negf %226 : vector<2x32xf32>
    %228 = math.exp %227 : vector<2x32xf32>
    %cst_73 = arith.constant 1.000000e+00 : f32
    %229 = vector.broadcast %cst_73 : f32 to vector<2x32xf32>
    %230 = arith.addf %229, %228 : vector<2x32xf32>
    %231 = arith.divf %229, %230 : vector<2x32xf32>
    %232 = vector.extract_strided_slice %220 {offsets = [0, 32], sizes = [2, 32], strides = [1, 1]} : vector<2x96xf32> to vector<2x32xf32>
    %233 = vector.extract_strided_slice %223 {offsets = [0, 32], sizes = [2, 32], strides = [1, 1]} : vector<2x96xf32> to vector<2x32xf32>
    %234 = arith.addf %232, %233 : vector<2x32xf32>
    %235 = arith.negf %234 : vector<2x32xf32>
    %236 = math.exp %235 : vector<2x32xf32>
    %cst_74 = arith.constant 1.000000e+00 : f32
    %237 = vector.broadcast %cst_74 : f32 to vector<2x32xf32>
    %238 = arith.addf %237, %236 : vector<2x32xf32>
    %239 = arith.divf %237, %238 : vector<2x32xf32>
    %240 = vector.extract_strided_slice %220 {offsets = [0, 64], sizes = [2, 32], strides = [1, 1]} : vector<2x96xf32> to vector<2x32xf32>
    %241 = vector.extract_strided_slice %223 {offsets = [0, 64], sizes = [2, 32], strides = [1, 1]} : vector<2x96xf32> to vector<2x32xf32>
    %242 = arith.mulf %231, %241 : vector<2x32xf32>
    %243 = arith.addf %240, %242 : vector<2x32xf32>
    %244 = math.tanh %243 : vector<2x32xf32>
    %cst_75 = arith.constant 1.000000e+00 : f32
    %245 = vector.broadcast %cst_75 : f32 to vector<2x32xf32>
    %246 = arith.subf %245, %239 : vector<2x32xf32>
    %247 = arith.mulf %246, %244 : vector<2x32xf32>
    %248 = arith.mulf %239, %188 : vector<2x32xf32>
    %249 = arith.addf %247, %248 : vector<2x32xf32>
    %c3_76 = arith.constant 3 : index
    %c0_77 = arith.constant 0 : index
    %c0_78 = arith.constant 0 : index
    %250 = vector.load %arg10[%c3_76, %c0_77, %c0_78] : memref<6x2x32xf32, #tpu.memory_space<vmem>>, vector<1x2x32xf32>
    %251 = vector.shape_cast %250 : vector<1x2x32xf32> to vector<2x32xf32>
    %252 = vector.shape_cast %249 : vector<2x32xf32> to vector<1x2x32xf32>
    tpu.vector_store %arg10[%c3_76, %c0_77, %c0_78], %252 {strides = array<i32>} : memref<6x2x32xf32, #tpu.memory_space<vmem>>, vector<1x2x32xf32>,
    %cst_79 = arith.constant dense<0.000000e+00> : vector<2x32xf32>
    %253 = tpu.matmul %249, %2, %cst_79 {dimension_numbers = #tpu.dot_dimension_numbers<[1], [0], [0], [1], [0, 0, 1, 1], [], []>} : vector<2x32xf32>, vector<32x32xf32>, vector<2x32xf32> -> vector<2x32xf32>
    %254 = vector.broadcast %3 : vector<1x32xf32> to vector<2x32xf32>
    %255 = arith.addf %253, %254 : vector<2x32xf32>
    %256 = vector.shape_cast %255 : vector<2x32xf32> to vector<2x1x32xf32>
    %257 = vector.broadcast %256 : vector<2x1x32xf32> to vector<2x8x32xf32>
    %258 = arith.addf %257, %1 : vector<2x8x32xf32>
    %259 = math.tanh %258 : vector<2x8x32xf32>
    %260 = vector.shape_cast %4 : vector<1x32xf32> to vector<1x1x32xf32>
    %261 = vector.broadcast %260 : vector<1x1x32xf32> to vector<2x8x32xf32>
    %262 = arith.mulf %259, %261 : vector<2x8x32xf32>
    %cst_80 = arith.constant dense<0.000000e+00> : vector<2x8xf32>
    %263 = vector.multi_reduction <add>, %262, %cst_80 [2] : vector<2x8x32xf32> to vector<2x8xf32>
    %cst_81 = arith.constant dense<0xFF800000> : vector<2xf32>
    %264 = vector.multi_reduction <maximumf>, %263, %cst_81 [1] : vector<2x8xf32> to vector<2xf32>
    %265 = vector.shape_cast %264 : vector<2xf32> to vector<2x1xf32>
    %266 = vector.broadcast %265 : vector<2x1xf32> to vector<2x8xf32>
    %267 = arith.subf %263, %266 : vector<2x8xf32>
    %268 = math.exp %267 : vector<2x8xf32>
    %cst_82 = arith.constant dense<0.000000e+00> : vector<2xf32>
    %269 = vector.multi_reduction <add>, %268, %cst_82 [1] : vector<2x8xf32> to vector<2xf32>
    %270 = vector.shape_cast %269 : vector<2xf32> to vector<2x1xf32>
    %271 = tpu.reciprocal %270 {approx = true} : vector<2x1xf32> -> vector<2x1xf32>
    %272 = vector.broadcast %271 : vector<2x1xf32> to vector<2x8xf32>
    %273 = arith.mulf %268, %272 : vector<2x8xf32>
    %274 = vector.shape_cast %273 : vector<2x8xf32> to vector<2x8x1xf32>
    %275 = vector.broadcast %274 : vector<2x8x1xf32> to vector<2x8x64xf32>
    %276 = arith.mulf %275, %0 : vector<2x8x64xf32>
    %cst_83 = arith.constant dense<0.000000e+00> : vector<2x64xf32>
    %277 = vector.multi_reduction <add>, %276, %cst_83 [1] : vector<2x8x64xf32> to vector<2x64xf32>
    %c4 = arith.constant 4 : index
    %c0_84 = arith.constant 0 : index
    %c0_85 = arith.constant 0 : index
    %278 = vector.load %arg0[%c4, %c0_84, %c0_85] : memref<6x2x96xf32, #tpu.memory_space<vmem>>, vector<1x2x96xf32>
    %279 = vector.shape_cast %278 : vector<1x2x96xf32> to vector<2x96xf32>
    %cst_86 = arith.constant dense<0.000000e+00> : vector<2x96xf32>
    %280 = tpu.matmul %277, %5, %cst_86 {dimension_numbers = #tpu.dot_dimension_numbers<[1], [0], [0], [1], [0, 0, 1, 1], [], []>} : vector<2x64xf32>, vector<64x96xf32>, vector<2x96xf32> -> vector<2x96xf32>
    %281 = arith.addf %279, %280 : vector<2x96xf32>
    %cst_87 = arith.constant dense<0.000000e+00> : vector<2x96xf32>
    %282 = tpu.matmul %249, %6, %cst_87 {dimension_numbers = #tpu.dot_dimension_numbers<[1], [0], [0], [1], [0, 0, 1, 1], [], []>} : vector<2x32xf32>, vector<32x96xf32>, vector<2x96xf32> -> vector<2x96xf32>
    %283 = vector.broadcast %7 : vector<1x96xf32> to vector<2x96xf32>
    %284 = arith.addf %282, %283 : vector<2x96xf32>
    %285 = vector.extract_strided_slice %281 {offsets = [0, 0], sizes = [2, 32], strides = [1, 1]} : vector<2x96xf32> to vector<2x32xf32>
    %286 = vector.extract_strided_slice %284 {offsets = [0, 0], sizes = [2, 32], strides = [1, 1]} : vector<2x96xf32> to vector<2x32xf32>
    %287 = arith.addf %285, %286 : vector<2x32xf32>
    %288 = arith.negf %287 : vector<2x32xf32>
    %289 = math.exp %288 : vector<2x32xf32>
    %cst_88 = arith.constant 1.000000e+00 : f32
    %290 = vector.broadcast %cst_88 : f32 to vector<2x32xf32>
    %291 = arith.addf %290, %289 : vector<2x32xf32>
    %292 = arith.divf %290, %291 : vector<2x32xf32>
    %293 = vector.extract_strided_slice %281 {offsets = [0, 32], sizes = [2, 32], strides = [1, 1]} : vector<2x96xf32> to vector<2x32xf32>
    %294 = vector.extract_strided_slice %284 {offsets = [0, 32], sizes = [2, 32], strides = [1, 1]} : vector<2x96xf32> to vector<2x32xf32>
    %295 = arith.addf %293, %294 : vector<2x32xf32>
    %296 = arith.negf %295 : vector<2x32xf32>
    %297 = math.exp %296 : vector<2x32xf32>
    %cst_89 = arith.constant 1.000000e+00 : f32
    %298 = vector.broadcast %cst_89 : f32 to vector<2x32xf32>
    %299 = arith.addf %298, %297 : vector<2x32xf32>
    %300 = arith.divf %298, %299 : vector<2x32xf32>
    %301 = vector.extract_strided_slice %281 {offsets = [0, 64], sizes = [2, 32], strides = [1, 1]} : vector<2x96xf32> to vector<2x32xf32>
    %302 = vector.extract_strided_slice %284 {offsets = [0, 64], sizes = [2, 32], strides = [1, 1]} : vector<2x96xf32> to vector<2x32xf32>
    %303 = arith.mulf %292, %302 : vector<2x32xf32>
    %304 = arith.addf %301, %303 : vector<2x32xf32>
    %305 = math.tanh %304 : vector<2x32xf32>
    %cst_90 = arith.constant 1.000000e+00 : f32
    %306 = vector.broadcast %cst_90 : f32 to vector<2x32xf32>
    %307 = arith.subf %306, %300 : vector<2x32xf32>
    %308 = arith.mulf %307, %305 : vector<2x32xf32>
    %309 = arith.mulf %300, %249 : vector<2x32xf32>
    %310 = arith.addf %308, %309 : vector<2x32xf32>
    %c4_91 = arith.constant 4 : index
    %c0_92 = arith.constant 0 : index
    %c0_93 = arith.constant 0 : index
    %311 = vector.load %arg10[%c4_91, %c0_92, %c0_93] : memref<6x2x32xf32, #tpu.memory_space<vmem>>, vector<1x2x32xf32>
    %312 = vector.shape_cast %311 : vector<1x2x32xf32> to vector<2x32xf32>
    %313 = vector.shape_cast %310 : vector<2x32xf32> to vector<1x2x32xf32>
    tpu.vector_store %arg10[%c4_91, %c0_92, %c0_93], %313 {strides = array<i32>} : memref<6x2x32xf32, #tpu.memory_space<vmem>>, vector<1x2x32xf32>,
    %cst_94 = arith.constant dense<0.000000e+00> : vector<2x32xf32>
    %314 = tpu.matmul %310, %2, %cst_94 {dimension_numbers = #tpu.dot_dimension_numbers<[1], [0], [0], [1], [0, 0, 1, 1], [], []>} : vector<2x32xf32>, vector<32x32xf32>, vector<2x32xf32> -> vector<2x32xf32>
    %315 = vector.broadcast %3 : vector<1x32xf32> to vector<2x32xf32>
    %316 = arith.addf %314, %315 : vector<2x32xf32>
    %317 = vector.shape_cast %316 : vector<2x32xf32> to vector<2x1x32xf32>
    %318 = vector.broadcast %317 : vector<2x1x32xf32> to vector<2x8x32xf32>
    %319 = arith.addf %318, %1 : vector<2x8x32xf32>
    %320 = math.tanh %319 : vector<2x8x32xf32>
    %321 = vector.shape_cast %4 : vector<1x32xf32> to vector<1x1x32xf32>
    %322 = vector.broadcast %321 : vector<1x1x32xf32> to vector<2x8x32xf32>
    %323 = arith.mulf %320, %322 : vector<2x8x32xf32>
    %cst_95 = arith.constant dense<0.000000e+00> : vector<2x8xf32>
    %324 = vector.multi_reduction <add>, %323, %cst_95 [2] : vector<2x8x32xf32> to vector<2x8xf32>
    %cst_96 = arith.constant dense<0xFF800000> : vector<2xf32>
    %325 = vector.multi_reduction <maximumf>, %324, %cst_96 [1] : vector<2x8xf32> to vector<2xf32>
    %326 = vector.shape_cast %325 : vector<2xf32> to vector<2x1xf32>
    %327 = vector.broadcast %326 : vector<2x1xf32> to vector<2x8xf32>
    %328 = arith.subf %324, %327 : vector<2x8xf32>
    %329 = math.exp %328 : vector<2x8xf32>
    %cst_97 = arith.constant dense<0.000000e+00> : vector<2xf32>
    %330 = vector.multi_reduction <add>, %329, %cst_97 [1] : vector<2x8xf32> to vector<2xf32>
    %331 = vector.shape_cast %330 : vector<2xf32> to vector<2x1xf32>
    %332 = tpu.reciprocal %331 {approx = true} : vector<2x1xf32> -> vector<2x1xf32>
    %333 = vector.broadcast %332 : vector<2x1xf32> to vector<2x8xf32>
    %334 = arith.mulf %329, %333 : vector<2x8xf32>
    %335 = vector.shape_cast %334 : vector<2x8xf32> to vector<2x8x1xf32>
    %336 = vector.broadcast %335 : vector<2x8x1xf32> to vector<2x8x64xf32>
    %337 = arith.mulf %336, %0 : vector<2x8x64xf32>
    %cst_98 = arith.constant dense<0.000000e+00> : vector<2x64xf32>
    %338 = vector.multi_reduction <add>, %337, %cst_98 [1] : vector<2x8x64xf32> to vector<2x64xf32>
    %c5 = arith.constant 5 : index
    %c0_99 = arith.constant 0 : index
    %c0_100 = arith.constant 0 : index
    %339 = vector.load %arg0[%c5, %c0_99, %c0_100] : memref<6x2x96xf32, #tpu.memory_space<vmem>>, vector<1x2x96xf32>
    %340 = vector.shape_cast %339 : vector<1x2x96xf32> to vector<2x96xf32>
    %cst_101 = arith.constant dense<0.000000e+00> : vector<2x96xf32>
    %341 = tpu.matmul %338, %5, %cst_101 {dimension_numbers = #tpu.dot_dimension_numbers<[1], [0], [0], [1], [0, 0, 1, 1], [], []>} : vector<2x64xf32>, vector<64x96xf32>, vector<2x96xf32> -> vector<2x96xf32>
    %342 = arith.addf %340, %341 : vector<2x96xf32>
    %cst_102 = arith.constant dense<0.000000e+00> : vector<2x96xf32>
    %343 = tpu.matmul %310, %6, %cst_102 {dimension_numbers = #tpu.dot_dimension_numbers<[1], [0], [0], [1], [0, 0, 1, 1], [], []>} : vector<2x32xf32>, vector<32x96xf32>, vector<2x96xf32> -> vector<2x96xf32>
    %344 = vector.broadcast %7 : vector<1x96xf32> to vector<2x96xf32>
    %345 = arith.addf %343, %344 : vector<2x96xf32>
    %346 = vector.extract_strided_slice %342 {offsets = [0, 0], sizes = [2, 32], strides = [1, 1]} : vector<2x96xf32> to vector<2x32xf32>
    %347 = vector.extract_strided_slice %345 {offsets = [0, 0], sizes = [2, 32], strides = [1, 1]} : vector<2x96xf32> to vector<2x32xf32>
    %348 = arith.addf %346, %347 : vector<2x32xf32>
    %349 = arith.negf %348 : vector<2x32xf32>
    %350 = math.exp %349 : vector<2x32xf32>
    %cst_103 = arith.constant 1.000000e+00 : f32
    %351 = vector.broadcast %cst_103 : f32 to vector<2x32xf32>
    %352 = arith.addf %351, %350 : vector<2x32xf32>
    %353 = arith.divf %351, %352 : vector<2x32xf32>
    %354 = vector.extract_strided_slice %342 {offsets = [0, 32], sizes = [2, 32], strides = [1, 1]} : vector<2x96xf32> to vector<2x32xf32>
    %355 = vector.extract_strided_slice %345 {offsets = [0, 32], sizes = [2, 32], strides = [1, 1]} : vector<2x96xf32> to vector<2x32xf32>
    %356 = arith.addf %354, %355 : vector<2x32xf32>
    %357 = arith.negf %356 : vector<2x32xf32>
    %358 = math.exp %357 : vector<2x32xf32>
    %cst_104 = arith.constant 1.000000e+00 : f32
    %359 = vector.broadcast %cst_104 : f32 to vector<2x32xf32>
    %360 = arith.addf %359, %358 : vector<2x32xf32>
    %361 = arith.divf %359, %360 : vector<2x32xf32>
    %362 = vector.extract_strided_slice %342 {offsets = [0, 64], sizes = [2, 32], strides = [1, 1]} : vector<2x96xf32> to vector<2x32xf32>
    %363 = vector.extract_strided_slice %345 {offsets = [0, 64], sizes = [2, 32], strides = [1, 1]} : vector<2x96xf32> to vector<2x32xf32>
    %364 = arith.mulf %353, %363 : vector<2x32xf32>
    %365 = arith.addf %362, %364 : vector<2x32xf32>
    %366 = math.tanh %365 : vector<2x32xf32>
    %cst_105 = arith.constant 1.000000e+00 : f32
    %367 = vector.broadcast %cst_105 : f32 to vector<2x32xf32>
    %368 = arith.subf %367, %361 : vector<2x32xf32>
    %369 = arith.mulf %368, %366 : vector<2x32xf32>
    %370 = arith.mulf %361, %310 : vector<2x32xf32>
    %371 = arith.addf %369, %370 : vector<2x32xf32>
    %c5_106 = arith.constant 5 : index
    %c0_107 = arith.constant 0 : index
    %c0_108 = arith.constant 0 : index
    %372 = vector.load %arg10[%c5_106, %c0_107, %c0_108] : memref<6x2x32xf32, #tpu.memory_space<vmem>>, vector<1x2x32xf32>
    %373 = vector.shape_cast %372 : vector<1x2x32xf32> to vector<2x32xf32>
    %374 = vector.shape_cast %371 : vector<2x32xf32> to vector<1x2x32xf32>
    tpu.vector_store %arg10[%c5_106, %c0_107, %c0_108], %374 {strides = array<i32>} : memref<6x2x32xf32, #tpu.memory_space<vmem>>, vector<1x2x32xf32>,
    return
  }
}

module attributes {stable_mosaic.version = 11 : i64} {
  func.func @_dense_kernel(%arg0: memref<12x32xf32, #tpu.memory_space<vmem>>, %arg1: memref<32x48xf32, #tpu.memory_space<vmem>>, %arg2: memref<1x48xf32, #tpu.memory_space<vmem>>, %arg3: memref<12x48xf32, #tpu.memory_space<vmem>>) attributes {dimension_semantics = [], scalar_prefetch = 0 : i64, scratch_operands = 0 : i64, tpu.core_type = #tpu.core_type<tc>} {
    %c0 = arith.constant 0 : index
    %c0_0 = arith.constant 0 : index
    %0 = vector.load %arg0[%c0, %c0_0] : memref<12x32xf32, #tpu.memory_space<vmem>>, vector<12x32xf32>
    %c0_1 = arith.constant 0 : index
    %c0_2 = arith.constant 0 : index
    %1 = vector.load %arg1[%c0_1, %c0_2] : memref<32x48xf32, #tpu.memory_space<vmem>>, vector<32x48xf32>
    %cst = arith.constant dense<0.000000e+00> : vector<12x48xf32>
    %2 = tpu.matmul %0, %1, %cst {dimension_numbers = #tpu.dot_dimension_numbers<[1], [0], [0], [1], [0, 0, 1, 1], [], []>} : vector<12x32xf32>, vector<32x48xf32>, vector<12x48xf32> -> vector<12x48xf32>
    %c0_3 = arith.constant 0 : index
    %c0_4 = arith.constant 0 : index
    %3 = vector.load %arg2[%c0_3, %c0_4] : memref<1x48xf32, #tpu.memory_space<vmem>>, vector<1x48xf32>
    %4 = vector.broadcast %3 : vector<1x48xf32> to vector<12x48xf32>
    %5 = arith.addf %2, %4 : vector<12x48xf32>
    %c0_5 = arith.constant 0 : index
    %c0_6 = arith.constant 0 : index
    %6 = vector.load %arg3[%c0_5, %c0_6] : memref<12x48xf32, #tpu.memory_space<vmem>>, vector<12x48xf32>
    tpu.vector_store %arg3[%c0_5, %c0_6], %5 {strides = array<i32>} : memref<12x48xf32, #tpu.memory_space<vmem>>, vector<12x48xf32>,
    return
  }
}

</mosaic_0001>

<llo_original>
// kernel: reverse
$region0: #{reverse}
  %s0 = inlined_call_operand.vmem [shape: f32[8,2], index: 0, kind: input, shape index: {}]
  %s1 = inlined_call_operand.vmem [shape: f32[8,2], index: 1, kind: output, shape index: {}]
  %v2 = vlaneseq
  %v3 = vsub.s32 7, %v2
  %4 = vset.pattern.permute.xlu0 %v3
  $region1: #{reverse} parent=0
    #allocation0 [shape = 'u8[4096]{0}', space=vmem, size = 0x1000, scoped, tag = 'operand span for operand 0']
    #allocation1 [shape = 'u8[1024]{0}', space=vmem, size = 0x400, scoped, tag = 'packed  for operand 0']
    #allocation2 [shape = 'u8[4096]{0}', space=vmem, size = 0x1000, scoped, tag = 'operand span for operand 1']
    #allocation3 [shape = 'u8[1024]{0}', space=vmem, size = 0x400, scoped, tag = 'packed  for operand 1']
    // Predicated region
    $region2: #{reverse} parent=1 // pred_check
      _
    $region3: #{reverse} parent=1 // pred_check_branch
      %6 = sbr.rel (0) target = $region5
    $region4: #{reverse} parent=1 // pred_region
      // Predicated region
      $region6: #{reverse} parent=4 // pred_check
        _
      $region7: #{reverse} parent=4 // pred_check_branch
        %8 = sbr.rel target = $region9
      $region8: #{reverse} parent=4 // pred_region
        // Predicated region
        $region21: #{reverse} parent=8 // pred_check
          _
        $region22: #{reverse} parent=8 // pred_check_branch
          %24 = sbr.rel (0) target = $region24
        $region23: #{reverse} parent=8 // pred_region
          %s26 = ssub.s32 4, 1
          loop: start=0, step=1, limit=1
          $region25: #{reverse} parent=23 // loop_pre_header
            _
          $region26: #{reverse} parent=23 // loop_header
            %s28 = sphi 0, %s32
            %p29 = scmp.ge.s32.totalorder %s28, 1
            %s33 = sphi %s0, %s0
            %s34 = sphi [#allocation1], [#allocation1]
          $region27: #{reverse} parent=23 // loop_header_branch
            %31 = sbr.rel (%p29) target = $region31
          $region28: #{reverse} parent=23 // loop_body
            %v35 = vld [vmem:[%s33] sm:%s26]
            %36 = vst [vmem:[%s34] sm:%s26] %v35
          $region29: #{reverse} parent=23 // loop_footer
            %s32 = sadd.s32 1, %s28
          $region30: #{reverse} parent=23 // loop_footer_branch
            %27 = sbr.rel target = $region26
          $region31: #{reverse} parent=23 // loop_exit
            _
        $region24: #{reverse} parent=8 // pred_fallthru
          _
      $region9: #{reverse} parent=4 // pred_fallthru
        _
      // Predicated region
      $region10: #{reverse} parent=4 // pred_check
        _
      $region11: #{reverse} parent=4 // pred_check_branch
        %10 = sbr.rel (0) target = $region13
      $region12: #{reverse} parent=4 // pred_region
        %s12 = ssub.s32 4, 1
        loop: start=0, step=1, limit=1
        $region14: #{reverse} parent=12 // loop_pre_header
          _
        $region15: #{reverse} parent=12 // loop_header
          %s14 = sphi 0, %s18
          %p15 = scmp.ge.s32.totalorder %s14, 1
          %s19 = sphi %s0, %s0
          %s20 = sphi [#allocation1], [#allocation1]
        $region16: #{reverse} parent=12 // loop_header_branch
          %17 = sbr.rel (%p15) target = $region20
        $region17: #{reverse} parent=12 // loop_body
          %v21 = vld [vmem:[%s19] sm:%s12]
          %22 = vst [vmem:[%s20] sm:%s12] %v21
        $region18: #{reverse} parent=12 // loop_footer
          %s18 = sadd.s32 1, %s14
        $region19: #{reverse} parent=12 // loop_footer_branch
          %13 = sbr.rel target = $region15
        $region20: #{reverse} parent=12 // loop_exit
          _
      $region13: #{reverse} parent=4 // pred_fallthru
        _
    $region5: #{reverse} parent=1 // pred_fallthru
      _
    %37 = vnop
    %s39 = sshll.u32 1, 2
    %s40 = ssub.s32 %s39, 1
    %v41 = vld [vmem:[#allocation1] sm:%s40]
    %42 = vst [vmem:[#allocation0] sm:%s40] %v41
    %v43 = vld [vmem:[#allocation0] sm:$0xff]
    %44 = vperm.xlu0 %4, %v43
    %v45 = vpop.permute.xlu0 %44
    %46 = vst [vmem:[#allocation2] sm:$0xff] %v45
    %s48 = sshll.u32 1, 2
    %s49 = ssub.s32 %s48, 1
    %v51 = vld [vmem:[#allocation2] sm:%s49]
    %s52 = sshll.u32 1, 2
    %s53 = ssub.s32 %s52, 1
    %54 = vst [vmem:[#allocation3] sm:%s53] %v51
    // Predicated region
    $region32: #{reverse} parent=1 // pred_check
      _
    $region33: #{reverse} parent=1 // pred_check_branch
      %56 = sbr.rel (0) target = $region35
    $region34: #{reverse} parent=1 // pred_region
      // Predicated region
      $region36: #{reverse} parent=34 // pred_check
        _
      $region37: #{reverse} parent=34 // pred_check_branch
        %58 = sbr.rel target = $region39
      $region38: #{reverse} parent=34 // pred_region
        // Predicated region
        $region51: #{reverse} parent=38 // pred_check
          _
        $region52: #{reverse} parent=38 // pred_check_branch
          %74 = sbr.rel (0) target = $region54
        $region53: #{reverse} parent=38 // pred_region
          %s76 = ssub.s32 4, 1
          loop: start=0, step=1, limit=1
          $region55: #{reverse} parent=53 // loop_pre_header
            _
          $region56: #{reverse} parent=53 // loop_header
            %s78 = sphi 0, %s82
            %p79 = scmp.ge.s32.totalorder %s78, 1
            %s83 = sphi [#allocation3], [#allocation3]
            %s84 = sphi %s1, %s1
          $region57: #{reverse} parent=53 // loop_header_branch
            %81 = sbr.rel (%p79) target = $region61
          $region58: #{reverse} parent=53 // loop_body
            %v85 = vld [vmem:[%s83] sm:%s76]
            %86 = vst [vmem:[%s84] sm:%s76] %v85
          $region59: #{reverse} parent=53 // loop_footer
            %s82 = sadd.s32 1, %s78
          $region60: #{reverse} parent=53 // loop_footer_branch
            %77 = sbr.rel target = $region56
          $region61: #{reverse} parent=53 // loop_exit
            _
        $region54: #{reverse} parent=38 // pred_fallthru
          _
      $region39: #{reverse} parent=34 // pred_fallthru
        _
      // Predicated region
      $region40: #{reverse} parent=34 // pred_check
        _
      $region41: #{reverse} parent=34 // pred_check_branch
        %60 = sbr.rel (0) target = $region43
      $region42: #{reverse} parent=34 // pred_region
        %s62 = ssub.s32 4, 1
        loop: start=0, step=1, limit=1
        $region44: #{reverse} parent=42 // loop_pre_header
          _
        $region45: #{reverse} parent=42 // loop_header
          %s64 = sphi 0, %s68
          %p65 = scmp.ge.s32.totalorder %s64, 1
          %s69 = sphi [#allocation3], [#allocation3]
          %s70 = sphi %s1, %s1
        $region46: #{reverse} parent=42 // loop_header_branch
          %67 = sbr.rel (%p65) target = $region50
        $region47: #{reverse} parent=42 // loop_body
          %v71 = vld [vmem:[%s69] sm:%s62]
          %72 = vst [vmem:[%s70] sm:%s62] %v71
        $region48: #{reverse} parent=42 // loop_footer
          %s68 = sadd.s32 1, %s64
        $region49: #{reverse} parent=42 // loop_footer_branch
          %63 = sbr.rel target = $region45
        $region50: #{reverse} parent=42 // loop_exit
          _
      $region43: #{reverse} parent=34 // pred_fallthru
        _
    $region35: #{reverse} parent=1 // pred_fallthru
      _
    %87 = vnop

// kernel: _lambda_.9
$region0: #{_lambda_.9}
  #allocation0 [shape = 'u32[]', space=smem, size = 0x4, offset = 0x4, fixed_abs, tag = 'smem constant byte address 0x4 - core index']
  #allocation1 [shape = 'u32[144,128]{1,0:T(1,128)}', space=vmem, size = 0x12000, scoped, tag = 'internal scratch']
  %s0 = inlined_call_operand.vmem [shape: f32[12,32], index: 0, kind: input, shape index: {}]
  %s1 = inlined_call_operand.vmem [shape: f32[32,48], index: 1, kind: input, shape index: {}]
  %s2 = inlined_call_operand.vmem [shape: f32[1,48], index: 2, kind: input, shape index: {}]
  %s3 = inlined_call_operand.vmem [shape: f32[12,48], index: 3, kind: output, shape index: {}]
  %s4 = sld [smem:[#allocation0]]
  $region22: #{_lambda_.9} parent=0
    _
  %s6 = ssub.s32 1, %s4
  %s7 = scalar_select 0, %s6, %s4
  // Predicated region
  $region2: #{_lambda_.9} parent=0 // pred_check
    _
  $region3: #{_lambda_.9} parent=0 // pred_check_branch
    %9 = sbr.rel (0) target = $region5
  $region4: #{_lambda_.9} parent=0 // pred_region
    _
  $region5: #{_lambda_.9} parent=0 // pred_fallthru
    _
  // Predicated region
  $region6: #{_lambda_.9} parent=0 // pred_check
    _
  $region7: #{_lambda_.9} parent=0 // pred_check_branch
    %11 = sbr.rel (0) target = $region9
  $region8: #{_lambda_.9} parent=0 // pred_region
    _
  $region9: #{_lambda_.9} parent=0 // pred_fallthru
    _
  // Predicated region
  $region10: #{_lambda_.9} parent=0 // pred_check
    _
  $region11: #{_lambda_.9} parent=0 // pred_check_branch
    %13 = sbr.rel (0) target = $region13
  $region12: #{_lambda_.9} parent=0 // pred_region
    _
  $region13: #{_lambda_.9} parent=0 // pred_fallthru
    _
  %v14 = vld [vmem:[%s0] sm:$0xff]
  %v15 = vld [vmem:[%s0 + $0x8] sm:$0xf]
  %v16 = vld [vmem:[%s1] sm:$0xff]
  %v17 = vld [vmem:[%s1 + $0x8] sm:$0xff]
  %v18 = vld [vmem:[%s1 + $0x10] sm:$0xff]
  %v19 = vld [vmem:[%s1 + $0x18] sm:$0xff]
  %v20 = vld [vmem:[%s2] sm:$0x1]
  %v22 = vlaneseq
  %v23 = vshrl.u32 %v22, 7
  %v24 = vsub.s32 0, %v23
  %v25 = vrot.slane %v20, %v24
  %vm27 = vcmask 261120
  %v29 = vsel %vm27, %v14, 0
  %v32 = vsel %vm27, %v15, 0
  %34 = vmatprep.subr.mxu0 0.0
  %35 = vmatpush1.msra.mxu0 0.0
  %36 = vmatprep.subr.mxu0 0.0
  %37 = vmatpush1.msra.mxu0 0.0
  %38 = vmatprep.subr.mxu0 0.0
  %39 = vmatpush1.msra.mxu0 0.0
  %40 = vmatprep.subr.mxu0 0.0
  %41 = vmatpush1.msra.mxu0 0.0
  %42 = vmatprep.subr.mxu0 0.0
  %43 = vmatpush1.msra.mxu0 0.0
  %44 = vmatprep.subr.mxu0 0.0
  %45 = vmatpush1.msra.mxu0 0.0
  %46 = vmatprep.subr.mxu0 0.0
  %47 = vmatpush1.msra.mxu0 0.0
  %48 = vmatprep.subr.mxu0 0.0
  %49 = vmatpush1.msra.mxu0 0.0
  %50 = vmatprep.subr.mxu0 0.0
  %51 = vmatpush1.msra.mxu0 0.0
  %52 = vmatprep.subr.mxu0 0.0
  %53 = vmatpush1.msra.mxu0 0.0
  %54 = vmatprep.subr.mxu0 0.0
  %55 = vmatpush1.msra.mxu0 0.0
  %56 = vmatprep.subr.mxu0 0.0
  %57 = vmatpush1.msra.mxu0 0.0
  %58 = vmatprep.subr.mxu0 0.0
  %59 = vmatpush1.msra.mxu0 %v19
  %60 = vmatprep.subr.mxu0 0.0
  %61 = vmatpush1.msra.mxu0 %v18
  %62 = vmatprep.subr.mxu0 0.0
  %63 = vmatpush1.msra.mxu0 %v17
  %64 = vmatprep.subr.mxu0 0.0
  %65 = vmatpush1.msra.mxu0 %v16
  %66 = vmatprep.subr.mxu0 0.0
  %67 = vmatpush2.msra.mxu0 0.0
  %68 = vmatprep.subr.mxu0 0.0
  %69 = vmatpush2.msra.mxu0 0.0
  %70 = vmatprep.subr.mxu0 0.0
  %71 = vmatpush2.msra.mxu0 0.0
  %72 = vmatprep.subr.mxu0 0.0
  %73 = vmatpush2.msra.mxu0 0.0
  %74 = vmatprep.subr.mxu0 0.0
  %75 = vmatpush2.msra.mxu0 0.0
  %76 = vmatprep.subr.mxu0 0.0
  %77 = vmatpush2.msra.mxu0 0.0
  %78 = vmatprep.subr.mxu0 0.0
  %79 = vmatpush2.msra.mxu0 0.0
  %80 = vmatprep.subr.mxu0 0.0
  %81 = vmatpush2.msra.mxu0 0.0
  %82 = vmatprep.subr.mxu0 0.0
  %83 = vmatpush2.msra.mxu0 0.0
  %84 = vmatprep.subr.mxu0 0.0
  %85 = vmatpush2.msra.mxu0 0.0
  %86 = vmatprep.subr.mxu0 0.0
  %87 = vmatpush2.msra.mxu0 0.0
  %88 = vmatprep.subr.mxu0 0.0
  %89 = vmatpush2.msra.mxu0 0.0
  %90 = vmatprep.subr.mxu0 0.0
  %91 = vmatpush2.msra.mxu0 0.0
  %92 = vmatprep.subr.mxu0 0.0
  %93 = vmatpush2.msra.mxu0 0.0
  %94 = vmatprep.subr.mxu0 0.0
  %95 = vmatpush2.msra.mxu0 0.0
  %96 = vmatprep.subr.mxu0 0.0
  %97 = vmatpush2.msra.mxu0 0.0
  %98 = vmatprep.mubr.f32.mxu0 0.0
  %99 = vmatmul.mubr.f32.gmra.mxu0 %v29
  %v100 = vpop.f32.mrf.mxu0
  %v101 = vadd.f32 %v25, %v100
  %v102 = vpop.f32.mrf.mxu0
  %103 = vmatprep.mubr.f32.mxu0 0.0
  %104 = vmatmul.mubr.f32.gmra.mxu0 %v32
  %v105 = vpop.f32.mrf.mxu0
  %v106 = vadd.f32 %v25, %v105
  %v107 = vpop.f32.mrf.mxu0
  %108 = vdwg.mxu0
  %vm109 = vcmask 392192
  %110 = vst.msk [vmem:[%s3] sm:$0xff] %vm109, %v101
  %vm111 = vcmask 388096
  %112 = vst.msk [vmem:[%s3 + $0x8] sm:$0xf] %vm111, %v106
  // Predicated region
  $region14: #{_lambda_.9} parent=0 // pred_check
    _
  $region15: #{_lambda_.9} parent=0 // pred_check_branch
    %114 = sbr.rel (0) target = $region17
  $region16: #{_lambda_.9} parent=0 // pred_region
    _
  $region17: #{_lambda_.9} parent=0 // pred_fallthru
    _
  // Predicated region
  $region18: #{_lambda_.9} parent=0 // pred_check
    _
  $region19: #{_lambda_.9} parent=0 // pred_check_branch
    %116 = sbr.rel (0) target = $region21
  $region20: #{_lambda_.9} parent=0 // pred_region
    _
  $region21: #{_lambda_.9} parent=0 // pred_fallthru
    _

// kernel: _lambda_.5
$region0: #{_lambda_.5}
  #allocation0 [shape = 'u32[]', space=smem, size = 0x4, offset = 0x4, fixed_abs, tag = 'smem constant byte address 0x4 - core index']
  #allocation1 [shape = 'u32[144,128]{1,0:T(1,128)}', space=vmem, size = 0x12000, scoped, tag = 'internal scratch']
  %s0 = inlined_call_operand.vmem [shape: f32[2,8,2,96], index: 0, kind: input, shape index: {}]
  %s1 = inlined_call_operand.vmem [shape: f32[2,8,2,1], index: 1, kind: input, shape index: {}]
  %s2 = inlined_call_operand.vmem [shape: f32[2,32,96], index: 2, kind: input, shape index: {}]
  %s3 = inlined_call_operand.vmem [shape: f32[2,1,96], index: 3, kind: input, shape index: {}]
  %s4 = inlined_call_operand.vmem [shape: f32[2,8,2,32], index: 4, kind: output, shape index: {}]
  %s5 = sld [smem:[#allocation0]]
  $region49: #{_lambda_.5} parent=0
    _
  %s7 = ssub.s32 1, %s5
  %s8 = scalar_select 0, %s7, %s5
  loop: start=0, step=1, limit=4
  $region2: #{_lambda_.5} parent=0 // loop_pre_header
    _
  $region3: #{_lambda_.5} parent=0 // loop_header
    %s10 = sphi 0, %s14
    %p11 = scmp.ge.s32.totalorder %s10, 4
    %s20 = sphi 0, %s22
    %s23 = sphi 0, %s20
    %s24 = sphi 0, %s23
    %s40 = sphi 0, %s24
    %s46 = sphi 0, %s48
    %s49 = sphi 0, %s46
    %s50 = sphi 0, %s49
    %s66 = sphi 0, %s50
    %s72 = sphi 0, %s74
    %s75 = sphi 0, %s72
    %s76 = sphi 0, %s75
    %s92 = sphi 0, %s76
    %s98 = sphi 0, %s100
    %s101 = sphi 0, %s98
    %s102 = sphi 0, %s101
    %s118 = sphi 0, %s102
    %s124 = sphi 0, %s126
    %s127 = sphi 0, %s124
    %s128 = sphi 0, %s127
    %s144 = sphi 0, %s128
  $region4: #{_lambda_.5} parent=0 // loop_header_branch
    %13 = sbr.rel (%p11) target = $region8
  $region5: #{_lambda_.5} parent=0 // loop_body
    %s15 = ssub.s32 %s10, 1
    %s16 = ssub.s32 %s10, 2
    %s17 = sadd.s32 %s10, 1
    %s18 = ssub.s32 %s10, %s17
    %p19 = scmp.eq.s32.totalorder %s18, 0
    %s21 = sadd.s32 %s20, 1
    %s22 = scalar_select %p19, %s20, %s21
    %p25 = pneg %p19
    %p26 = scmp.eq.s32.totalorder %s10, 1
    %p27 = por %p25, %p26
    %p28 = scmp.ne.s32.totalorder %s20, %s23
    %p29 = scmp.eq.s32.totalorder %s10, 0
    %p30 = por %p28, %p29
    %p31 = scmp.ne.s32.totalorder %s20, %s23
    %p32 = scmp.eq.s32.totalorder %s15, 1
    %p33 = por %p31, %p32
    %p34 = scmp.ne.s32.totalorder %s23, %s24
    %p35 = scmp.eq.s32.totalorder %s15, 0
    %p36 = por %p34, %p35
    %p37 = scmp.ne.s32.totalorder %s23, %s24
    %p38 = scmp.eq.s32.totalorder %s16, 1
    %p39 = por %p37, %p38
    %p41 = scmp.ne.s32.totalorder %s24, %s40
    %p42 = scmp.eq.s32.totalorder %s16, 0
    %p43 = por %p41, %p42
    %s44 = ssub.s32 %s10, %s17
    %p45 = scmp.eq.s32.totalorder %s44, 0
    %s47 = sadd.s32 %s46, 1
    %s48 = scalar_select %p45, %s46, %s47
    %p51 = pneg %p45
    %p52 = scmp.eq.s32.totalorder %s10, 1
    %p53 = por %p51, %p52
    %p54 = scmp.ne.s32.totalorder %s46, %s49
    %p55 = scmp.eq.s32.totalorder %s10, 0
    %p56 = por %p54, %p55
    %p57 = scmp.ne.s32.totalorder %s46, %s49
    %p58 = scmp.eq.s32.totalorder %s15, 1
    %p59 = por %p57, %p58
    %p60 = scmp.ne.s32.totalorder %s49, %s50
    %p61 = scmp.eq.s32.totalorder %s15, 0
    %p62 = por %p60, %p61
    %p63 = scmp.ne.s32.totalorder %s49, %s50
    %p64 = scmp.eq.s32.totalorder %s16, 1
    %p65 = por %p63, %p64
    %p67 = scmp.ne.s32.totalorder %s50, %s66
    %p68 = scmp.eq.s32.totalorder %s16, 0
    %p69 = por %p67, %p68
    %s70 = ssub.s32 %s10, %s17
    %p71 = scmp.eq.s32.totalorder %s70, 0
    %s73 = sadd.s32 %s72, 1
    %s74 = scalar_select %p71, %s72, %s73
    %p77 = pneg %p71
    %p78 = scmp.eq.s32.totalorder %s10, 1
    %p79 = por %p77, %p78
    %p80 = scmp.ne.s32.totalorder %s72, %s75
    %p81 = scmp.eq.s32.totalorder %s10, 0
    %p82 = por %p80, %p81
    %p83 = scmp.ne.s32.totalorder %s72, %s75
    %p84 = scmp.eq.s32.totalorder %s15, 1
    %p85 = por %p83, %p84
    %p86 = scmp.ne.s32.totalorder %s75, %s76
    %p87 = scmp.eq.s32.totalorder %s15, 0
    %p88 = por %p86, %p87
    %p89 = scmp.ne.s32.totalorder %s75, %s76
    %p90 = scmp.eq.s32.totalorder %s16, 1
    %p91 = por %p89, %p90
    %p93 = scmp.ne.s32.totalorder %s76, %s92
    %p94 = scmp.eq.s32.totalorder %s16, 0
    %p95 = por %p93, %p94
    %s96 = ssub.s32 %s10, %s17
    %p97 = scmp.eq.s32.totalorder %s96, 0
    %s99 = sadd.s32 %s98, 1
    %s100 = scalar_select %p97, %s98, %s99
    %p103 = pneg %p97
    %p104 = scmp.eq.s32.totalorder %s10, 1
    %p105 = por %p103, %p104
    %p106 = scmp.ne.s32.totalorder %s98, %s101
    %p107 = scmp.eq.s32.totalorder %s10, 0
    %p108 = por %p106, %p107
    %p109 = scmp.ne.s32.totalorder %s98, %s101
    %p110 = scmp.eq.s32.totalorder %s15, 1
    %p111 = por %p109, %p110
    %p112 = scmp.ne.s32.totalorder %s101, %s102
    %p113 = scmp.eq.s32.totalorder %s15, 0
    %p114 = por %p112, %p113
    %p115 = scmp.ne.s32.totalorder %s101, %s102
    %p116 = scmp.eq.s32.totalorder %s16, 1
    %p117 = por %p115, %p116
    %p119 = scmp.ne.s32.totalorder %s102, %s118
    %p120 = scmp.eq.s32.totalorder %s16, 0
    %p121 = por %p119, %p120
    %s122 = ssub.s32 %s10, %s17
    %p123 = scmp.eq.s32.totalorder %s122, 0
    %s125 = sadd.s32 %s124, 1
    %s126 = scalar_select %p123, %s124, %s125
    %p129 = pneg %p123
    %p130 = scmp.eq.s32.totalorder %s10, 1
    %p131 = por %p129, %p130
    %p132 = scmp.ne.s32.totalorder %s124, %s127
    %p133 = scmp.eq.s32.totalorder %s10, 0
    %p134 = por %p132, %p133
    %p135 = scmp.ne.s32.totalorder %s124, %s127
    %p136 = scmp.eq.s32.totalorder %s15, 1
    %p137 = por %p135, %p136
    %p138 = scmp.ne.s32.totalorder %s127, %s128
    %p139 = scmp.eq.s32.totalorder %s15, 0
    %p140 = por %p138, %p139
    %p141 = scmp.ne.s32.totalorder %s127, %s128
    %p142 = scmp.eq.s32.totalorder %s16, 1
    %p143 = por %p141, %p142
    %p145 = scmp.ne.s32.totalorder %s128, %s144
    %p146 = scmp.eq.s32.totalorder %s16, 0
    %p147 = por %p145, %p146
    %p148 = scmp.le.s32.totalorder 1, %s10
    %p149 = scmp.lt.s32.totalorder %s10, 3
    %p150 = pnand %p148, %p149
    %p151 = pneg %p150
    // Predicated region
    $region9: #{_lambda_.5} parent=5 // pred_check
      _
    $region10: #{_lambda_.5} parent=5 // pred_check_branch
      %153 = sbr.rel (%p150) target = $region12
    $region11: #{_lambda_.5} parent=5 // pred_region
      %s154 = ssub.s32 %s10, 1
    $region12: #{_lambda_.5} parent=5 // pred_fallthru
      _
    %p155 = scmp.lt.s32.totalorder %s10, 2
    // Predicated region
    $region13: #{_lambda_.5} parent=5 // pred_check
      %p156 = pneg %p155
    $region14: #{_lambda_.5} parent=5 // pred_check_branch
      %158 = sbr.rel (%p156) target = $region16
    $region15: #{_lambda_.5} parent=5 // pred_region
      // Predicated region
      $region17: #{_lambda_.5} parent=15 // pred_check
        %p159 = pneg %p30
      $region18: #{_lambda_.5} parent=15 // pred_check_branch
        %161 = sbr.rel (%p159) target = $region20
      $region19: #{_lambda_.5} parent=15 // pred_region
        %p162 = scmp.lt.s32.totalorder %s10, 1
        %s163 = scalar_select %p162, %s10, 1
        %s164 = smul.addr %s163, 8
        %s165 = smul.addr %s164, 2
        %s166 = scalar_lea.vmem %s0, %s165
      $region20: #{_lambda_.5} parent=15 // pred_fallthru
        _
      // Predicated region
      $region21: #{_lambda_.5} parent=15 // pred_check
        %p167 = pneg %p56
      $region22: #{_lambda_.5} parent=15 // pred_check_branch
        %169 = sbr.rel (%p167) target = $region24
      $region23: #{_lambda_.5} parent=15 // pred_region
        %p170 = scmp.lt.s32.totalorder %s10, 1
        %s171 = scalar_select %p170, %s10, 1
        %s172 = smul.addr %s171, 8
        %s173 = smul.addr %s172, 2
        %s174 = scalar_lea.vmem %s1, %s173
      $region24: #{_lambda_.5} parent=15 // pred_fallthru
        _
      // Predicated region
      $region25: #{_lambda_.5} parent=15 // pred_check
        %p175 = pneg %p82
      $region26: #{_lambda_.5} parent=15 // pred_check_branch
        %177 = sbr.rel (%p175) target = $region28
      $region27: #{_lambda_.5} parent=15 // pred_region
        %p178 = scmp.lt.s32.totalorder %s10, 1
        %s179 = scalar_select %p178, %s10, 1
        %s180 = smul.addr %s179, 4
        %s181 = smul.addr %s180, 8
        %s182 = scalar_lea.vmem %s2, %s181
      $region28: #{_lambda_.5} parent=15 // pred_fallthru
        _
      // Predicated region
      $region29: #{_lambda_.5} parent=15 // pred_check
        %p183 = pneg %p108
      $region30: #{_lambda_.5} parent=15 // pred_check_branch
        %185 = sbr.rel (%p183) target = $region32
      $region31: #{_lambda_.5} parent=15 // pred_region
        %p186 = scmp.lt.s32.totalorder %s10, 1
        %s187 = scalar_select %p186, %s10, 1
        %s188 = scalar_lea.vmem %s3, %s187
      $region32: #{_lambda_.5} parent=15 // pred_fallthru
        _
    $region16: #{_lambda_.5} parent=5 // pred_fallthru
      _
    %p189 = scmp.le.s32.totalorder 1, %s10
    %p190 = scmp.lt.s32.totalorder %s10, 3
    %p191 = pnand %p189, %p190
    %p192 = pneg %p191
    // Predicated region
    $region33: #{_lambda_.5} parent=5 // pred_check
      _
    $region34: #{_lambda_.5} parent=5 // pred_check_branch
      %194 = sbr.rel (%p191) target = $region36
    $region35: #{_lambda_.5} parent=5 // pred_region
      %s195 = ssub.s32 %s10, 1
      %p196 = scmp.lt.s32.totalorder %s15, 1
      %s197 = scalar_select %p196, %s15, 1
      %s198 = smul.addr %s197, 8
      %s199 = smul.addr %s198, 2
      %s200 = scalar_lea.vmem %s0, %s199
      %p201 = pneg %p36
      %p202 = pneg %p33
      %p203 = scmp.lt.s32.totalorder %s15, 1
      %s204 = scalar_select %p203, %s15, 1
      %s205 = smul.addr %s204, 8
      %s206 = smul.addr %s205, 2
      %s207 = scalar_lea.vmem %s1, %s206
      %p208 = pneg %p62
      %p209 = pneg %p59
      %p210 = scmp.lt.s32.totalorder %s15, 1
      %s211 = scalar_select %p210, %s15, 1
      %s212 = smul.addr %s211, 4
      %s213 = smul.addr %s212, 8
      %s214 = scalar_lea.vmem %s2, %s213
      %p215 = pneg %p88
      %p216 = pneg %p85
      %p217 = scmp.lt.s32.totalorder %s15, 1
      %s218 = scalar_select %p217, %s15, 1
      %s219 = scalar_lea.vmem %s3, %s218
      %p220 = pneg %p114
      %p221 = pneg %p111
      %p222 = pneg %p140
      %p223 = pneg %p137
      %p224 = scmp.lt.s32.totalorder %s15, 1
      %s225 = scalar_select %p224, %s15, 1
      %s226 = smul.addr %s225, 8
      %s227 = smul.addr %s226, 2
      %s228 = scalar_lea.vmem %s4, %s227
      %p229 = scmp.lt.s32.totalorder %s15, 1
      %s230 = scalar_select %p229, %s15, 1
      %s231 = smul.addr %s230, 8
      %s232 = smul.addr %s231, 2
      %s233 = scalar_lea.vmem %s0, %s232
      %p234 = scmp.lt.s32.totalorder %s15, 1
      %s235 = scalar_select %p234, %s15, 1
      %s236 = smul.addr %s235, 8
      %s237 = smul.addr %s236, 2
      %s238 = scalar_lea.vmem %s1, %s237
      %p239 = scmp.lt.s32.totalorder %s15, 1
      %s240 = scalar_select %p239, %s15, 1
      %s241 = smul.addr %s240, 4
      %s242 = smul.addr %s241, 8
      %s243 = scalar_lea.vmem %s2, %s242
      %p244 = scmp.lt.s32.totalorder %s15, 1
      %s245 = scalar_select %p244, %s15, 1
      %s246 = scalar_lea.vmem %s3, %s245
      %p247 = scmp.lt.s32.totalorder %s15, 1
      %s248 = scalar_select %p247, %s15, 1
      %s249 = smul.addr %s248, 8
      %s250 = smul.addr %s249, 2
      %s251 = scalar_lea.vmem %s4, %s250
      %v252 = vld [vmem:[%s243] sm:$0xff]
      %v253 = vld [vmem:[%s243 + $0x8] sm:$0xff]
      %v254 = vld [vmem:[%s243 + $0x10] sm:$0xff]
      %v255 = vld [vmem:[%s243 + $0x18] sm:$0xff]
      %v256 = vld [vmem:[%s246] sm:$0x1]
      %v257 = vld [vmem:[%s233] sm:$0x3]
      %v258 = vld [vmem:[%s238] sm:$0x3]
      %v260 = vlaneseq
      %v261 = vshrl.u32 %v260, 7
      %v262 = vsub.s32 0, %v261
      %v263 = vrot.slane %v256, %v262
      %vm265 = vcmask 261120
      %v267 = vsel %vm265, 0.0, 0
      %269 = vmatprep.subr.mxu0 0.0
      %270 = vmatpush1.msra.mxu0 0.0
      %271 = vmatprep.subr.mxu0 0.0
      %272 = vmatpush1.msra.mxu0 0.0
      %273 = vmatprep.subr.mxu0 0.0
      %274 = vmatpush1.msra.mxu0 0.0
      %275 = vmatprep.subr.mxu0 0.0
      %276 = vmatpush1.msra.mxu0 0.0
      %277 = vmatprep.subr.mxu0 0.0
      %278 = vmatpush1.msra.mxu0 0.0
      %279 = vmatprep.subr.mxu0 0.0
      %280 = vmatpush1.msra.mxu0 0.0
      %281 = vmatprep.subr.mxu0 0.0
      %282 = vmatpush1.msra.mxu0 0.0
      %283 = vmatprep.subr.mxu0 0.0
      %284 = vmatpush1.msra.mxu0 0.0
      %285 = vmatprep.subr.mxu0 0.0
      %286 = vmatpush1.msra.mxu0 0.0
      %287 = vmatprep.subr.mxu0 0.0
      %288 = vmatpush1.msra.mxu0 0.0
      %289 = vmatprep.subr.mxu0 0.0
      %290 = vmatpush1.msra.mxu0 0.0
      %291 = vmatprep.subr.mxu0 0.0
      %292 = vmatpush1.msra.mxu0 0.0
      %293 = vmatprep.subr.mxu0 0.0
      %294 = vmatpush1.msra.mxu0 %v255
      %295 = vmatprep.subr.mxu0 0.0
      %296 = vmatpush1.msra.mxu0 %v254
      %297 = vmatprep.subr.mxu0 0.0
      %298 = vmatpush1.msra.mxu0 %v253
      %299 = vmatprep.subr.mxu0 0.0
      %300 = vmatpush1.msra.mxu0 %v252
      %301 = vmatprep.subr.mxu0 0.0
      %302 = vmatpush2.msra.mxu0 0.0
      %303 = vmatprep.subr.mxu0 0.0
      %304 = vmatpush2.msra.mxu0 0.0
      %305 = vmatprep.subr.mxu0 0.0
      %306 = vmatpush2.msra.mxu0 0.0
      %307 = vmatprep.subr.mxu0 0.0
      %308 = vmatpush2.msra.mxu0 0.0
      %309 = vmatprep.subr.mxu0 0.0
      %310 = vmatpush2.msra.mxu0 0.0
      %311 = vmatprep.subr.mxu0 0.0
      %312 = vmatpush2.msra.mxu0 0.0
      %313 = vmatprep.subr.mxu0 0.0
      %314 = vmatpush2.msra.mxu0 0.0
      %315 = vmatprep.subr.mxu0 0.0
      %316 = vmatpush2.msra.mxu0 0.0
      %317 = vmatprep.subr.mxu0 0.0
      %318 = vmatpush2.msra.mxu0 0.0
      %319 = vmatprep.subr.mxu0 0.0
      %320 = vmatpush2.msra.mxu0 0.0
      %321 = vmatprep.subr.mxu0 0.0
      %322 = vmatpush2.msra.mxu0 0.0
      %323 = vmatprep.subr.mxu0 0.0
      %324 = vmatpush2.msra.mxu0 0.0
      %325 = vmatprep.subr.mxu0 0.0
      %326 = vmatpush2.msra.mxu0 0.0
      %327 = vmatprep.subr.mxu0 0.0
      %328 = vmatpush2.msra.mxu0 0.0
      %329 = vmatprep.subr.mxu0 0.0
      %330 = vmatpush2.msra.mxu0 0.0
      %331 = vmatprep.subr.mxu0 0.0
      %332 = vmatpush2.msra.mxu0 0.0
      %333 = vmatprep.mubr.f32.mxu0 0.0
      %334 = vmatmul.mubr.f32.gmra.mxu0 %v267
      %v335 = vpop.f32.mrf.mxu0
      %v336 = vadd.f32 %v263, %v335
      %v337 = vpop.f32.mrf.mxu0
      %338 = vdwg.mxu0
      %v339 = vadd.f32 %v257, %v336
      %v340 = vxor.u32 %v339, 2147483648
      %v341 = vmul.f32 %v340, 1.442695
      %v342 = vpow.pop %v341
      %v343 = vadd.f32 %v342, 1.0
      %v344 = vrcp.pop %v343
      %v345 = vmul.f32 1.0, %v344
      %347 = vrot.lane.b32.xlu0 %v336, 64
      %v348 = vpop.permute.xlu0 %347
      %v350 = vmul.f32 %v345, %v348
      %352 = vrot.lane.b32.xlu0 %v350, 64
      %v353 = vpop.permute.xlu0 %352
      %v355 = vadd.f32 %v257, %v353
      %v356 = vtanh.pop %v355
      %v357 = vsub.f32 1.0, %v345
      %359 = vrot.lane.b32.xlu0 %v356, 96
      %v360 = vpop.permute.xlu0 %359
      %v362 = vmul.f32 %v357, %v360
      %v363 = vmul.f32 %v345, 0.0
      %v364 = vadd.f32 %v362, %v363
      %366 = vset.pattern.permute.xlu0 0
      %367 = vperm.xlu0 %366, %v258
      %v368 = vpop.permute.xlu0 %367
      %v370 = vmul.f32 %v368, %v364
      %v371 = vsub.f32 1.0, %v258
      %373 = vset.pattern.permute.xlu0 0
      %374 = vperm.xlu0 %373, %v371
      %v375 = vpop.permute.xlu0 %374
      %v377 = vmul.f32 %v375, 0.0
      %v378 = vadd.f32 %v370, %v377
      %v379 = vmul.f32 %v368, %v378
      %381 = vrot.lane.b32.xlu0 %v379, 96
      %v382 = vpop.permute.xlu0 %381
      %vm384 = vcmask 254976
      %385 = vst.msk [vmem:[%s251] sm:$0x3] %vm384, %v382
      %s386 = scalar_lea.vmem %s233, 2
      %v387 = vld [vmem:[%s386] sm:$0x3]
      %s388 = scalar_lea.vmem %s238, 2
      %v389 = vld [vmem:[%s388] sm:$0x3]
      %391 = vrot.lane.b32.xlu0 %v378, 96
      %v392 = vpop.permute.xlu0 %391
      %v393 = vsel %vm265, %v392, 0
      %395 = vmatprep.subr.mxu0 0.0
      %396 = vmatpush1.msra.mxu0 0.0
      %397 = vmatprep.subr.mxu0 0.0
      %398 = vmatpush1.msra.mxu0 0.0
      %399 = vmatprep.subr.mxu0 0.0
      %400 = vmatpush1.msra.mxu0 0.0
      %401 = vmatprep.subr.mxu0 0.0
      %402 = vmatpush1.msra.mxu0 0.0
      %403 = vmatprep.subr.mxu0 0.0
      %404 = vmatpush1.msra.mxu0 0.0
      %405 = vmatprep.subr.mxu0 0.0
      %406 = vmatpush1.msra.mxu0 0.0
      %407 = vmatprep.subr.mxu0 0.0
      %408 = vmatpush1.msra.mxu0 0.0
      %409 = vmatprep.subr.mxu0 0.0
      %410 = vmatpush1.msra.mxu0 0.0
      %411 = vmatprep.subr.mxu0 0.0
      %412 = vmatpush1.msra.mxu0 0.0
      %413 = vmatprep.subr.mxu0 0.0
      %414 = vmatpush1.msra.mxu0 0.0
      %415 = vmatprep.subr.mxu0 0.0
      %416 = vmatpush1.msra.mxu0 0.0
      %417 = vmatprep.subr.mxu0 0.0
      %418 = vmatpush1.msra.mxu0 0.0
      %419 = vmatprep.subr.mxu0 0.0
      %420 = vmatpush1.msra.mxu0 %v255
      %421 = vmatprep.subr.mxu0 0.0
      %422 = vmatpush1.msra.mxu0 %v254
      %423 = vmatprep.subr.mxu0 0.0
      %424 = vmatpush1.msra.mxu0 %v253
      %425 = vmatprep.subr.mxu0 0.0
      %426 = vmatpush1.msra.mxu0 %v252
      %427 = vmatprep.subr.mxu0 0.0
      %428 = vmatpush2.msra.mxu0 0.0
      %429 = vmatprep.subr.mxu0 0.0
      %430 = vmatpush2.msra.mxu0 0.0
      %431 = vmatprep.subr.mxu0 0.0
      %432 = vmatpush2.msra.mxu0 0.0
      %433 = vmatprep.subr.mxu0 0.0
      %434 = vmatpush2.msra.mxu0 0.0
      %435 = vmatprep.subr.mxu0 0.0
      %436 = vmatpush2.msra.mxu0 0.0
      %437 = vmatprep.subr.mxu0 0.0
      %438 = vmatpush2.msra.mxu0 0.0
      %439 = vmatprep.subr.mxu0 0.0
      %440 = vmatpush2.msra.mxu0 0.0
      %441 = vmatprep.subr.mxu0 0.0
      %442 = vmatpush2.msra.mxu0 0.0
      %443 = vmatprep.subr.mxu0 0.0
      %444 = vmatpush2.msra.mxu0 0.0
      %445 = vmatprep.subr.mxu0 0.0
      %446 = vmatpush2.msra.mxu0 0.0
      %447 = vmatprep.subr.mxu0 0.0
      %448 = vmatpush2.msra.mxu0 0.0
      %449 = vmatprep.subr.mxu0 0.0
      %450 = vmatpush2.msra.mxu0 0.0
      %451 = vmatprep.subr.mxu0 0.0
      %452 = vmatpush2.msra.mxu0 0.0
      %453 = vmatprep.subr.mxu0 0.0
      %454 = vmatpush2.msra.mxu0 0.0
      %455 = vmatprep.subr.mxu0 0.0
      %456 = vmatpush2.msra.mxu0 0.0
      %457 = vmatprep.subr.mxu0 0.0
      %458 = vmatpush2.msra.mxu0 0.0
      %459 = vmatprep.mubr.f32.mxu0 0.0
      %460 = vmatmul.mubr.f32.gmra.mxu0 %v393
      %v461 = vpop.f32.mrf.mxu0
      %v462 = vadd.f32 %v263, %v461
      %v463 = vpop.f32.mrf.mxu0
      %464 = vdwg.mxu0
      %v465 = vadd.f32 %v387, %v462
      %v466 = vxor.u32 %v465, 2147483648
      %v467 = vmul.f32 %v466, 1.442695
      %v468 = vpow.pop %v467
      %v469 = vadd.f32 %v468, 1.0
      %v470 = vrcp.pop %v469
      %v471 = vmul.f32 1.0, %v470
      %473 = vrot.lane.b32.xlu0 %v462, 64
      %v474 = vpop.permute.xlu0 %473
      %v476 = vmul.f32 %v471, %v474
      %478 = vrot.lane.b32.xlu0 %v476, 64
      %v479 = vpop.permute.xlu0 %478
      %v481 = vadd.f32 %v387, %v479
      %v482 = vtanh.pop %v481
      %v483 = vsub.f32 1.0, %v471
      %485 = vrot.lane.b32.xlu0 %v482, 96
      %v486 = vpop.permute.xlu0 %485
      %v488 = vmul.f32 %v483, %v486
      %v489 = vmul.f32 %v471, %v378
      %v490 = vadd.f32 %v488, %v489
      %492 = vset.pattern.permute.xlu0 0
      %493 = vperm.xlu0 %492, %v389
      %v494 = vpop.permute.xlu0 %493
      %v496 = vmul.f32 %v494, %v490
      %v497 = vsub.f32 1.0, %v389
      %499 = vset.pattern.permute.xlu0 0
      %500 = vperm.xlu0 %499, %v497
      %v501 = vpop.permute.xlu0 %500
      %v503 = vmul.f32 %v501, %v378
      %v504 = vadd.f32 %v496, %v503
      %v505 = vmul.f32 %v494, %v504
      %507 = vrot.lane.b32.xlu0 %v505, 96
      %v508 = vpop.permute.xlu0 %507
      %s510 = scalar_lea.vmem %s251, 2
      %511 = vst.msk [vmem:[%s510] sm:$0x3] %vm384, %v508
      %s512 = scalar_lea.vmem %s233, 4
      %v513 = vld [vmem:[%s512] sm:$0x3]
      %s514 = scalar_lea.vmem %s238, 4
      %v515 = vld [vmem:[%s514] sm:$0x3]
      %517 = vrot.lane.b32.xlu0 %v504, 96
      %v518 = vpop.permute.xlu0 %517
      %v519 = vsel %vm265, %v518, 0
      %521 = vmatprep.subr.mxu0 0.0
      %522 = vmatpush1.msra.mxu0 0.0
      %523 = vmatprep.subr.mxu0 0.0
      %524 = vmatpush1.msra.mxu0 0.0
      %525 = vmatprep.subr.mxu0 0.0
      %526 = vmatpush1.msra.mxu0 0.0
      %527 = vmatprep.subr.mxu0 0.0
      %528 = vmatpush1.msra.mxu0 0.0
      %529 = vmatprep.subr.mxu0 0.0
      %530 = vmatpush1.msra.mxu0 0.0
      %531 = vmatprep.subr.mxu0 0.0
      %532 = vmatpush1.msra.mxu0 0.0
      %533 = vmatprep.subr.mxu0 0.0
      %534 = vmatpush1.msra.mxu0 0.0
      %535 = vmatprep.subr.mxu0 0.0
      %536 = vmatpush1.msra.mxu0 0.0
      %537 = vmatprep.subr.mxu0 0.0
      %538 = vmatpush1.msra.mxu0 0.0
      %539 = vmatprep.subr.mxu0 0.0
      %540 = vmatpush1.msra.mxu0 0.0
      %541 = vmatprep.subr.mxu0 0.0
      %542 = vmatpush1.msra.mxu0 0.0
      %543 = vmatprep.subr.mxu0 0.0
      %544 = vmatpush1.msra.mxu0 0.0
      %545 = vmatprep.subr.mxu0 0.0
      %546 = vmatpush1.msra.mxu0 %v255
      %547 = vmatprep.subr.mxu0 0.0
      %548 = vmatpush1.msra.mxu0 %v254
      %549 = vmatprep.subr.mxu0 0.0
      %550 = vmatpush1.msra.mxu0 %v253
      %551 = vmatprep.subr.mxu0 0.0
      %552 = vmatpush1.msra.mxu0 %v252
      %553 = vmatprep.subr.mxu0 0.0
      %554 = vmatpush2.msra.mxu0 0.0
      %555 = vmatprep.subr.mxu0 0.0
      %556 = vmatpush2.msra.mxu0 0.0
      %557 = vmatprep.subr.mxu0 0.0
      %558 = vmatpush2.msra.mxu0 0.0
      %559 = vmatprep.subr.mxu0 0.0
      %560 = vmatpush2.msra.mxu0 0.0
      %561 = vmatprep.subr.mxu0 0.0
      %562 = vmatpush2.msra.mxu0 0.0
      %563 = vmatprep.subr.mxu0 0.0
      %564 = vmatpush2.msra.mxu0 0.0
      %565 = vmatprep.subr.mxu0 0.0
      %566 = vmatpush2.msra.mxu0 0.0
      %567 = vmatprep.subr.mxu0 0.0
      %568 = vmatpush2.msra.mxu0 0.0
      %569 = vmatprep.subr.mxu0 0.0
      %570 = vmatpush2.msra.mxu0 0.0
      %571 = vmatprep.subr.mxu0 0.0
      %572 = vmatpush2.msra.mxu0 0.0
      %573 = vmatprep.subr.mxu0 0.0
      %574 = vmatpush2.msra.mxu0 0.0
      %575 = vmatprep.subr.mxu0 0.0
      %576 = vmatpush2.msra.mxu0 0.0
      %577 = vmatprep.subr.mxu0 0.0
      %578 = vmatpush2.msra.mxu0 0.0
      %579 = vmatprep.subr.mxu0 0.0
      %580 = vmatpush2.msra.mxu0 0.0
      %581 = vmatprep.subr.mxu0 0.0
      %582 = vmatpush2.msra.mxu0 0.0
      %583 = vmatprep.subr.mxu0 0.0
      %584 = vmatpush2.msra.mxu0 0.0
      %585 = vmatprep.mubr.f32.mxu0 0.0
      %586 = vmatmul.mubr.f32.gmra.mxu0 %v519
      %v587 = vpop.f32.mrf.mxu0
      %v588 = vadd.f32 %v263, %v587
      %v589 = vpop.f32.mrf.mxu0
      %590 = vdwg.mxu0
      %v591 = vadd.f32 %v513, %v588
      %v592 = vxor.u32 %v591, 2147483648
      %v593 = vmul.f32 %v592, 1.442695
      %v594 = vpow.pop %v593
      %v595 = vadd.f32 %v594, 1.0
      %v596 = vrcp.pop %v595
      %v597 = vmul.f32 1.0, %v596
      %599 = vrot.lane.b32.xlu0 %v588, 64
      %v600 = vpop.permute.xlu0 %599
      %v602 = vmul.f32 %v597, %v600
      %604 = vrot.lane.b32.xlu0 %v602, 64
      %v605 = vpop.permute.xlu0 %604
      %v607 = vadd.f32 %v513, %v605
      %v608 = vtanh.pop %v607
      %v609 = vsub.f32 1.0, %v597
      %611 = vrot.lane.b32.xlu0 %v608, 96
      %v612 = vpop.permute.xlu0 %611
      %v614 = vmul.f32 %v609, %v612
      %v615 = vmul.f32 %v597, %v504
      %v616 = vadd.f32 %v614, %v615
      %618 = vset.pattern.permute.xlu0 0
      %619 = vperm.xlu0 %618, %v515
      %v620 = vpop.permute.xlu0 %619
      %v622 = vmul.f32 %v620, %v616
      %v623 = vsub.f32 1.0, %v515
      %625 = vset.pattern.permute.xlu0 0
      %626 = vperm.xlu0 %625, %v623
      %v627 = vpop.permute.xlu0 %626
      %v629 = vmul.f32 %v627, %v504
      %v630 = vadd.f32 %v622, %v629
      %v631 = vmul.f32 %v620, %v630
      %633 = vrot.lane.b32.xlu0 %v631, 96
      %v634 = vpop.permute.xlu0 %633
      %s636 = scalar_lea.vmem %s251, 4
      %637 = vst.msk [vmem:[%s636] sm:$0x3] %vm384, %v634
      %s638 = scalar_lea.vmem %s233, 6
      %v639 = vld [vmem:[%s638] sm:$0x3]
      %s640 = scalar_lea.vmem %s238, 6
      %v641 = vld [vmem:[%s640] sm:$0x3]
      %643 = vrot.lane.b32.xlu0 %v630, 96
      %v644 = vpop.permute.xlu0 %643
      %v645 = vsel %vm265, %v644, 0
      %647 = vmatprep.subr.mxu0 0.0
      %648 = vmatpush1.msra.mxu0 0.0
      %649 = vmatprep.subr.mxu0 0.0
      %650 = vmatpush1.msra.mxu0 0.0
      %651 = vmatprep.subr.mxu0 0.0
      %652 = vmatpush1.msra.mxu0 0.0
      %653 = vmatprep.subr.mxu0 0.0
      %654 = vmatpush1.msra.mxu0 0.0
      %655 = vmatprep.subr.mxu0 0.0
      %656 = vmatpush1.msra.mxu0 0.0
      %657 = vmatprep.subr.mxu0 0.0
      %658 = vmatpush1.msra.mxu0 0.0
      %659 = vmatprep.subr.mxu0 0.0
      %660 = vmatpush1.msra.mxu0 0.0
      %661 = vmatprep.subr.mxu0 0.0
      %662 = vmatpush1.msra.mxu0 0.0
      %663 = vmatprep.subr.mxu0 0.0
      %664 = vmatpush1.msra.mxu0 0.0
      %665 = vmatprep.subr.mxu0 0.0
      %666 = vmatpush1.msra.mxu0 0.0
      %667 = vmatprep.subr.mxu0 0.0
      %668 = vmatpush1.msra.mxu0 0.0
      %669 = vmatprep.subr.mxu0 0.0
      %670 = vmatpush1.msra.mxu0 0.0
      %671 = vmatprep.subr.mxu0 0.0
      %672 = vmatpush1.msra.mxu0 %v255
      %673 = vmatprep.subr.mxu0 0.0
      %674 = vmatpush1.msra.mxu0 %v254
      %675 = vmatprep.subr.mxu0 0.0
      %676 = vmatpush1.msra.mxu0 %v253
      %677 = vmatprep.subr.mxu0 0.0
      %678 = vmatpush1.msra.mxu0 %v252
      %679 = vmatprep.subr.mxu0 0.0
      %680 = vmatpush2.msra.mxu0 0.0
      %681 = vmatprep.subr.mxu0 0.0
      %682 = vmatpush2.msra.mxu0 0.0
      %683 = vmatprep.subr.mxu0 0.0
      %684 = vmatpush2.msra.mxu0 0.0
      %685 = vmatprep.subr.mxu0 0.0
      %686 = vmatpush2.msra.mxu0 0.0
      %687 = vmatprep.subr.mxu0 0.0
      %688 = vmatpush2.msra.mxu0 0.0
      %689 = vmatprep.subr.mxu0 0.0
      %690 = vmatpush2.msra.mxu0 0.0
      %691 = vmatprep.subr.mxu0 0.0
      %692 = vmatpush2.msra.mxu0 0.0
      %693 = vmatprep.subr.mxu0 0.0
      %694 = vmatpush2.msra.mxu0 0.0
      %695 = vmatprep.subr.mxu0 0.0
      %696 = vmatpush2.msra.mxu0 0.0
      %697 = vmatprep.subr.mxu0 0.0
      %698 = vmatpush2.msra.mxu0 0.0
      %699 = vmatprep.subr.mxu0 0.0
      %700 = vmatpush2.msra.mxu0 0.0
      %701 = vmatprep.subr.mxu0 0.0
      %702 = vmatpush2.msra.mxu0 0.0
      %703 = vmatprep.subr.mxu0 0.0
      %704 = vmatpush2.msra.mxu0 0.0
      %705 = vmatprep.subr.mxu0 0.0
      %706 = vmatpush2.msra.mxu0 0.0
      %707 = vmatprep.subr.mxu0 0.0
      %708 = vmatpush2.msra.mxu0 0.0
      %709 = vmatprep.subr.mxu0 0.0
      %710 = vmatpush2.msra.mxu0 0.0
      %711 = vmatprep.mubr.f32.mxu0 0.0
      %712 = vmatmul.mubr.f32.gmra.mxu0 %v645
      %v713 = vpop.f32.mrf.mxu0
      %v714 = vadd.f32 %v263, %v713
      %v715 = vpop.f32.mrf.mxu0
      %716 = vdwg.mxu0
      %v717 = vadd.f32 %v639, %v714
      %v718 = vxor.u32 %v717, 2147483648
      %v719 = vmul.f32 %v718, 1.442695
      %v720 = vpow.pop %v719
      %v721 = vadd.f32 %v720, 1.0
      %v722 = vrcp.pop %v721
      %v723 = vmul.f32 1.0, %v722
      %725 = vrot.lane.b32.xlu0 %v714, 64
      %v726 = vpop.permute.xlu0 %725
      %v728 = vmul.f32 %v723, %v726
      %730 = vrot.lane.b32.xlu0 %v728, 64
      %v731 = vpop.permute.xlu0 %730
      %v733 = vadd.f32 %v639, %v731
      %v734 = vtanh.pop %v733
      %v735 = vsub.f32 1.0, %v723
      %737 = vrot.lane.b32.xlu0 %v734, 96
      %v738 = vpop.permute.xlu0 %737
      %v740 = vmul.f32 %v735, %v738
      %v741 = vmul.f32 %v723, %v630
      %v742 = vadd.f32 %v740, %v741
      %744 = vset.pattern.permute.xlu0 0
      %745 = vperm.xlu0 %744, %v641
      %v746 = vpop.permute.xlu0 %745
      %v748 = vmul.f32 %v746, %v742
      %v749 = vsub.f32 1.0, %v641
      %751 = vset.pattern.permute.xlu0 0
      %752 = vperm.xlu0 %751, %v749
      %v753 = vpop.permute.xlu0 %752
      %v755 = vmul.f32 %v753, %v630
      %v756 = vadd.f32 %v748, %v755
      %v757 = vmul.f32 %v746, %v756
      %759 = vrot.lane.b32.xlu0 %v757, 96
      %v760 = vpop.permute.xlu0 %759
      %s762 = scalar_lea.vmem %s251, 6
      %763 = vst.msk [vmem:[%s762] sm:$0x3] %vm384, %v760
      %s764 = scalar_lea.vmem %s233, 8
      %v765 = vld [vmem:[%s764] sm:$0x3]
      %s766 = scalar_lea.vmem %s238, 8
      %v767 = vld [vmem:[%s766] sm:$0x3]
      %769 = vrot.lane.b32.xlu0 %v756, 96
      %v770 = vpop.permute.xlu0 %769
      %v771 = vsel %vm265, %v770, 0
      %773 = vmatprep.subr.mxu0 0.0
      %774 = vmatpush1.msra.mxu0 0.0
      %775 = vmatprep.subr.mxu0 0.0
      %776 = vmatpush1.msra.mxu0 0.0
      %777 = vmatprep.subr.mxu0 0.0
      %778 = vmatpush1.msra.mxu0 0.0
      %779 = vmatprep.subr.mxu0 0.0
      %780 = vmatpush1.msra.mxu0 0.0
      %781 = vmatprep.subr.mxu0 0.0
      %782 = vmatpush1.msra.mxu0 0.0
      %783 = vmatprep.subr.mxu0 0.0
      %784 = vmatpush1.msra.mxu0 0.0
      %785 = vmatprep.subr.mxu0 0.0
      %786 = vmatpush1.msra.mxu0 0.0
      %787 = vmatprep.subr.mxu0 0.0
      %788 = vmatpush1.msra.mxu0 0.0
      %789 = vmatprep.subr.mxu0 0.0
      %790 = vmatpush1.msra.mxu0 0.0
      %791 = vmatprep.subr.mxu0 0.0
      %792 = vmatpush1.msra.mxu0 0.0
      %793 = vmatprep.subr.mxu0 0.0
      %794 = vmatpush1.msra.mxu0 0.0
      %795 = vmatprep.subr.mxu0 0.0
      %796 = vmatpush1.msra.mxu0 0.0
      %797 = vmatprep.subr.mxu0 0.0
      %798 = vmatpush1.msra.mxu0 %v255
      %799 = vmatprep.subr.mxu0 0.0
      %800 = vmatpush1.msra.mxu0 %v254
      %801 = vmatprep.subr.mxu0 0.0
      %802 = vmatpush1.msra.mxu0 %v253
      %803 = vmatprep.subr.mxu0 0.0
      %804 = vmatpush1.msra.mxu0 %v252
      %805 = vmatprep.subr.mxu0 0.0
      %806 = vmatpush2.msra.mxu0 0.0
      %807 = vmatprep.subr.mxu0 0.0
      %808 = vmatpush2.msra.mxu0 0.0
      %809 = vmatprep.subr.mxu0 0.0
      %810 = vmatpush2.msra.mxu0 0.0
      %811 = vmatprep.subr.mxu0 0.0
      %812 = vmatpush2.msra.mxu0 0.0
      %813 = vmatprep.subr.mxu0 0.0
      %814 = vmatpush2.msra.mxu0 0.0
      %815 = vmatprep.subr.mxu0 0.0
      %816 = vmatpush2.msra.mxu0 0.0
      %817 = vmatprep.subr.mxu0 0.0
      %818 = vmatpush2.msra.mxu0 0.0
      %819 = vmatprep.subr.mxu0 0.0
      %820 = vmatpush2.msra.mxu0 0.0
      %821 = vmatprep.subr.mxu0 0.0
      %822 = vmatpush2.msra.mxu0 0.0
      %823 = vmatprep.subr.mxu0 0.0
      %824 = vmatpush2.msra.mxu0 0.0
      %825 = vmatprep.subr.mxu0 0.0
      %826 = vmatpush2.msra.mxu0 0.0
      %827 = vmatprep.subr.mxu0 0.0
      %828 = vmatpush2.msra.mxu0 0.0
      %829 = vmatprep.subr.mxu0 0.0
      %830 = vmatpush2.msra.mxu0 0.0
      %831 = vmatprep.subr.mxu0 0.0
      %832 = vmatpush2.msra.mxu0 0.0
      %833 = vmatprep.subr.mxu0 0.0
      %834 = vmatpush2.msra.mxu0 0.0
      %835 = vmatprep.subr.mxu0 0.0
      %836 = vmatpush2.msra.mxu0 0.0
      %837 = vmatprep.mubr.f32.mxu0 0.0
      %838 = vmatmul.mubr.f32.gmra.mxu0 %v771
      %v839 = vpop.f32.mrf.mxu0
      %v840 = vadd.f32 %v263, %v839
      %v841 = vpop.f32.mrf.mxu0
      %842 = vdwg.mxu0
      %v843 = vadd.f32 %v765, %v840
      %v844 = vxor.u32 %v843, 2147483648
      %v845 = vmul.f32 %v844, 1.442695
      %v846 = vpow.pop %v845
      %v847 = vadd.f32 %v846, 1.0
      %v848 = vrcp.pop %v847
      %v849 = vmul.f32 1.0, %v848
      %851 = vrot.lane.b32.xlu0 %v840, 64
      %v852 = vpop.permute.xlu0 %851
      %v854 = vmul.f32 %v849, %v852
      %856 = vrot.lane.b32.xlu0 %v854, 64
      %v857 = vpop.permute.xlu0 %856
      %v859 = vadd.f32 %v765, %v857
      %v860 = vtanh.pop %v859
      %v861 = vsub.f32 1.0, %v849
      %863 = vrot.lane.b32.xlu0 %v860, 96
      %v864 = vpop.permute.xlu0 %863
      %v866 = vmul.f32 %v861, %v864
      %v867 = vmul.f32 %v849, %v756
      %v868 = vadd.f32 %v866, %v867
      %870 = vset.pattern.permute.xlu0 0
      %871 = vperm.xlu0 %870, %v767
      %v872 = vpop.permute.xlu0 %871
      %v874 = vmul.f32 %v872, %v868
      %v875 = vsub.f32 1.0, %v767
      %877 = vset.pattern.permute.xlu0 0
      %878 = vperm.xlu0 %877, %v875
      %v879 = vpop.permute.xlu0 %878
      %v881 = vmul.f32 %v879, %v756
      %v882 = vadd.f32 %v874, %v881
      %v883 = vmul.f32 %v872, %v882
      %885 = vrot.lane.b32.xlu0 %v883, 96
      %v886 = vpop.permute.xlu0 %885
      %s888 = scalar_lea.vmem %s251, 8
      %889 = vst.msk [vmem:[%s888] sm:$0x3] %vm384, %v886
      %s890 = scalar_lea.vmem %s233, 10
      %v891 = vld [vmem:[%s890] sm:$0x3]
      %s892 = scalar_lea.vmem %s238, 10
      %v893 = vld [vmem:[%s892] sm:$0x3]
      %895 = vrot.lane.b32.xlu0 %v882, 96
      %v896 = vpop.permute.xlu0 %895
      %v897 = vsel %vm265, %v896, 0
      %899 = vmatprep.subr.mxu0 0.0
      %900 = vmatpush1.msra.mxu0 0.0
      %901 = vmatprep.subr.mxu0 0.0
      %902 = vmatpush1.msra.mxu0 0.0
      %903 = vmatprep.subr.mxu0 0.0
      %904 = vmatpush1.msra.mxu0 0.0
      %905 = vmatprep.subr.mxu0 0.0
      %906 = vmatpush1.msra.mxu0 0.0
      %907 = vmatprep.subr.mxu0 0.0
      %908 = vmatpush1.msra.mxu0 0.0
      %909 = vmatprep.subr.mxu0 0.0
      %910 = vmatpush1.msra.mxu0 0.0
      %911 = vmatprep.subr.mxu0 0.0
      %912 = vmatpush1.msra.mxu0 0.0
      %913 = vmatprep.subr.mxu0 0.0
      %914 = vmatpush1.msra.mxu0 0.0
      %915 = vmatprep.subr.mxu0 0.0
      %916 = vmatpush1.msra.mxu0 0.0
      %917 = vmatprep.subr.mxu0 0.0
      %918 = vmatpush1.msra.mxu0 0.0
      %919 = vmatprep.subr.mxu0 0.0
      %920 = vmatpush1.msra.mxu0 0.0
      %921 = vmatprep.subr.mxu0 0.0
      %922 = vmatpush1.msra.mxu0 0.0
      %923 = vmatprep.subr.mxu0 0.0
      %924 = vmatpush1.msra.mxu0 %v255
      %925 = vmatprep.subr.mxu0 0.0
      %926 = vmatpush1.msra.mxu0 %v254
      %927 = vmatprep.subr.mxu0 0.0
      %928 = vmatpush1.msra.mxu0 %v253
      %929 = vmatprep.subr.mxu0 0.0
      %930 = vmatpush1.msra.mxu0 %v252
      %931 = vmatprep.subr.mxu0 0.0
      %932 = vmatpush2.msra.mxu0 0.0
      %933 = vmatprep.subr.mxu0 0.0
      %934 = vmatpush2.msra.mxu0 0.0
      %935 = vmatprep.subr.mxu0 0.0
      %936 = vmatpush2.msra.mxu0 0.0
      %937 = vmatprep.subr.mxu0 0.0
      %938 = vmatpush2.msra.mxu0 0.0
      %939 = vmatprep.subr.mxu0 0.0
      %940 = vmatpush2.msra.mxu0 0.0
      %941 = vmatprep.subr.mxu0 0.0
      %942 = vmatpush2.msra.mxu0 0.0
      %943 = vmatprep.subr.mxu0 0.0
      %944 = vmatpush2.msra.mxu0 0.0
      %945 = vmatprep.subr.mxu0 0.0
      %946 = vmatpush2.msra.mxu0 0.0
      %947 = vmatprep.subr.mxu0 0.0
      %948 = vmatpush2.msra.mxu0 0.0
      %949 = vmatprep.subr.mxu0 0.0
      %950 = vmatpush2.msra.mxu0 0.0
      %951 = vmatprep.subr.mxu0 0.0
      %952 = vmatpush2.msra.mxu0 0.0
      %953 = vmatprep.subr.mxu0 0.0
      %954 = vmatpush2.msra.mxu0 0.0
      %955 = vmatprep.subr.mxu0 0.0
      %956 = vmatpush2.msra.mxu0 0.0
      %957 = vmatprep.subr.mxu0 0.0
      %958 = vmatpush2.msra.mxu0 0.0
      %959 = vmatprep.subr.mxu0 0.0
      %960 = vmatpush2.msra.mxu0 0.0
      %961 = vmatprep.subr.mxu0 0.0
      %962 = vmatpush2.msra.mxu0 0.0
      %963 = vmatprep.mubr.f32.mxu0 0.0
      %964 = vmatmul.mubr.f32.gmra.mxu0 %v897
      %v965 = vpop.f32.mrf.mxu0
      %v966 = vadd.f32 %v263, %v965
      %v967 = vpop.f32.mrf.mxu0
      %968 = vdwg.mxu0
      %v969 = vadd.f32 %v891, %v966
      %v970 = vxor.u32 %v969, 2147483648
      %v971 = vmul.f32 %v970, 1.442695
      %v972 = vpow.pop %v971
      %v973 = vadd.f32 %v972, 1.0
      %v974 = vrcp.pop %v973
      %v975 = vmul.f32 1.0, %v974
      %977 = vrot.lane.b32.xlu0 %v966, 64
      %v978 = vpop.permute.xlu0 %977
      %v980 = vmul.f32 %v975, %v978
      %982 = vrot.lane.b32.xlu0 %v980, 64
      %v983 = vpop.permute.xlu0 %982
      %v985 = vadd.f32 %v891, %v983
      %v986 = vtanh.pop %v985
      %v987 = vsub.f32 1.0, %v975
      %989 = vrot.lane.b32.xlu0 %v986, 96
      %v990 = vpop.permute.xlu0 %989
      %v992 = vmul.f32 %v987, %v990
      %v993 = vmul.f32 %v975, %v882
      %v994 = vadd.f32 %v992, %v993
      %996 = vset.pattern.permute.xlu0 0
      %997 = vperm.xlu0 %996, %v893
      %v998 = vpop.permute.xlu0 %997
      %v1000 = vmul.f32 %v998, %v994
      %v1001 = vsub.f32 1.0, %v893
      %1003 = vset.pattern.permute.xlu0 0
      %1004 = vperm.xlu0 %1003, %v1001
      %v1005 = vpop.permute.xlu0 %1004
      %v1007 = vmul.f32 %v1005, %v882
      %v1008 = vadd.f32 %v1000, %v1007
      %v1009 = vmul.f32 %v998, %v1008
      %1011 = vrot.lane.b32.xlu0 %v1009, 96
      %v1012 = vpop.permute.xlu0 %1011
      %s1014 = scalar_lea.vmem %s251, 10
      %1015 = vst.msk [vmem:[%s1014] sm:$0x3] %vm384, %v1012
      %s1016 = scalar_lea.vmem %s233, 12
      %v1017 = vld [vmem:[%s1016] sm:$0x3]
      %s1018 = scalar_lea.vmem %s238, 12
      %v1019 = vld [vmem:[%s1018] sm:$0x3]
      %1021 = vrot.lane.b32.xlu0 %v1008, 96
      %v1022 = vpop.permute.xlu0 %1021
      %v1023 = vsel %vm265, %v1022, 0
      %1025 = vmatprep.subr.mxu0 0.0
      %1026 = vmatpush1.msra.mxu0 0.0
      %1027 = vmatprep.subr.mxu0 0.0
      %1028 = vmatpush1.msra.mxu0 0.0
      %1029 = vmatprep.subr.mxu0 0.0
      %1030 = vmatpush1.msra.mxu0 0.0
      %1031 = vmatprep.subr.mxu0 0.0
      %1032 = vmatpush1.msra.mxu0 0.0
      %1033 = vmatprep.subr.mxu0 0.0
      %1034 = vmatpush1.msra.mxu0 0.0
      %1035 = vmatprep.subr.mxu0 0.0
      %1036 = vmatpush1.msra.mxu0 0.0
      %1037 = vmatprep.subr.mxu0 0.0
      %1038 = vmatpush1.msra.mxu0 0.0
      %1039 = vmatprep.subr.mxu0 0.0
      %1040 = vmatpush1.msra.mxu0 0.0
      %1041 = vmatprep.subr.mxu0 0.0
      %1042 = vmatpush1.msra.mxu0 0.0
      %1043 = vmatprep.subr.mxu0 0.0
      %1044 = vmatpush1.msra.mxu0 0.0
      %1045 = vmatprep.subr.mxu0 0.0
      %1046 = vmatpush1.msra.mxu0 0.0
      %1047 = vmatprep.subr.mxu0 0.0
      %1048 = vmatpush1.msra.mxu0 0.0
      %1049 = vmatprep.subr.mxu0 0.0
      %1050 = vmatpush1.msra.mxu0 %v255
      %1051 = vmatprep.subr.mxu0 0.0
      %1052 = vmatpush1.msra.mxu0 %v254
      %1053 = vmatprep.subr.mxu0 0.0
      %1054 = vmatpush1.msra.mxu0 %v253
      %1055 = vmatprep.subr.mxu0 0.0
      %1056 = vmatpush1.msra.mxu0 %v252
      %1057 = vmatprep.subr.mxu0 0.0
      %1058 = vmatpush2.msra.mxu0 0.0
      %1059 = vmatprep.subr.mxu0 0.0
      %1060 = vmatpush2.msra.mxu0 0.0
      %1061 = vmatprep.subr.mxu0 0.0
      %1062 = vmatpush2.msra.mxu0 0.0
      %1063 = vmatprep.subr.mxu0 0.0
      %1064 = vmatpush2.msra.mxu0 0.0
      %1065 = vmatprep.subr.mxu0 0.0
      %1066 = vmatpush2.msra.mxu0 0.0
      %1067 = vmatprep.subr.mxu0 0.0
      %1068 = vmatpush2.msra.mxu0 0.0
      %1069 = vmatprep.subr.mxu0 0.0
      %1070 = vmatpush2.msra.mxu0 0.0
      %1071 = vmatprep.subr.mxu0 0.0
      %1072 = vmatpush2.msra.mxu0 0.0
      %1073 = vmatprep.subr.mxu0 0.0
      %1074 = vmatpush2.msra.mxu0 0.0
      %1075 = vmatprep.subr.mxu0 0.0
      %1076 = vmatpush2.msra.mxu0 0.0
      %1077 = vmatprep.subr.mxu0 0.0
      %1078 = vmatpush2.msra.mxu0 0.0
      %1079 = vmatprep.subr.mxu0 0.0
      %1080 = vmatpush2.msra.mxu0 0.0
      %1081 = vmatprep.subr.mxu0 0.0
      %1082 = vmatpush2.msra.mxu0 0.0
      %1083 = vmatprep.subr.mxu0 0.0
      %1084 = vmatpush2.msra.mxu0 0.0
      %1085 = vmatprep.subr.mxu0 0.0
      %1086 = vmatpush2.msra.mxu0 0.0
      %1087 = vmatprep.subr.mxu0 0.0
      %1088 = vmatpush2.msra.mxu0 0.0
      %1089 = vmatprep.mubr.f32.mxu0 0.0
      %1090 = vmatmul.mubr.f32.gmra.mxu0 %v1023
      %v1091 = vpop.f32.mrf.mxu0
      %v1092 = vadd.f32 %v263, %v1091
      %v1093 = vpop.f32.mrf.mxu0
      %1094 = vdwg.mxu0
      %v1095 = vadd.f32 %v1017, %v1092
      %v1096 = vxor.u32 %v1095, 2147483648
      %v1097 = vmul.f32 %v1096, 1.442695
      %v1098 = vpow.pop %v1097
      %v1099 = vadd.f32 %v1098, 1.0
      %v1100 = vrcp.pop %v1099
      %v1101 = vmul.f32 1.0, %v1100
      %1103 = vrot.lane.b32.xlu0 %v1092, 64
      %v1104 = vpop.permute.xlu0 %1103
      %v1106 = vmul.f32 %v1101, %v1104
      %1108 = vrot.lane.b32.xlu0 %v1106, 64
      %v1109 = vpop.permute.xlu0 %1108
      %v1111 = vadd.f32 %v1017, %v1109
      %v1112 = vtanh.pop %v1111
      %v1113 = vsub.f32 1.0, %v1101
      %1115 = vrot.lane.b32.xlu0 %v1112, 96
      %v1116 = vpop.permute.xlu0 %1115
      %v1118 = vmul.f32 %v1113, %v1116
      %v1119 = vmul.f32 %v1101, %v1008
      %v1120 = vadd.f32 %v1118, %v1119
      %1122 = vset.pattern.permute.xlu0 0
      %1123 = vperm.xlu0 %1122, %v1019
      %v1124 = vpop.permute.xlu0 %1123
      %v1126 = vmul.f32 %v1124, %v1120
      %v1127 = vsub.f32 1.0, %v1019
      %1129 = vset.pattern.permute.xlu0 0
      %1130 = vperm.xlu0 %1129, %v1127
      %v1131 = vpop.permute.xlu0 %1130
      %v1133 = vmul.f32 %v1131, %v1008
      %v1134 = vadd.f32 %v1126, %v1133
      %v1135 = vmul.f32 %v1124, %v1134
      %1137 = vrot.lane.b32.xlu0 %v1135, 96
      %v1138 = vpop.permute.xlu0 %1137
      %s1140 = scalar_lea.vmem %s251, 12
      %1141 = vst.msk [vmem:[%s1140] sm:$0x3] %vm384, %v1138
      %s1142 = scalar_lea.vmem %s233, 14
      %v1143 = vld [vmem:[%s1142] sm:$0x3]
      %s1144 = scalar_lea.vmem %s238, 14
      %v1145 = vld [vmem:[%s1144] sm:$0x3]
      %1147 = vrot.lane.b32.xlu0 %v1134, 96
      %v1148 = vpop.permute.xlu0 %1147
      %v1149 = vsel %vm265, %v1148, 0
      %1151 = vmatprep.subr.mxu0 0.0
      %1152 = vmatpush1.msra.mxu0 0.0
      %1153 = vmatprep.subr.mxu0 0.0
      %1154 = vmatpush1.msra.mxu0 0.0
      %1155 = vmatprep.subr.mxu0 0.0
      %1156 = vmatpush1.msra.mxu0 0.0
      %1157 = vmatprep.subr.mxu0 0.0
      %1158 = vmatpush1.msra.mxu0 0.0
      %1159 = vmatprep.subr.mxu0 0.0
      %1160 = vmatpush1.msra.mxu0 0.0
      %1161 = vmatprep.subr.mxu0 0.0
      %1162 = vmatpush1.msra.mxu0 0.0
      %1163 = vmatprep.subr.mxu0 0.0
      %1164 = vmatpush1.msra.mxu0 0.0
      %1165 = vmatprep.subr.mxu0 0.0
      %1166 = vmatpush1.msra.mxu0 0.0
      %1167 = vmatprep.subr.mxu0 0.0
      %1168 = vmatpush1.msra.mxu0 0.0
      %1169 = vmatprep.subr.mxu0 0.0
      %1170 = vmatpush1.msra.mxu0 0.0
      %1171 = vmatprep.subr.mxu0 0.0
      %1172 = vmatpush1.msra.mxu0 0.0
      %1173 = vmatprep.subr.mxu0 0.0
      %1174 = vmatpush1.msra.mxu0 0.0
      %1175 = vmatprep.subr.mxu0 0.0
      %1176 = vmatpush1.msra.mxu0 %v255
      %1177 = vmatprep.subr.mxu0 0.0
      %1178 = vmatpush1.msra.mxu0 %v254
      %1179 = vmatprep.subr.mxu0 0.0
      %1180 = vmatpush1.msra.mxu0 %v253
      %1181 = vmatprep.subr.mxu0 0.0
      %1182 = vmatpush1.msra.mxu0 %v252
      %1183 = vmatprep.subr.mxu0 0.0
      %1184 = vmatpush2.msra.mxu0 0.0
      %1185 = vmatprep.subr.mxu0 0.0
      %1186 = vmatpush2.msra.mxu0 0.0
      %1187 = vmatprep.subr.mxu0 0.0
      %1188 = vmatpush2.msra.mxu0 0.0
      %1189 = vmatprep.subr.mxu0 0.0
      %1190 = vmatpush2.msra.mxu0 0.0
      %1191 = vmatprep.subr.mxu0 0.0
      %1192 = vmatpush2.msra.mxu0 0.0
      %1193 = vmatprep.subr.mxu0 0.0
      %1194 = vmatpush2.msra.mxu0 0.0
      %1195 = vmatprep.subr.mxu0 0.0
      %1196 = vmatpush2.msra.mxu0 0.0
      %1197 = vmatprep.subr.mxu0 0.0
      %1198 = vmatpush2.msra.mxu0 0.0
      %1199 = vmatprep.subr.mxu0 0.0
      %1200 = vmatpush2.msra.mxu0 0.0
      %1201 = vmatprep.subr.mxu0 0.0
      %1202 = vmatpush2.msra.mxu0 0.0
      %1203 = vmatprep.subr.mxu0 0.0
      %1204 = vmatpush2.msra.mxu0 0.0
      %1205 = vmatprep.subr.mxu0 0.0
      %1206 = vmatpush2.msra.mxu0 0.0
      %1207 = vmatprep.subr.mxu0 0.0
      %1208 = vmatpush2.msra.mxu0 0.0
      %1209 = vmatprep.subr.mxu0 0.0
      %1210 = vmatpush2.msra.mxu0 0.0
      %1211 = vmatprep.subr.mxu0 0.0
      %1212 = vmatpush2.msra.mxu0 0.0
      %1213 = vmatprep.subr.mxu0 0.0
      %1214 = vmatpush2.msra.mxu0 0.0
      %1215 = vmatprep.mubr.f32.mxu0 0.0
      %1216 = vmatmul.mubr.f32.gmra.mxu0 %v1149
      %v1217 = vpop.f32.mrf.mxu0
      %v1218 = vadd.f32 %v263, %v1217
      %v1219 = vpop.f32.mrf.mxu0
      %1220 = vdwg.mxu0
      %v1221 = vadd.f32 %v1143, %v1218
      %v1222 = vxor.u32 %v1221, 2147483648
      %v1223 = vmul.f32 %v1222, 1.442695
      %v1224 = vpow.pop %v1223
      %v1225 = vadd.f32 %v1224, 1.0
      %v1226 = vrcp.pop %v1225
      %v1227 = vmul.f32 1.0, %v1226
      %1229 = vrot.lane.b32.xlu0 %v1218, 64
      %v1230 = vpop.permute.xlu0 %1229
      %v1232 = vmul.f32 %v1227, %v1230
      %1234 = vrot.lane.b32.xlu0 %v1232, 64
      %v1235 = vpop.permute.xlu0 %1234
      %v1237 = vadd.f32 %v1143, %v1235
      %v1238 = vtanh.pop %v1237
      %v1239 = vsub.f32 1.0, %v1227
      %1241 = vrot.lane.b32.xlu0 %v1238, 96
      %v1242 = vpop.permute.xlu0 %1241
      %v1244 = vmul.f32 %v1239, %v1242
      %v1245 = vmul.f32 %v1227, %v1134
      %v1246 = vadd.f32 %v1244, %v1245
      %1248 = vset.pattern.permute.xlu0 0
      %1249 = vperm.xlu0 %1248, %v1145
      %v1250 = vpop.permute.xlu0 %1249
      %v1252 = vmul.f32 %v1250, %v1246
      %v1253 = vsub.f32 1.0, %v1145
      %1255 = vset.pattern.permute.xlu0 0
      %1256 = vperm.xlu0 %1255, %v1253
      %v1257 = vpop.permute.xlu0 %1256
      %v1259 = vmul.f32 %v1257, %v1134
      %v1260 = vadd.f32 %v1252, %v1259
      %v1261 = vmul.f32 %v1250, %v1260
      %1263 = vrot.lane.b32.xlu0 %v1261, 96
      %v1264 = vpop.permute.xlu0 %1263
      %s1266 = scalar_lea.vmem %s251, 14
      %1267 = vst.msk [vmem:[%s1266] sm:$0x3] %vm384, %v1264
      %p1268 = scmp.lt.s32.totalorder %s15, 1
      %s1269 = scalar_select %p1268, %s15, 1
      %s1270 = smul.addr %s1269, 8
      %s1271 = smul.addr %s1270, 2
      %s1272 = scalar_lea.vmem %s4, %s1271
      // Predicated region
      $region37: #{_lambda_.5} parent=35 // pred_check
        %p1273 = pneg %p137
      $region38: #{_lambda_.5} parent=35 // pred_check_branch
        %1275 = sbr.rel (%p1273) target = $region40
      $region39: #{_lambda_.5} parent=35 // pred_region
        _
      $region40: #{_lambda_.5} parent=35 // pred_fallthru
        _
    $region36: #{_lambda_.5} parent=5 // pred_fallthru
      _
    %p1276 = scmp.le.s32.totalorder 2, %s10
    // Predicated region
    $region41: #{_lambda_.5} parent=5 // pred_check
      %p1277 = pneg %p1276
    $region42: #{_lambda_.5} parent=5 // pred_check_branch
      %1279 = sbr.rel (%p1277) target = $region44
    $region43: #{_lambda_.5} parent=5 // pred_region
      %s1280 = ssub.s32 %s10, 2
      // Predicated region
      $region45: #{_lambda_.5} parent=43 // pred_check
        %p1281 = pneg %p143
      $region46: #{_lambda_.5} parent=43 // pred_check_branch
        %1283 = sbr.rel (%p1281) target = $region48
      $region47: #{_lambda_.5} parent=43 // pred_region
        %p1284 = scmp.lt.s32.totalorder %s16, 1
        %s1285 = scalar_select %p1284, %s16, 1
        %s1286 = smul.addr %s1285, 8
        %s1287 = smul.addr %s1286, 2
        %s1288 = scalar_lea.vmem %s4, %s1287
      $region48: #{_lambda_.5} parent=43 // pred_fallthru
        _
    $region44: #{_lambda_.5} parent=5 // pred_fallthru
      _
  $region6: #{_lambda_.5} parent=0 // loop_footer
    %s14 = sadd.s32 1, %s10
  $region7: #{_lambda_.5} parent=0 // loop_footer_branch
    %9 = sbr.rel target = $region3
  $region8: #{_lambda_.5} parent=0 // loop_exit
    _

// kernel: _lambda_.7
$region0: #{_lambda_.7}
  #allocation0 [shape = 'u32[]', space=smem, size = 0x4, offset = 0x4, fixed_abs, tag = 'smem constant byte address 0x4 - core index']
  #allocation1 [shape = 'u32[144,128]{1,0:T(1,128)}', space=vmem, size = 0x12000, scoped, tag = 'internal scratch']
  %s0 = inlined_call_operand.vmem [shape: f32[6,2,96], index: 0, kind: input, shape index: {}]
  %s1 = inlined_call_operand.vmem [shape: f32[2,8,64], index: 1, kind: input, shape index: {}]
  %s2 = inlined_call_operand.vmem [shape: f32[2,8,32], index: 2, kind: input, shape index: {}]
  %s3 = inlined_call_operand.vmem [shape: f32[32,32], index: 3, kind: input, shape index: {}]
  %s4 = inlined_call_operand.vmem [shape: f32[1,32], index: 4, kind: input, shape index: {}]
  %s5 = inlined_call_operand.vmem [shape: f32[1,32], index: 5, kind: input, shape index: {}]
  %s6 = inlined_call_operand.vmem [shape: f32[64,96], index: 6, kind: input, shape index: {}]
  %s7 = inlined_call_operand.vmem [shape: f32[32,96], index: 7, kind: input, shape index: {}]
  %s8 = inlined_call_operand.vmem [shape: f32[1,96], index: 8, kind: input, shape index: {}]
  %s9 = inlined_call_operand.vmem [shape: f32[2,32], index: 9, kind: input, shape index: {}]
  %s10 = inlined_call_operand.vmem [shape: f32[6,2,32], index: 10, kind: output, shape index: {}]
  %s11 = sld [smem:[#allocation0]]
  $region50: #{_lambda_.7} parent=0
    _
  %s13 = ssub.s32 1, %s11
  %s14 = scalar_select 0, %s13, %s11
  // Predicated region
  $region2: #{_lambda_.7} parent=0 // pred_check
    _
  $region3: #{_lambda_.7} parent=0 // pred_check_branch
    %16 = sbr.rel (0) target = $region5
  $region4: #{_lambda_.7} parent=0 // pred_region
    _
  $region5: #{_lambda_.7} parent=0 // pred_fallthru
    _
  // Predicated region
  $region6: #{_lambda_.7} parent=0 // pred_check
    _
  $region7: #{_lambda_.7} parent=0 // pred_check_branch
    %18 = sbr.rel (0) target = $region9
  $region8: #{_lambda_.7} parent=0 // pred_region
    _
  $region9: #{_lambda_.7} parent=0 // pred_fallthru
    _
  // Predicated region
  $region10: #{_lambda_.7} parent=0 // pred_check
    _
  $region11: #{_lambda_.7} parent=0 // pred_check_branch
    %20 = sbr.rel (0) target = $region13
  $region12: #{_lambda_.7} parent=0 // pred_region
    _
  $region13: #{_lambda_.7} parent=0 // pred_fallthru
    _
  // Predicated region
  $region14: #{_lambda_.7} parent=0 // pred_check
    _
  $region15: #{_lambda_.7} parent=0 // pred_check_branch
    %22 = sbr.rel (0) target = $region17
  $region16: #{_lambda_.7} parent=0 // pred_region
    _
  $region17: #{_lambda_.7} parent=0 // pred_fallthru
    _
  // Predicated region
  $region18: #{_lambda_.7} parent=0 // pred_check
    _
  $region19: #{_lambda_.7} parent=0 // pred_check_branch
    %24 = sbr.rel (0) target = $region21
  $region20: #{_lambda_.7} parent=0 // pred_region
    _
  $region21: #{_lambda_.7} parent=0 // pred_fallthru
    _
  // Predicated region
  $region22: #{_lambda_.7} parent=0 // pred_check
    _
  $region23: #{_lambda_.7} parent=0 // pred_check_branch
    %26 = sbr.rel (0) target = $region25
  $region24: #{_lambda_.7} parent=0 // pred_region
    _
  $region25: #{_lambda_.7} parent=0 // pred_fallthru
    _
  // Predicated region
  $region26: #{_lambda_.7} parent=0 // pred_check
    _
  $region27: #{_lambda_.7} parent=0 // pred_check_branch
    %28 = sbr.rel (0) target = $region29
  $region28: #{_lambda_.7} parent=0 // pred_region
    _
  $region29: #{_lambda_.7} parent=0 // pred_fallthru
    _
  // Predicated region
  $region30: #{_lambda_.7} parent=0 // pred_check
    _
  $region31: #{_lambda_.7} parent=0 // pred_check_branch
    %30 = sbr.rel (0) target = $region33
  $region32: #{_lambda_.7} parent=0 // pred_region
    _
  $region33: #{_lambda_.7} parent=0 // pred_fallthru
    _
  // Predicated region
  $region34: #{_lambda_.7} parent=0 // pred_check
    _
  $region35: #{_lambda_.7} parent=0 // pred_check_branch
    %32 = sbr.rel (0) target = $region37
  $region36: #{_lambda_.7} parent=0 // pred_region
    _
  $region37: #{_lambda_.7} parent=0 // pred_fallthru
    _
  // Predicated region
  $region38: #{_lambda_.7} parent=0 // pred_check
    _
  $region39: #{_lambda_.7} parent=0 // pred_check_branch
    %34 = sbr.rel (0) target = $region41
  $region40: #{_lambda_.7} parent=0 // pred_region
    _
  $region41: #{_lambda_.7} parent=0 // pred_fallthru
    _
  %v35 = vld [vmem:[%s1] sm:$0xff]
  %v36 = vld [vmem:[%s1 + $0x8] sm:$0xff]
  %v37 = vld [vmem:[%s2] sm:$0xff]
  %v38 = vld [vmem:[%s2 + $0x8] sm:$0xff]
  %v39 = vld [vmem:[%s3] sm:$0xff]
  %v40 = vld [vmem:[%s3 + $0x8] sm:$0xff]
  %v41 = vld [vmem:[%s3 + $0x10] sm:$0xff]
  %v42 = vld [vmem:[%s3 + $0x18] sm:$0xff]
  %v43 = vld [vmem:[%s4] sm:$0x1]
  %v44 = vld [vmem:[%s5] sm:$0x1]
  %v45 = vld [vmem:[%s6] sm:$0xff]
  %v46 = vld [vmem:[%s6 + $0x8] sm:$0xff]
  %v47 = vld [vmem:[%s6 + $0x10] sm:$0xff]
  %v48 = vld [vmem:[%s6 + $0x18] sm:$0xff]
  %v49 = vld [vmem:[%s6 + $0x20] sm:$0xff]
  %v50 = vld [vmem:[%s6 + $0x28] sm:$0xff]
  %v51 = vld [vmem:[%s6 + $0x30] sm:$0xff]
  %v52 = vld [vmem:[%s6 + $0x38] sm:$0xff]
  %v53 = vld [vmem:[%s7] sm:$0xff]
  %v54 = vld [vmem:[%s7 + $0x8] sm:$0xff]
  %v55 = vld [vmem:[%s7 + $0x10] sm:$0xff]
  %v56 = vld [vmem:[%s7 + $0x18] sm:$0xff]
  %v57 = vld [vmem:[%s8] sm:$0x1]
  %v58 = vld [vmem:[%s9] sm:$0x3]
  %v60 = vlaneseq
  %v61 = vshrl.u32 %v60, 7
  %v62 = vsub.s32 0, %v61
  %v63 = vrot.slane %v43, %v62
  %vm65 = vcmask 261120
  %v67 = vsel %vm65, %v58, 0
  %69 = vmatprep.subr.mxu0 0.0
  %70 = vmatpush1.msra.mxu0 0.0
  %71 = vmatprep.subr.mxu0 0.0
  %72 = vmatpush1.msra.mxu0 0.0
  %73 = vmatprep.subr.mxu0 0.0
  %74 = vmatpush1.msra.mxu0 0.0
  %75 = vmatprep.subr.mxu0 0.0
  %76 = vmatpush1.msra.mxu0 0.0
  %77 = vmatprep.subr.mxu0 0.0
  %78 = vmatpush1.msra.mxu0 0.0
  %79 = vmatprep.subr.mxu0 0.0
  %80 = vmatpush1.msra.mxu0 0.0
  %81 = vmatprep.subr.mxu0 0.0
  %82 = vmatpush1.msra.mxu0 0.0
  %83 = vmatprep.subr.mxu0 0.0
  %84 = vmatpush1.msra.mxu0 0.0
  %85 = vmatprep.subr.mxu0 0.0
  %86 = vmatpush1.msra.mxu0 0.0
  %87 = vmatprep.subr.mxu0 0.0
  %88 = vmatpush1.msra.mxu0 0.0
  %89 = vmatprep.subr.mxu0 0.0
  %90 = vmatpush1.msra.mxu0 0.0
  %91 = vmatprep.subr.mxu0 0.0
  %92 = vmatpush1.msra.mxu0 0.0
  %93 = vmatprep.subr.mxu0 0.0
  %94 = vmatpush1.msra.mxu0 %v42
  %95 = vmatprep.subr.mxu0 0.0
  %96 = vmatpush1.msra.mxu0 %v41
  %97 = vmatprep.subr.mxu0 0.0
  %98 = vmatpush1.msra.mxu0 %v40
  %99 = vmatprep.subr.mxu0 0.0
  %100 = vmatpush1.msra.mxu0 %v39
  %101 = vmatprep.subr.mxu0 0.0
  %102 = vmatpush2.msra.mxu0 0.0
  %103 = vmatprep.subr.mxu0 0.0
  %104 = vmatpush2.msra.mxu0 0.0
  %105 = vmatprep.subr.mxu0 0.0
  %106 = vmatpush2.msra.mxu0 0.0
  %107 = vmatprep.subr.mxu0 0.0
  %108 = vmatpush2.msra.mxu0 0.0
  %109 = vmatprep.subr.mxu0 0.0
  %110 = vmatpush2.msra.mxu0 0.0
  %111 = vmatprep.subr.mxu0 0.0
  %112 = vmatpush2.msra.mxu0 0.0
  %113 = vmatprep.subr.mxu0 0.0
  %114 = vmatpush2.msra.mxu0 0.0
  %115 = vmatprep.subr.mxu0 0.0
  %116 = vmatpush2.msra.mxu0 0.0
  %117 = vmatprep.subr.mxu0 0.0
  %118 = vmatpush2.msra.mxu0 0.0
  %119 = vmatprep.subr.mxu0 0.0
  %120 = vmatpush2.msra.mxu0 0.0
  %121 = vmatprep.subr.mxu0 0.0
  %122 = vmatpush2.msra.mxu0 0.0
  %123 = vmatprep.subr.mxu0 0.0
  %124 = vmatpush2.msra.mxu0 0.0
  %125 = vmatprep.subr.mxu0 0.0
  %126 = vmatpush2.msra.mxu0 0.0
  %127 = vmatprep.subr.mxu0 0.0
  %128 = vmatpush2.msra.mxu0 0.0
  %129 = vmatprep.subr.mxu0 0.0
  %130 = vmatpush2.msra.mxu0 0.0
  %131 = vmatprep.subr.mxu0 0.0
  %132 = vmatpush2.msra.mxu0 0.0
  %133 = vmatprep.mubr.f32.mxu0 0.0
  %134 = vmatmul.mubr.f32.gmra.mxu0 %v67
  %v135 = vpop.f32.mrf.mxu0
  %v136 = vadd.f32 %v63, %v135
  %v137 = vpop.f32.mrf.mxu0
  %138 = vdwg.mxu0
  %v141 = vunpack.c.l.s4 1966171168
  %v142 = vunpack.c.0.s8 %v141
  %v143 = vlaneseq
  %v144 = vshrl.u32 %v143, 7
  %v145 = vsub.s32 %v142, %v144
  %v146 = vrot.slane %v136, %v145
  %v147 = vcombine.high %v146, %v146
  %v149 = vunpack.c.l.s4 1966171168
  %v150 = vunpack.c.0.s8 %v149
  %v151 = vlaneseq
  %v152 = vshrl.u32 %v151, 7
  %v153 = vsub.s32 %v150, %v152
  %v154 = vrot.slane %v146, %v153
  %v156 = vunpack.c.l.s4 1966171168
  %v157 = vunpack.c.0.s8 %v156
  %v158 = vlaneseq
  %v159 = vshrl.u32 %v158, 7
  %v160 = vsub.s32 %v157, %v159
  %v161 = vrot.slane %v147, %v160
  %v162 = vlaneseq
  %v163 = vshrl.u32 %v162, 7
  %v164 = vsub.s32 0, %v163
  %v165 = vrot.slane %v154, %v164
  %v166 = vlaneseq
  %v167 = vshrl.u32 %v166, 7
  %v168 = vsub.s32 0, %v167
  %v169 = vrot.slane %v161, %v168
  %v172 = vadd.f32 %v165, %v37
  %v173 = vadd.f32 %v169, %v38
  %v174 = vtanh.pop %v172
  %v175 = vtanh.pop %v173
  %v177 = vlaneseq
  %v178 = vshrl.u32 %v177, 7
  %v179 = vsub.s32 0, %v178
  %v180 = vrot.slane %v44, %v179
  %v182 = vmul.f32 %v174, %v180
  %v183 = vmul.f32 %v175, %v180
  %v184 = vsel %vm65, %v182, 0.0
  %185 = vadd.xlane.f32.xlu0 %v184
  %v186 = vpop.xlane.xlu0 %185
  %v187 = vsel %vm65, %v183, 0.0
  %188 = vadd.xlane.f32.xlu0 %v187
  %v189 = vpop.xlane.xlu0 %188
  %v192 = vlaneseq
  %v193 = vand.u32 %v192, 127
  %v194 = vlaneseq
  %v195 = vshrl.u32 %v194, 7
  %v196 = vsub.s32 %v193, %v195
  %v197 = vrot.slane %v186, %v196
  %v198 = vlaneseq
  %v199 = vshrl.u32 %v198, 7
  %v200 = vsub.s32 %v193, %v199
  %v201 = vrot.slane %v189, %v200
  %vm202 = vcmask 1041409
  %v203 = vsel %vm202, %v201, %v197
  %vm205 = vcmask 58368
  %v206 = vsel %vm205, %v203, -inf
  %207 = vmax.xlane.f32.xlu0 %v206
  %v208 = vpop.xlane.xlu0 %207
  %v210 = vlaneseq
  %v211 = vshrl.u32 %v210, 7
  %v212 = vsub.s32 0, %v211
  %v213 = vrot.slane %v208, %v212
  %v214 = vlaneseq
  %v215 = vshrl.u32 %v214, 7
  %v216 = vsub.s32 1, %v215
  %v217 = vrot.slane %v208, %v216
  %v220 = vsub.f32 %v186, %v213
  %v221 = vsub.f32 %v189, %v217
  %v222 = vmul.f32 %v220, 1.442695
  %v223 = vpow.pop %v222
  %v224 = vmul.f32 %v221, 1.442695
  %v225 = vpow.pop %v224
  %228 = vset.pattern.permute.xlu0 0
  %229 = vperm.xlu0 %228, %v223
  %v230 = vpop.permute.xlu0 %229
  %231 = vset.pattern.permute.xlu0 0
  %232 = vperm.xlu0 %231, %v225
  %v233 = vpop.permute.xlu0 %232
  %v234 = vlaneseq
  %v235 = vshrl.u32 %v234, 7
  %v236 = vsub.s32 %v193, %v235
  %v237 = vrot.slane %v230, %v236
  %v238 = vlaneseq
  %v239 = vshrl.u32 %v238, 7
  %v240 = vsub.s32 %v193, %v239
  %v241 = vrot.slane %v233, %v240
  %v242 = vsel %vm202, %v241, %v237
  %v244 = vsel %vm205, %v242, 0.0
  %245 = vadd.xlane.f32.xlu0 %v244
  %v246 = vpop.xlane.xlu0 %245
  %v247 = vrcp.pop %v246
  %v249 = vlaneseq
  %v250 = vshrl.u32 %v249, 7
  %v251 = vsub.s32 0, %v250
  %v252 = vrot.slane %v247, %v251
  %v253 = vlaneseq
  %v254 = vshrl.u32 %v253, 7
  %v255 = vsub.s32 1, %v254
  %v256 = vrot.slane %v247, %v255
  %v259 = vmul.f32 %v223, %v252
  %v260 = vmul.f32 %v225, %v256
  %262 = vset.pattern.permute.xlu0 0
  %263 = vperm.xlu0 %262, %v259
  %v264 = vpop.permute.xlu0 %263
  %267 = vset.pattern.permute.xlu0 0
  %268 = vperm.xlu0 %267, %v260
  %v269 = vpop.permute.xlu0 %268
  %v271 = vmul.f32 %v264, %v35
  %v272 = vmul.f32 %v269, %v36
  %vm273 = vcmask 523264
  %v274 = vsel %vm273, %v271, 0.0
  %v275 = vrot.slane %v274, 4
  %v276 = vadd.f32 %v274, %v275
  %v277 = vrot.slane %v276, 2
  %v278 = vadd.f32 %v276, %v277
  %v279 = vrot.slane %v278, 1
  %v280 = vadd.f32 %v278, %v279
  %v281 = vsel %vm273, %v272, 0.0
  %v282 = vrot.slane %v281, 4
  %v283 = vadd.f32 %v281, %v282
  %v284 = vrot.slane %v283, 2
  %v285 = vadd.f32 %v283, %v284
  %v286 = vrot.slane %v285, 1
  %v287 = vadd.f32 %v285, %v286
  %v288 = vld [vmem:[%s0] sm:$0x3]
  %v291 = vsel %vm202, %v287, %v280
  %v292 = vsel %vm273, %v291, 0
  %294 = vmatprep.subr.mxu0 0.0
  %295 = vmatpush1.msra.mxu0 0.0
  %296 = vmatprep.subr.mxu0 0.0
  %297 = vmatpush1.msra.mxu0 0.0
  %298 = vmatprep.subr.mxu0 0.0
  %299 = vmatpush1.msra.mxu0 0.0
  %300 = vmatprep.subr.mxu0 0.0
  %301 = vmatpush1.msra.mxu0 0.0
  %302 = vmatprep.subr.mxu0 0.0
  %303 = vmatpush1.msra.mxu0 0.0
  %304 = vmatprep.subr.mxu0 0.0
  %305 = vmatpush1.msra.mxu0 0.0
  %306 = vmatprep.subr.mxu0 0.0
  %307 = vmatpush1.msra.mxu0 0.0
  %308 = vmatprep.subr.mxu0 0.0
  %309 = vmatpush1.msra.mxu0 0.0
  %310 = vmatprep.subr.mxu0 0.0
  %311 = vmatpush1.msra.mxu0 %v52
  %312 = vmatprep.subr.mxu0 0.0
  %313 = vmatpush1.msra.mxu0 %v51
  %314 = vmatprep.subr.mxu0 0.0
  %315 = vmatpush1.msra.mxu0 %v50
  %316 = vmatprep.subr.mxu0 0.0
  %317 = vmatpush1.msra.mxu0 %v49
  %318 = vmatprep.subr.mxu0 0.0
  %319 = vmatpush1.msra.mxu0 %v48
  %320 = vmatprep.subr.mxu0 0.0
  %321 = vmatpush1.msra.mxu0 %v47
  %322 = vmatprep.subr.mxu0 0.0
  %323 = vmatpush1.msra.mxu0 %v46
  %324 = vmatprep.subr.mxu0 0.0
  %325 = vmatpush1.msra.mxu0 %v45
  %326 = vmatprep.subr.mxu0 0.0
  %327 = vmatpush2.msra.mxu0 0.0
  %328 = vmatprep.subr.mxu0 0.0
  %329 = vmatpush2.msra.mxu0 0.0
  %330 = vmatprep.subr.mxu0 0.0
  %331 = vmatpush2.msra.mxu0 0.0
  %332 = vmatprep.subr.mxu0 0.0
  %333 = vmatpush2.msra.mxu0 0.0
  %334 = vmatprep.subr.mxu0 0.0
  %335 = vmatpush2.msra.mxu0 0.0
  %336 = vmatprep.subr.mxu0 0.0
  %337 = vmatpush2.msra.mxu0 0.0
  %338 = vmatprep.subr.mxu0 0.0
  %339 = vmatpush2.msra.mxu0 0.0
  %340 = vmatprep.subr.mxu0 0.0
  %341 = vmatpush2.msra.mxu0 0.0
  %342 = vmatprep.subr.mxu0 0.0
  %343 = vmatpush2.msra.mxu0 0.0
  %344 = vmatprep.subr.mxu0 0.0
  %345 = vmatpush2.msra.mxu0 0.0
  %346 = vmatprep.subr.mxu0 0.0
  %347 = vmatpush2.msra.mxu0 0.0
  %348 = vmatprep.subr.mxu0 0.0
  %349 = vmatpush2.msra.mxu0 0.0
  %350 = vmatprep.subr.mxu0 0.0
  %351 = vmatpush2.msra.mxu0 0.0
  %352 = vmatprep.subr.mxu0 0.0
  %353 = vmatpush2.msra.mxu0 0.0
  %354 = vmatprep.subr.mxu0 0.0
  %355 = vmatpush2.msra.mxu0 0.0
  %356 = vmatprep.subr.mxu0 0.0
  %357 = vmatpush2.msra.mxu0 0.0
  %358 = vmatprep.mubr.f32.mxu0 0.0
  %359 = vmatmul.mubr.f32.gmra.mxu0 %v292
  %v360 = vpop.f32.mrf.mxu0
  %v361 = vadd.f32 0.0, %v360
  %v362 = vpop.f32.mrf.mxu0
  %363 = vdwg.mxu0
  %v364 = vadd.f32 %v288, %v361
  %v366 = vlaneseq
  %v367 = vshrl.u32 %v366, 7
  %v368 = vsub.s32 0, %v367
  %v369 = vrot.slane %v57, %v368
  %371 = vmatprep.subr.mxu0 0.0
  %372 = vmatpush1.msra.mxu0 0.0
  %373 = vmatprep.subr.mxu0 0.0
  %374 = vmatpush1.msra.mxu0 0.0
  %375 = vmatprep.subr.mxu0 0.0
  %376 = vmatpush1.msra.mxu0 0.0
  %377 = vmatprep.subr.mxu0 0.0
  %378 = vmatpush1.msra.mxu0 0.0
  %379 = vmatprep.subr.mxu0 0.0
  %380 = vmatpush1.msra.mxu0 0.0
  %381 = vmatprep.subr.mxu0 0.0
  %382 = vmatpush1.msra.mxu0 0.0
  %383 = vmatprep.subr.mxu0 0.0
  %384 = vmatpush1.msra.mxu0 0.0
  %385 = vmatprep.subr.mxu0 0.0
  %386 = vmatpush1.msra.mxu0 0.0
  %387 = vmatprep.subr.mxu0 0.0
  %388 = vmatpush1.msra.mxu0 0.0
  %389 = vmatprep.subr.mxu0 0.0
  %390 = vmatpush1.msra.mxu0 0.0
  %391 = vmatprep.subr.mxu0 0.0
  %392 = vmatpush1.msra.mxu0 0.0
  %393 = vmatprep.subr.mxu0 0.0
  %394 = vmatpush1.msra.mxu0 0.0
  %395 = vmatprep.subr.mxu0 0.0
  %396 = vmatpush1.msra.mxu0 %v56
  %397 = vmatprep.subr.mxu0 0.0
  %398 = vmatpush1.msra.mxu0 %v55
  %399 = vmatprep.subr.mxu0 0.0
  %400 = vmatpush1.msra.mxu0 %v54
  %401 = vmatprep.subr.mxu0 0.0
  %402 = vmatpush1.msra.mxu0 %v53
  %403 = vmatprep.subr.mxu0 0.0
  %404 = vmatpush2.msra.mxu0 0.0
  %405 = vmatprep.subr.mxu0 0.0
  %406 = vmatpush2.msra.mxu0 0.0
  %407 = vmatprep.subr.mxu0 0.0
  %408 = vmatpush2.msra.mxu0 0.0
  %409 = vmatprep.subr.mxu0 0.0
  %410 = vmatpush2.msra.mxu0 0.0
  %411 = vmatprep.subr.mxu0 0.0
  %412 = vmatpush2.msra.mxu0 0.0
  %413 = vmatprep.subr.mxu0 0.0
  %414 = vmatpush2.msra.mxu0 0.0
  %415 = vmatprep.subr.mxu0 0.0
  %416 = vmatpush2.msra.mxu0 0.0
  %417 = vmatprep.subr.mxu0 0.0
  %418 = vmatpush2.msra.mxu0 0.0
  %419 = vmatprep.subr.mxu0 0.0
  %420 = vmatpush2.msra.mxu0 0.0
  %421 = vmatprep.subr.mxu0 0.0
  %422 = vmatpush2.msra.mxu0 0.0
  %423 = vmatprep.subr.mxu0 0.0
  %424 = vmatpush2.msra.mxu0 0.0
  %425 = vmatprep.subr.mxu0 0.0
  %426 = vmatpush2.msra.mxu0 0.0
  %427 = vmatprep.subr.mxu0 0.0
  %428 = vmatpush2.msra.mxu0 0.0
  %429 = vmatprep.subr.mxu0 0.0
  %430 = vmatpush2.msra.mxu0 0.0
  %431 = vmatprep.subr.mxu0 0.0
  %432 = vmatpush2.msra.mxu0 0.0
  %433 = vmatprep.subr.mxu0 0.0
  %434 = vmatpush2.msra.mxu0 0.0
  %435 = vmatprep.mubr.f32.mxu0 0.0
  %436 = vmatmul.mubr.f32.gmra.mxu0 %v67
  %v437 = vpop.f32.mrf.mxu0
  %v438 = vadd.f32 %v369, %v437
  %v439 = vpop.f32.mrf.mxu0
  %440 = vdwg.mxu0
  %v441 = vadd.f32 %v364, %v438
  %v442 = vxor.u32 %v441, 2147483648
  %v443 = vmul.f32 %v442, 1.442695
  %v444 = vpow.pop %v443
  %v445 = vadd.f32 %v444, 1.0
  %v446 = vrcp.pop %v445
  %v447 = vmul.f32 1.0, %v446
  %449 = vrot.lane.b32.xlu0 %v438, 64
  %v450 = vpop.permute.xlu0 %449
  %v452 = vmul.f32 %v447, %v450
  %454 = vrot.lane.b32.xlu0 %v452, 64
  %v455 = vpop.permute.xlu0 %454
  %v457 = vadd.f32 %v364, %v455
  %v458 = vtanh.pop %v457
  %v459 = vsub.f32 1.0, %v447
  %461 = vrot.lane.b32.xlu0 %v458, 96
  %v462 = vpop.permute.xlu0 %461
  %v464 = vmul.f32 %v459, %v462
  %465 = vrot.lane.b32.xlu0 %v58, 32
  %v466 = vpop.permute.xlu0 %465
  %v468 = vmul.f32 %v447, %v466
  %v469 = vadd.f32 %v464, %v468
  %471 = vrot.lane.b32.xlu0 %v469, 96
  %v472 = vpop.permute.xlu0 %471
  %vm474 = vcmask 254976
  %475 = vst.msk [vmem:[%s10] sm:$0x3] %vm474, %v472
  %v476 = vsel %vm65, %v472, 0
  %478 = vmatprep.subr.mxu0 0.0
  %479 = vmatpush1.msra.mxu0 0.0
  %480 = vmatprep.subr.mxu0 0.0
  %481 = vmatpush1.msra.mxu0 0.0
  %482 = vmatprep.subr.mxu0 0.0
  %483 = vmatpush1.msra.mxu0 0.0
  %484 = vmatprep.subr.mxu0 0.0
  %485 = vmatpush1.msra.mxu0 0.0
  %486 = vmatprep.subr.mxu0 0.0
  %487 = vmatpush1.msra.mxu0 0.0
  %488 = vmatprep.subr.mxu0 0.0
  %489 = vmatpush1.msra.mxu0 0.0
  %490 = vmatprep.subr.mxu0 0.0
  %491 = vmatpush1.msra.mxu0 0.0
  %492 = vmatprep.subr.mxu0 0.0
  %493 = vmatpush1.msra.mxu0 0.0
  %494 = vmatprep.subr.mxu0 0.0
  %495 = vmatpush1.msra.mxu0 0.0
  %496 = vmatprep.subr.mxu0 0.0
  %497 = vmatpush1.msra.mxu0 0.0
  %498 = vmatprep.subr.mxu0 0.0
  %499 = vmatpush1.msra.mxu0 0.0
  %500 = vmatprep.subr.mxu0 0.0
  %501 = vmatpush1.msra.mxu0 0.0
  %502 = vmatprep.subr.mxu0 0.0
  %503 = vmatpush1.msra.mxu0 %v42
  %504 = vmatprep.subr.mxu0 0.0
  %505 = vmatpush1.msra.mxu0 %v41
  %506 = vmatprep.subr.mxu0 0.0
  %507 = vmatpush1.msra.mxu0 %v40
  %508 = vmatprep.subr.mxu0 0.0
  %509 = vmatpush1.msra.mxu0 %v39
  %510 = vmatprep.subr.mxu0 0.0
  %511 = vmatpush2.msra.mxu0 0.0
  %512 = vmatprep.subr.mxu0 0.0
  %513 = vmatpush2.msra.mxu0 0.0
  %514 = vmatprep.subr.mxu0 0.0
  %515 = vmatpush2.msra.mxu0 0.0
  %516 = vmatprep.subr.mxu0 0.0
  %517 = vmatpush2.msra.mxu0 0.0
  %518 = vmatprep.subr.mxu0 0.0
  %519 = vmatpush2.msra.mxu0 0.0
  %520 = vmatprep.subr.mxu0 0.0
  %521 = vmatpush2.msra.mxu0 0.0
  %522 = vmatprep.subr.mxu0 0.0
  %523 = vmatpush2.msra.mxu0 0.0
  %524 = vmatprep.subr.mxu0 0.0
  %525 = vmatpush2.msra.mxu0 0.0
  %526 = vmatprep.subr.mxu0 0.0
  %527 = vmatpush2.msra.mxu0 0.0
  %528 = vmatprep.subr.mxu0 0.0
  %529 = vmatpush2.msra.mxu0 0.0
  %530 = vmatprep.subr.mxu0 0.0
  %531 = vmatpush2.msra.mxu0 0.0
  %532 = vmatprep.subr.mxu0 0.0
  %533 = vmatpush2.msra.mxu0 0.0
  %534 = vmatprep.subr.mxu0 0.0
  %535 = vmatpush2.msra.mxu0 0.0
  %536 = vmatprep.subr.mxu0 0.0
  %537 = vmatpush2.msra.mxu0 0.0
  %538 = vmatprep.subr.mxu0 0.0
  %539 = vmatpush2.msra.mxu0 0.0
  %540 = vmatprep.subr.mxu0 0.0
  %541 = vmatpush2.msra.mxu0 0.0
  %542 = vmatprep.mubr.f32.mxu0 0.0
  %543 = vmatmul.mubr.f32.gmra.mxu0 %v476
  %v544 = vpop.f32.mrf.mxu0
  %v545 = vadd.f32 %v63, %v544
  %v546 = vpop.f32.mrf.mxu0
  %547 = vdwg.mxu0
  %v550 = vunpack.c.l.s4 1966171168
  %v551 = vunpack.c.0.s8 %v550
  %v552 = vlaneseq
  %v553 = vshrl.u32 %v552, 7
  %v554 = vsub.s32 %v551, %v553
  %v555 = vrot.slane %v545, %v554
  %v556 = vcombine.high %v555, %v555
  %v558 = vunpack.c.l.s4 1966171168
  %v559 = vunpack.c.0.s8 %v558
  %v560 = vlaneseq
  %v561 = vshrl.u32 %v560, 7
  %v562 = vsub.s32 %v559, %v561
  %v563 = vrot.slane %v555, %v562
  %v565 = vunpack.c.l.s4 1966171168
  %v566 = vunpack.c.0.s8 %v565
  %v567 = vlaneseq
  %v568 = vshrl.u32 %v567, 7
  %v569 = vsub.s32 %v566, %v568
  %v570 = vrot.slane %v556, %v569
  %v571 = vlaneseq
  %v572 = vshrl.u32 %v571, 7
  %v573 = vsub.s32 0, %v572
  %v574 = vrot.slane %v563, %v573
  %v575 = vlaneseq
  %v576 = vshrl.u32 %v575, 7
  %v577 = vsub.s32 0, %v576
  %v578 = vrot.slane %v570, %v577
  %v581 = vadd.f32 %v574, %v37
  %v582 = vadd.f32 %v578, %v38
  %v583 = vtanh.pop %v581
  %v584 = vtanh.pop %v582
  %v585 = vmul.f32 %v583, %v180
  %v586 = vmul.f32 %v584, %v180
  %v587 = vsel %vm65, %v585, 0.0
  %588 = vadd.xlane.f32.xlu0 %v587
  %v589 = vpop.xlane.xlu0 %588
  %v590 = vsel %vm65, %v586, 0.0
  %591 = vadd.xlane.f32.xlu0 %v590
  %v592 = vpop.xlane.xlu0 %591
  %v595 = vlaneseq
  %v596 = vshrl.u32 %v595, 7
  %v597 = vsub.s32 %v193, %v596
  %v598 = vrot.slane %v589, %v597
  %v599 = vlaneseq
  %v600 = vshrl.u32 %v599, 7
  %v601 = vsub.s32 %v193, %v600
  %v602 = vrot.slane %v592, %v601
  %v603 = vsel %vm202, %v602, %v598
  %v605 = vsel %vm205, %v603, -inf
  %606 = vmax.xlane.f32.xlu0 %v605
  %v607 = vpop.xlane.xlu0 %606
  %v609 = vlaneseq
  %v610 = vshrl.u32 %v609, 7
  %v611 = vsub.s32 0, %v610
  %v612 = vrot.slane %v607, %v611
  %v613 = vlaneseq
  %v614 = vshrl.u32 %v613, 7
  %v615 = vsub.s32 1, %v614
  %v616 = vrot.slane %v607, %v615
  %v619 = vsub.f32 %v589, %v612
  %v620 = vsub.f32 %v592, %v616
  %v621 = vmul.f32 %v619, 1.442695
  %v622 = vpow.pop %v621
  %v623 = vmul.f32 %v620, 1.442695
  %v624 = vpow.pop %v623
  %627 = vset.pattern.permute.xlu0 0
  %628 = vperm.xlu0 %627, %v622
  %v629 = vpop.permute.xlu0 %628
  %630 = vset.pattern.permute.xlu0 0
  %631 = vperm.xlu0 %630, %v624
  %v632 = vpop.permute.xlu0 %631
  %v633 = vlaneseq
  %v634 = vshrl.u32 %v633, 7
  %v635 = vsub.s32 %v193, %v634
  %v636 = vrot.slane %v629, %v635
  %v637 = vlaneseq
  %v638 = vshrl.u32 %v637, 7
  %v639 = vsub.s32 %v193, %v638
  %v640 = vrot.slane %v632, %v639
  %v641 = vsel %vm202, %v640, %v636
  %v643 = vsel %vm205, %v641, 0.0
  %644 = vadd.xlane.f32.xlu0 %v643
  %v645 = vpop.xlane.xlu0 %644
  %v646 = vrcp.pop %v645
  %v648 = vlaneseq
  %v649 = vshrl.u32 %v648, 7
  %v650 = vsub.s32 0, %v649
  %v651 = vrot.slane %v646, %v650
  %v652 = vlaneseq
  %v653 = vshrl.u32 %v652, 7
  %v654 = vsub.s32 1, %v653
  %v655 = vrot.slane %v646, %v654
  %v658 = vmul.f32 %v622, %v651
  %v659 = vmul.f32 %v624, %v655
  %661 = vset.pattern.permute.xlu0 0
  %662 = vperm.xlu0 %661, %v658
  %v663 = vpop.permute.xlu0 %662
  %666 = vset.pattern.permute.xlu0 0
  %667 = vperm.xlu0 %666, %v659
  %v668 = vpop.permute.xlu0 %667
  %v670 = vmul.f32 %v663, %v35
  %v671 = vmul.f32 %v668, %v36
  %v672 = vsel %vm273, %v670, 0.0
  %v673 = vrot.slane %v672, 4
  %v674 = vadd.f32 %v672, %v673
  %v675 = vrot.slane %v674, 2
  %v676 = vadd.f32 %v674, %v675
  %v677 = vrot.slane %v676, 1
  %v678 = vadd.f32 %v676, %v677
  %v679 = vsel %vm273, %v671, 0.0
  %v680 = vrot.slane %v679, 4
  %v681 = vadd.f32 %v679, %v680
  %v682 = vrot.slane %v681, 2
  %v683 = vadd.f32 %v681, %v682
  %v684 = vrot.slane %v683, 1
  %v685 = vadd.f32 %v683, %v684
  %s686 = scalar_lea.vmem %s0, 2
  %v687 = vld [vmem:[%s686] sm:$0x3]
  %v690 = vsel %vm202, %v685, %v678
  %v691 = vsel %vm273, %v690, 0
  %693 = vmatprep.subr.mxu0 0.0
  %694 = vmatpush1.msra.mxu0 0.0
  %695 = vmatprep.subr.mxu0 0.0
  %696 = vmatpush1.msra.mxu0 0.0
  %697 = vmatprep.subr.mxu0 0.0
  %698 = vmatpush1.msra.mxu0 0.0
  %699 = vmatprep.subr.mxu0 0.0
  %700 = vmatpush1.msra.mxu0 0.0
  %701 = vmatprep.subr.mxu0 0.0
  %702 = vmatpush1.msra.mxu0 0.0
  %703 = vmatprep.subr.mxu0 0.0
  %704 = vmatpush1.msra.mxu0 0.0
  %705 = vmatprep.subr.mxu0 0.0
  %706 = vmatpush1.msra.mxu0 0.0
  %707 = vmatprep.subr.mxu0 0.0
  %708 = vmatpush1.msra.mxu0 0.0
  %709 = vmatprep.subr.mxu0 0.0
  %710 = vmatpush1.msra.mxu0 %v52
  %711 = vmatprep.subr.mxu0 0.0
  %712 = vmatpush1.msra.mxu0 %v51
  %713 = vmatprep.subr.mxu0 0.0
  %714 = vmatpush1.msra.mxu0 %v50
  %715 = vmatprep.subr.mxu0 0.0
  %716 = vmatpush1.msra.mxu0 %v49
  %717 = vmatprep.subr.mxu0 0.0
  %718 = vmatpush1.msra.mxu0 %v48
  %719 = vmatprep.subr.mxu0 0.0
  %720 = vmatpush1.msra.mxu0 %v47
  %721 = vmatprep.subr.mxu0 0.0
  %722 = vmatpush1.msra.mxu0 %v46
  %723 = vmatprep.subr.mxu0 0.0
  %724 = vmatpush1.msra.mxu0 %v45
  %725 = vmatprep.subr.mxu0 0.0
  %726 = vmatpush2.msra.mxu0 0.0
  %727 = vmatprep.subr.mxu0 0.0
  %728 = vmatpush2.msra.mxu0 0.0
  %729 = vmatprep.subr.mxu0 0.0
  %730 = vmatpush2.msra.mxu0 0.0
  %731 = vmatprep.subr.mxu0 0.0
  %732 = vmatpush2.msra.mxu0 0.0
  %733 = vmatprep.subr.mxu0 0.0
  %734 = vmatpush2.msra.mxu0 0.0
  %735 = vmatprep.subr.mxu0 0.0
  %736 = vmatpush2.msra.mxu0 0.0
  %737 = vmatprep.subr.mxu0 0.0
  %738 = vmatpush2.msra.mxu0 0.0
  %739 = vmatprep.subr.mxu0 0.0
  %740 = vmatpush2.msra.mxu0 0.0
  %741 = vmatprep.subr.mxu0 0.0
  %742 = vmatpush2.msra.mxu0 0.0
  %743 = vmatprep.subr.mxu0 0.0
  %744 = vmatpush2.msra.mxu0 0.0
  %745 = vmatprep.subr.mxu0 0.0
  %746 = vmatpush2.msra.mxu0 0.0
  %747 = vmatprep.subr.mxu0 0.0
  %748 = vmatpush2.msra.mxu0 0.0
  %749 = vmatprep.subr.mxu0 0.0
  %750 = vmatpush2.msra.mxu0 0.0
  %751 = vmatprep.subr.mxu0 0.0
  %752 = vmatpush2.msra.mxu0 0.0
  %753 = vmatprep.subr.mxu0 0.0
  %754 = vmatpush2.msra.mxu0 0.0
  %755 = vmatprep.subr.mxu0 0.0
  %756 = vmatpush2.msra.mxu0 0.0
  %757 = vmatprep.mubr.f32.mxu0 0.0
  %758 = vmatmul.mubr.f32.gmra.mxu0 %v691
  %v759 = vpop.f32.mrf.mxu0
  %v760 = vadd.f32 0.0, %v759
  %v761 = vpop.f32.mrf.mxu0
  %762 = vdwg.mxu0
  %v763 = vadd.f32 %v687, %v760
  %764 = vmatprep.subr.mxu0 0.0
  %765 = vmatpush1.msra.mxu0 0.0
  %766 = vmatprep.subr.mxu0 0.0
  %767 = vmatpush1.msra.mxu0 0.0
  %768 = vmatprep.subr.mxu0 0.0
  %769 = vmatpush1.msra.mxu0 0.0
  %770 = vmatprep.subr.mxu0 0.0
  %771 = vmatpush1.msra.mxu0 0.0
  %772 = vmatprep.subr.mxu0 0.0
  %773 = vmatpush1.msra.mxu0 0.0
  %774 = vmatprep.subr.mxu0 0.0
  %775 = vmatpush1.msra.mxu0 0.0
  %776 = vmatprep.subr.mxu0 0.0
  %777 = vmatpush1.msra.mxu0 0.0
  %778 = vmatprep.subr.mxu0 0.0
  %779 = vmatpush1.msra.mxu0 0.0
  %780 = vmatprep.subr.mxu0 0.0
  %781 = vmatpush1.msra.mxu0 0.0
  %782 = vmatprep.subr.mxu0 0.0
  %783 = vmatpush1.msra.mxu0 0.0
  %784 = vmatprep.subr.mxu0 0.0
  %785 = vmatpush1.msra.mxu0 0.0
  %786 = vmatprep.subr.mxu0 0.0
  %787 = vmatpush1.msra.mxu0 0.0
  %788 = vmatprep.subr.mxu0 0.0
  %789 = vmatpush1.msra.mxu0 %v56
  %790 = vmatprep.subr.mxu0 0.0
  %791 = vmatpush1.msra.mxu0 %v55
  %792 = vmatprep.subr.mxu0 0.0
  %793 = vmatpush1.msra.mxu0 %v54
  %794 = vmatprep.subr.mxu0 0.0
  %795 = vmatpush1.msra.mxu0 %v53
  %796 = vmatprep.subr.mxu0 0.0
  %797 = vmatpush2.msra.mxu0 0.0
  %798 = vmatprep.subr.mxu0 0.0
  %799 = vmatpush2.msra.mxu0 0.0
  %800 = vmatprep.subr.mxu0 0.0
  %801 = vmatpush2.msra.mxu0 0.0
  %802 = vmatprep.subr.mxu0 0.0
  %803 = vmatpush2.msra.mxu0 0.0
  %804 = vmatprep.subr.mxu0 0.0
  %805 = vmatpush2.msra.mxu0 0.0
  %806 = vmatprep.subr.mxu0 0.0
  %807 = vmatpush2.msra.mxu0 0.0
  %808 = vmatprep.subr.mxu0 0.0
  %809 = vmatpush2.msra.mxu0 0.0
  %810 = vmatprep.subr.mxu0 0.0
  %811 = vmatpush2.msra.mxu0 0.0
  %812 = vmatprep.subr.mxu0 0.0
  %813 = vmatpush2.msra.mxu0 0.0
  %814 = vmatprep.subr.mxu0 0.0
  %815 = vmatpush2.msra.mxu0 0.0
  %816 = vmatprep.subr.mxu0 0.0
  %817 = vmatpush2.msra.mxu0 0.0
  %818 = vmatprep.subr.mxu0 0.0
  %819 = vmatpush2.msra.mxu0 0.0
  %820 = vmatprep.subr.mxu0 0.0
  %821 = vmatpush2.msra.mxu0 0.0
  %822 = vmatprep.subr.mxu0 0.0
  %823 = vmatpush2.msra.mxu0 0.0
  %824 = vmatprep.subr.mxu0 0.0
  %825 = vmatpush2.msra.mxu0 0.0
  %826 = vmatprep.subr.mxu0 0.0
  %827 = vmatpush2.msra.mxu0 0.0
  %828 = vmatprep.mubr.f32.mxu0 0.0
  %829 = vmatmul.mubr.f32.gmra.mxu0 %v476
  %v830 = vpop.f32.mrf.mxu0
  %v831 = vadd.f32 %v369, %v830
  %v832 = vpop.f32.mrf.mxu0
  %833 = vdwg.mxu0
  %v834 = vadd.f32 %v763, %v831
  %v835 = vxor.u32 %v834, 2147483648
  %v836 = vmul.f32 %v835, 1.442695
  %v837 = vpow.pop %v836
  %v838 = vadd.f32 %v837, 1.0
  %v839 = vrcp.pop %v838
  %v840 = vmul.f32 1.0, %v839
  %842 = vrot.lane.b32.xlu0 %v831, 64
  %v843 = vpop.permute.xlu0 %842
  %v845 = vmul.f32 %v840, %v843
  %847 = vrot.lane.b32.xlu0 %v845, 64
  %v848 = vpop.permute.xlu0 %847
  %v850 = vadd.f32 %v763, %v848
  %v851 = vtanh.pop %v850
  %v852 = vsub.f32 1.0, %v840
  %854 = vrot.lane.b32.xlu0 %v851, 96
  %v855 = vpop.permute.xlu0 %854
  %v857 = vmul.f32 %v852, %v855
  %v858 = vmul.f32 %v840, %v469
  %v859 = vadd.f32 %v857, %v858
  %861 = vrot.lane.b32.xlu0 %v859, 96
  %v862 = vpop.permute.xlu0 %861
  %s864 = scalar_lea.vmem %s10, 2
  %865 = vst.msk [vmem:[%s864] sm:$0x3] %vm474, %v862
  %v866 = vsel %vm65, %v862, 0
  %868 = vmatprep.subr.mxu0 0.0
  %869 = vmatpush1.msra.mxu0 0.0
  %870 = vmatprep.subr.mxu0 0.0
  %871 = vmatpush1.msra.mxu0 0.0
  %872 = vmatprep.subr.mxu0 0.0
  %873 = vmatpush1.msra.mxu0 0.0
  %874 = vmatprep.subr.mxu0 0.0
  %875 = vmatpush1.msra.mxu0 0.0
  %876 = vmatprep.subr.mxu0 0.0
  %877 = vmatpush1.msra.mxu0 0.0
  %878 = vmatprep.subr.mxu0 0.0
  %879 = vmatpush1.msra.mxu0 0.0
  %880 = vmatprep.subr.mxu0 0.0
  %881 = vmatpush1.msra.mxu0 0.0
  %882 = vmatprep.subr.mxu0 0.0
  %883 = vmatpush1.msra.mxu0 0.0
  %884 = vmatprep.subr.mxu0 0.0
  %885 = vmatpush1.msra.mxu0 0.0
  %886 = vmatprep.subr.mxu0 0.0
  %887 = vmatpush1.msra.mxu0 0.0
  %888 = vmatprep.subr.mxu0 0.0
  %889 = vmatpush1.msra.mxu0 0.0
  %890 = vmatprep.subr.mxu0 0.0
  %891 = vmatpush1.msra.mxu0 0.0
  %892 = vmatprep.subr.mxu0 0.0
  %893 = vmatpush1.msra.mxu0 %v42
  %894 = vmatprep.subr.mxu0 0.0
  %895 = vmatpush1.msra.mxu0 %v41
  %896 = vmatprep.subr.mxu0 0.0
  %897 = vmatpush1.msra.mxu0 %v40
  %898 = vmatprep.subr.mxu0 0.0
  %899 = vmatpush1.msra.mxu0 %v39
  %900 = vmatprep.subr.mxu0 0.0
  %901 = vmatpush2.msra.mxu0 0.0
  %902 = vmatprep.subr.mxu0 0.0
  %903 = vmatpush2.msra.mxu0 0.0
  %904 = vmatprep.subr.mxu0 0.0
  %905 = vmatpush2.msra.mxu0 0.0
  %906 = vmatprep.subr.mxu0 0.0
  %907 = vmatpush2.msra.mxu0 0.0
  %908 = vmatprep.subr.mxu0 0.0
  %909 = vmatpush2.msra.mxu0 0.0
  %910 = vmatprep.subr.mxu0 0.0
  %911 = vmatpush2.msra.mxu0 0.0
  %912 = vmatprep.subr.mxu0 0.0
  %913 = vmatpush2.msra.mxu0 0.0
  %914 = vmatprep.subr.mxu0 0.0
  %915 = vmatpush2.msra.mxu0 0.0
  %916 = vmatprep.subr.mxu0 0.0
  %917 = vmatpush2.msra.mxu0 0.0
  %918 = vmatprep.subr.mxu0 0.0
  %919 = vmatpush2.msra.mxu0 0.0
  %920 = vmatprep.subr.mxu0 0.0
  %921 = vmatpush2.msra.mxu0 0.0
  %922 = vmatprep.subr.mxu0 0.0
  %923 = vmatpush2.msra.mxu0 0.0
  %924 = vmatprep.subr.mxu0 0.0
  %925 = vmatpush2.msra.mxu0 0.0
  %926 = vmatprep.subr.mxu0 0.0
  %927 = vmatpush2.msra.mxu0 0.0
  %928 = vmatprep.subr.mxu0 0.0
  %929 = vmatpush2.msra.mxu0 0.0
  %930 = vmatprep.subr.mxu0 0.0
  %931 = vmatpush2.msra.mxu0 0.0
  %932 = vmatprep.mubr.f32.mxu0 0.0
  %933 = vmatmul.mubr.f32.gmra.mxu0 %v866
  %v934 = vpop.f32.mrf.mxu0
  %v935 = vadd.f32 %v63, %v934
  %v936 = vpop.f32.mrf.mxu0
  %937 = vdwg.mxu0
  %v940 = vunpack.c.l.s4 1966171168
  %v941 = vunpack.c.0.s8 %v940
  %v942 = vlaneseq
  %v943 = vshrl.u32 %v942, 7
  %v944 = vsub.s32 %v941, %v943
  %v945 = vrot.slane %v935, %v944
  %v946 = vcombine.high %v945, %v945
  %v948 = vunpack.c.l.s4 1966171168
  %v949 = vunpack.c.0.s8 %v948
  %v950 = vlaneseq
  %v951 = vshrl.u32 %v950, 7
  %v952 = vsub.s32 %v949, %v951
  %v953 = vrot.slane %v945, %v952
  %v955 = vunpack.c.l.s4 1966171168
  %v956 = vunpack.c.0.s8 %v955
  %v957 = vlaneseq
  %v958 = vshrl.u32 %v957, 7
  %v959 = vsub.s32 %v956, %v958
  %v960 = vrot.slane %v946, %v959
  %v961 = vlaneseq
  %v962 = vshrl.u32 %v961, 7
  %v963 = vsub.s32 0, %v962
  %v964 = vrot.slane %v953, %v963
  %v965 = vlaneseq
  %v966 = vshrl.u32 %v965, 7
  %v967 = vsub.s32 0, %v966
  %v968 = vrot.slane %v960, %v967
  %v971 = vadd.f32 %v964, %v37
  %v972 = vadd.f32 %v968, %v38
  %v973 = vtanh.pop %v971
  %v974 = vtanh.pop %v972
  %v975 = vmul.f32 %v973, %v180
  %v976 = vmul.f32 %v974, %v180
  %v977 = vsel %vm65, %v975, 0.0
  %978 = vadd.xlane.f32.xlu0 %v977
  %v979 = vpop.xlane.xlu0 %978
  %v980 = vsel %vm65, %v976, 0.0
  %981 = vadd.xlane.f32.xlu0 %v980
  %v982 = vpop.xlane.xlu0 %981
  %v985 = vlaneseq
  %v986 = vshrl.u32 %v985, 7
  %v987 = vsub.s32 %v193, %v986
  %v988 = vrot.slane %v979, %v987
  %v989 = vlaneseq
  %v990 = vshrl.u32 %v989, 7
  %v991 = vsub.s32 %v193, %v990
  %v992 = vrot.slane %v982, %v991
  %v993 = vsel %vm202, %v992, %v988
  %v995 = vsel %vm205, %v993, -inf
  %996 = vmax.xlane.f32.xlu0 %v995
  %v997 = vpop.xlane.xlu0 %996
  %v999 = vlaneseq
  %v1000 = vshrl.u32 %v999, 7
  %v1001 = vsub.s32 0, %v1000
  %v1002 = vrot.slane %v997, %v1001
  %v1003 = vlaneseq
  %v1004 = vshrl.u32 %v1003, 7
  %v1005 = vsub.s32 1, %v1004
  %v1006 = vrot.slane %v997, %v1005
  %v1009 = vsub.f32 %v979, %v1002
  %v1010 = vsub.f32 %v982, %v1006
  %v1011 = vmul.f32 %v1009, 1.442695
  %v1012 = vpow.pop %v1011
  %v1013 = vmul.f32 %v1010, 1.442695
  %v1014 = vpow.pop %v1013
  %1017 = vset.pattern.permute.xlu0 0
  %1018 = vperm.xlu0 %1017, %v1012
  %v1019 = vpop.permute.xlu0 %1018
  %1020 = vset.pattern.permute.xlu0 0
  %1021 = vperm.xlu0 %1020, %v1014
  %v1022 = vpop.permute.xlu0 %1021
  %v1023 = vlaneseq
  %v1024 = vshrl.u32 %v1023, 7
  %v1025 = vsub.s32 %v193, %v1024
  %v1026 = vrot.slane %v1019, %v1025
  %v1027 = vlaneseq
  %v1028 = vshrl.u32 %v1027, 7
  %v1029 = vsub.s32 %v193, %v1028
  %v1030 = vrot.slane %v1022, %v1029
  %v1031 = vsel %vm202, %v1030, %v1026
  %v1033 = vsel %vm205, %v1031, 0.0
  %1034 = vadd.xlane.f32.xlu0 %v1033
  %v1035 = vpop.xlane.xlu0 %1034
  %v1036 = vrcp.pop %v1035
  %v1038 = vlaneseq
  %v1039 = vshrl.u32 %v1038, 7
  %v1040 = vsub.s32 0, %v1039
  %v1041 = vrot.slane %v1036, %v1040
  %v1042 = vlaneseq
  %v1043 = vshrl.u32 %v1042, 7
  %v1044 = vsub.s32 1, %v1043
  %v1045 = vrot.slane %v1036, %v1044
  %v1048 = vmul.f32 %v1012, %v1041
  %v1049 = vmul.f32 %v1014, %v1045
  %1051 = vset.pattern.permute.xlu0 0
  %1052 = vperm.xlu0 %1051, %v1048
  %v1053 = vpop.permute.xlu0 %1052
  %1056 = vset.pattern.permute.xlu0 0
  %1057 = vperm.xlu0 %1056, %v1049
  %v1058 = vpop.permute.xlu0 %1057
  %v1060 = vmul.f32 %v1053, %v35
  %v1061 = vmul.f32 %v1058, %v36
  %v1062 = vsel %vm273, %v1060, 0.0
  %v1063 = vrot.slane %v1062, 4
  %v1064 = vadd.f32 %v1062, %v1063
  %v1065 = vrot.slane %v1064, 2
  %v1066 = vadd.f32 %v1064, %v1065
  %v1067 = vrot.slane %v1066, 1
  %v1068 = vadd.f32 %v1066, %v1067
  %v1069 = vsel %vm273, %v1061, 0.0
  %v1070 = vrot.slane %v1069, 4
  %v1071 = vadd.f32 %v1069, %v1070
  %v1072 = vrot.slane %v1071, 2
  %v1073 = vadd.f32 %v1071, %v1072
  %v1074 = vrot.slane %v1073, 1
  %v1075 = vadd.f32 %v1073, %v1074
  %s1076 = scalar_lea.vmem %s0, 4
  %v1077 = vld [vmem:[%s1076] sm:$0x3]
  %v1080 = vsel %vm202, %v1075, %v1068
  %v1081 = vsel %vm273, %v1080, 0
  %1083 = vmatprep.subr.mxu0 0.0
  %1084 = vmatpush1.msra.mxu0 0.0
  %1085 = vmatprep.subr.mxu0 0.0
  %1086 = vmatpush1.msra.mxu0 0.0
  %1087 = vmatprep.subr.mxu0 0.0
  %1088 = vmatpush1.msra.mxu0 0.0
  %1089 = vmatprep.subr.mxu0 0.0
  %1090 = vmatpush1.msra.mxu0 0.0
  %1091 = vmatprep.subr.mxu0 0.0
  %1092 = vmatpush1.msra.mxu0 0.0
  %1093 = vmatprep.subr.mxu0 0.0
  %1094 = vmatpush1.msra.mxu0 0.0
  %1095 = vmatprep.subr.mxu0 0.0
  %1096 = vmatpush1.msra.mxu0 0.0
  %1097 = vmatprep.subr.mxu0 0.0
  %1098 = vmatpush1.msra.mxu0 0.0
  %1099 = vmatprep.subr.mxu0 0.0
  %1100 = vmatpush1.msra.mxu0 %v52
  %1101 = vmatprep.subr.mxu0 0.0
  %1102 = vmatpush1.msra.mxu0 %v51
  %1103 = vmatprep.subr.mxu0 0.0
  %1104 = vmatpush1.msra.mxu0 %v50
  %1105 = vmatprep.subr.mxu0 0.0
  %1106 = vmatpush1.msra.mxu0 %v49
  %1107 = vmatprep.subr.mxu0 0.0
  %1108 = vmatpush1.msra.mxu0 %v48
  %1109 = vmatprep.subr.mxu0 0.0
  %1110 = vmatpush1.msra.mxu0 %v47
  %1111 = vmatprep.subr.mxu0 0.0
  %1112 = vmatpush1.msra.mxu0 %v46
  %1113 = vmatprep.subr.mxu0 0.0
  %1114 = vmatpush1.msra.mxu0 %v45
  %1115 = vmatprep.subr.mxu0 0.0
  %1116 = vmatpush2.msra.mxu0 0.0
  %1117 = vmatprep.subr.mxu0 0.0
  %1118 = vmatpush2.msra.mxu0 0.0
  %1119 = vmatprep.subr.mxu0 0.0
  %1120 = vmatpush2.msra.mxu0 0.0
  %1121 = vmatprep.subr.mxu0 0.0
  %1122 = vmatpush2.msra.mxu0 0.0
  %1123 = vmatprep.subr.mxu0 0.0
  %1124 = vmatpush2.msra.mxu0 0.0
  %1125 = vmatprep.subr.mxu0 0.0
  %1126 = vmatpush2.msra.mxu0 0.0
  %1127 = vmatprep.subr.mxu0 0.0
  %1128 = vmatpush2.msra.mxu0 0.0
  %1129 = vmatprep.subr.mxu0 0.0
  %1130 = vmatpush2.msra.mxu0 0.0
  %1131 = vmatprep.subr.mxu0 0.0
  %1132 = vmatpush2.msra.mxu0 0.0
  %1133 = vmatprep.subr.mxu0 0.0
  %1134 = vmatpush2.msra.mxu0 0.0
  %1135 = vmatprep.subr.mxu0 0.0
  %1136 = vmatpush2.msra.mxu0 0.0
  %1137 = vmatprep.subr.mxu0 0.0
  %1138 = vmatpush2.msra.mxu0 0.0
  %1139 = vmatprep.subr.mxu0 0.0
  %1140 = vmatpush2.msra.mxu0 0.0
  %1141 = vmatprep.subr.mxu0 0.0
  %1142 = vmatpush2.msra.mxu0 0.0
  %1143 = vmatprep.subr.mxu0 0.0
  %1144 = vmatpush2.msra.mxu0 0.0
  %1145 = vmatprep.subr.mxu0 0.0
  %1146 = vmatpush2.msra.mxu0 0.0
  %1147 = vmatprep.mubr.f32.mxu0 0.0
  %1148 = vmatmul.mubr.f32.gmra.mxu0 %v1081
  %v1149 = vpop.f32.mrf.mxu0
  %v1150 = vadd.f32 0.0, %v1149
  %v1151 = vpop.f32.mrf.mxu0
  %1152 = vdwg.mxu0
  %v1153 = vadd.f32 %v1077, %v1150
  %1154 = vmatprep.subr.mxu0 0.0
  %1155 = vmatpush1.msra.mxu0 0.0
  %1156 = vmatprep.subr.mxu0 0.0
  %1157 = vmatpush1.msra.mxu0 0.0
  %1158 = vmatprep.subr.mxu0 0.0
  %1159 = vmatpush1.msra.mxu0 0.0
  %1160 = vmatprep.subr.mxu0 0.0
  %1161 = vmatpush1.msra.mxu0 0.0
  %1162 = vmatprep.subr.mxu0 0.0
  %1163 = vmatpush1.msra.mxu0 0.0
  %1164 = vmatprep.subr.mxu0 0.0
  %1165 = vmatpush1.msra.mxu0 0.0
  %1166 = vmatprep.subr.mxu0 0.0
  %1167 = vmatpush1.msra.mxu0 0.0
  %1168 = vmatprep.subr.mxu0 0.0
  %1169 = vmatpush1.msra.mxu0 0.0
  %1170 = vmatprep.subr.mxu0 0.0
  %1171 = vmatpush1.msra.mxu0 0.0
  %1172 = vmatprep.subr.mxu0 0.0
  %1173 = vmatpush1.msra.mxu0 0.0
  %1174 = vmatprep.subr.mxu0 0.0
  %1175 = vmatpush1.msra.mxu0 0.0
  %1176 = vmatprep.subr.mxu0 0.0
  %1177 = vmatpush1.msra.mxu0 0.0
  %1178 = vmatprep.subr.mxu0 0.0
  %1179 = vmatpush1.msra.mxu0 %v56
  %1180 = vmatprep.subr.mxu0 0.0
  %1181 = vmatpush1.msra.mxu0 %v55
  %1182 = vmatprep.subr.mxu0 0.0
  %1183 = vmatpush1.msra.mxu0 %v54
  %1184 = vmatprep.subr.mxu0 0.0
  %1185 = vmatpush1.msra.mxu0 %v53
  %1186 = vmatprep.subr.mxu0 0.0
  %1187 = vmatpush2.msra.mxu0 0.0
  %1188 = vmatprep.subr.mxu0 0.0
  %1189 = vmatpush2.msra.mxu0 0.0
  %1190 = vmatprep.subr.mxu0 0.0
  %1191 = vmatpush2.msra.mxu0 0.0
  %1192 = vmatprep.subr.mxu0 0.0
  %1193 = vmatpush2.msra.mxu0 0.0
  %1194 = vmatprep.subr.mxu0 0.0
  %1195 = vmatpush2.msra.mxu0 0.0
  %1196 = vmatprep.subr.mxu0 0.0
  %1197 = vmatpush2.msra.mxu0 0.0
  %1198 = vmatprep.subr.mxu0 0.0
  %1199 = vmatpush2.msra.mxu0 0.0
  %1200 = vmatprep.subr.mxu0 0.0
  %1201 = vmatpush2.msra.mxu0 0.0
  %1202 = vmatprep.subr.mxu0 0.0
  %1203 = vmatpush2.msra.mxu0 0.0
  %1204 = vmatprep.subr.mxu0 0.0
  %1205 = vmatpush2.msra.mxu0 0.0
  %1206 = vmatprep.subr.mxu0 0.0
  %1207 = vmatpush2.msra.mxu0 0.0
  %1208 = vmatprep.subr.mxu0 0.0
  %1209 = vmatpush2.msra.mxu0 0.0
  %1210 = vmatprep.subr.mxu0 0.0
  %1211 = vmatpush2.msra.mxu0 0.0
  %1212 = vmatprep.subr.mxu0 0.0
  %1213 = vmatpush2.msra.mxu0 0.0
  %1214 = vmatprep.subr.mxu0 0.0
  %1215 = vmatpush2.msra.mxu0 0.0
  %1216 = vmatprep.subr.mxu0 0.0
  %1217 = vmatpush2.msra.mxu0 0.0
  %1218 = vmatprep.mubr.f32.mxu0 0.0
  %1219 = vmatmul.mubr.f32.gmra.mxu0 %v866
  %v1220 = vpop.f32.mrf.mxu0
  %v1221 = vadd.f32 %v369, %v1220
  %v1222 = vpop.f32.mrf.mxu0
  %1223 = vdwg.mxu0
  %v1224 = vadd.f32 %v1153, %v1221
  %v1225 = vxor.u32 %v1224, 2147483648
  %v1226 = vmul.f32 %v1225, 1.442695
  %v1227 = vpow.pop %v1226
  %v1228 = vadd.f32 %v1227, 1.0
  %v1229 = vrcp.pop %v1228
  %v1230 = vmul.f32 1.0, %v1229
  %1232 = vrot.lane.b32.xlu0 %v1221, 64
  %v1233 = vpop.permute.xlu0 %1232
  %v1235 = vmul.f32 %v1230, %v1233
  %1237 = vrot.lane.b32.xlu0 %v1235, 64
  %v1238 = vpop.permute.xlu0 %1237
  %v1240 = vadd.f32 %v1153, %v1238
  %v1241 = vtanh.pop %v1240
  %v1242 = vsub.f32 1.0, %v1230
  %1244 = vrot.lane.b32.xlu0 %v1241, 96
  %v1245 = vpop.permute.xlu0 %1244
  %v1247 = vmul.f32 %v1242, %v1245
  %v1248 = vmul.f32 %v1230, %v859
  %v1249 = vadd.f32 %v1247, %v1248
  %1251 = vrot.lane.b32.xlu0 %v1249, 96
  %v1252 = vpop.permute.xlu0 %1251
  %s1254 = scalar_lea.vmem %s10, 4
  %1255 = vst.msk [vmem:[%s1254] sm:$0x3] %vm474, %v1252
  %v1256 = vsel %vm65, %v1252, 0
  %1258 = vmatprep.subr.mxu0 0.0
  %1259 = vmatpush1.msra.mxu0 0.0
  %1260 = vmatprep.subr.mxu0 0.0
  %1261 = vmatpush1.msra.mxu0 0.0
  %1262 = vmatprep.subr.mxu0 0.0
  %1263 = vmatpush1.msra.mxu0 0.0
  %1264 = vmatprep.subr.mxu0 0.0
  %1265 = vmatpush1.msra.mxu0 0.0
  %1266 = vmatprep.subr.mxu0 0.0
  %1267 = vmatpush1.msra.mxu0 0.0
  %1268 = vmatprep.subr.mxu0 0.0
  %1269 = vmatpush1.msra.mxu0 0.0
  %1270 = vmatprep.subr.mxu0 0.0
  %1271 = vmatpush1.msra.mxu0 0.0
  %1272 = vmatprep.subr.mxu0 0.0
  %1273 = vmatpush1.msra.mxu0 0.0
  %1274 = vmatprep.subr.mxu0 0.0
  %1275 = vmatpush1.msra.mxu0 0.0
  %1276 = vmatprep.subr.mxu0 0.0
  %1277 = vmatpush1.msra.mxu0 0.0
  %1278 = vmatprep.subr.mxu0 0.0
  %1279 = vmatpush1.msra.mxu0 0.0
  %1280 = vmatprep.subr.mxu0 0.0
  %1281 = vmatpush1.msra.mxu0 0.0
  %1282 = vmatprep.subr.mxu0 0.0
  %1283 = vmatpush1.msra.mxu0 %v42
  %1284 = vmatprep.subr.mxu0 0.0
  %1285 = vmatpush1.msra.mxu0 %v41
  %1286 = vmatprep.subr.mxu0 0.0
  %1287 = vmatpush1.msra.mxu0 %v40
  %1288 = vmatprep.subr.mxu0 0.0
  %1289 = vmatpush1.msra.mxu0 %v39
  %1290 = vmatprep.subr.mxu0 0.0
  %1291 = vmatpush2.msra.mxu0 0.0
  %1292 = vmatprep.subr.mxu0 0.0
  %1293 = vmatpush2.msra.mxu0 0.0
  %1294 = vmatprep.subr.mxu0 0.0
  %1295 = vmatpush2.msra.mxu0 0.0
  %1296 = vmatprep.subr.mxu0 0.0
  %1297 = vmatpush2.msra.mxu0 0.0
  %1298 = vmatprep.subr.mxu0 0.0
  %1299 = vmatpush2.msra.mxu0 0.0
  %1300 = vmatprep.subr.mxu0 0.0
  %1301 = vmatpush2.msra.mxu0 0.0
  %1302 = vmatprep.subr.mxu0 0.0
  %1303 = vmatpush2.msra.mxu0 0.0
  %1304 = vmatprep.subr.mxu0 0.0
  %1305 = vmatpush2.msra.mxu0 0.0
  %1306 = vmatprep.subr.mxu0 0.0
  %1307 = vmatpush2.msra.mxu0 0.0
  %1308 = vmatprep.subr.mxu0 0.0
  %1309 = vmatpush2.msra.mxu0 0.0
  %1310 = vmatprep.subr.mxu0 0.0
  %1311 = vmatpush2.msra.mxu0 0.0
  %1312 = vmatprep.subr.mxu0 0.0
  %1313 = vmatpush2.msra.mxu0 0.0
  %1314 = vmatprep.subr.mxu0 0.0
  %1315 = vmatpush2.msra.mxu0 0.0
  %1316 = vmatprep.subr.mxu0 0.0
  %1317 = vmatpush2.msra.mxu0 0.0
  %1318 = vmatprep.subr.mxu0 0.0
  %1319 = vmatpush2.msra.mxu0 0.0
  %1320 = vmatprep.subr.mxu0 0.0
  %1321 = vmatpush2.msra.mxu0 0.0
  %1322 = vmatprep.mubr.f32.mxu0 0.0
  %1323 = vmatmul.mubr.f32.gmra.mxu0 %v1256
  %v1324 = vpop.f32.mrf.mxu0
  %v1325 = vadd.f32 %v63, %v1324
  %v1326 = vpop.f32.mrf.mxu0
  %1327 = vdwg.mxu0
  %v1330 = vunpack.c.l.s4 1966171168
  %v1331 = vunpack.c.0.s8 %v1330
  %v1332 = vlaneseq
  %v1333 = vshrl.u32 %v1332, 7
  %v1334 = vsub.s32 %v1331, %v1333
  %v1335 = vrot.slane %v1325, %v1334
  %v1336 = vcombine.high %v1335, %v1335
  %v1338 = vunpack.c.l.s4 1966171168
  %v1339 = vunpack.c.0.s8 %v1338
  %v1340 = vlaneseq
  %v1341 = vshrl.u32 %v1340, 7
  %v1342 = vsub.s32 %v1339, %v1341
  %v1343 = vrot.slane %v1335, %v1342
  %v1345 = vunpack.c.l.s4 1966171168
  %v1346 = vunpack.c.0.s8 %v1345
  %v1347 = vlaneseq
  %v1348 = vshrl.u32 %v1347, 7
  %v1349 = vsub.s32 %v1346, %v1348
  %v1350 = vrot.slane %v1336, %v1349
  %v1351 = vlaneseq
  %v1352 = vshrl.u32 %v1351, 7
  %v1353 = vsub.s32 0, %v1352
  %v1354 = vrot.slane %v1343, %v1353
  %v1355 = vlaneseq
  %v1356 = vshrl.u32 %v1355, 7
  %v1357 = vsub.s32 0, %v1356
  %v1358 = vrot.slane %v1350, %v1357
  %v1361 = vadd.f32 %v1354, %v37
  %v1362 = vadd.f32 %v1358, %v38
  %v1363 = vtanh.pop %v1361
  %v1364 = vtanh.pop %v1362
  %v1365 = vmul.f32 %v1363, %v180
  %v1366 = vmul.f32 %v1364, %v180
  %v1367 = vsel %vm65, %v1365, 0.0
  %1368 = vadd.xlane.f32.xlu0 %v1367
  %v1369 = vpop.xlane.xlu0 %1368
  %v1370 = vsel %vm65, %v1366, 0.0
  %1371 = vadd.xlane.f32.xlu0 %v1370
  %v1372 = vpop.xlane.xlu0 %1371
  %v1375 = vlaneseq
  %v1376 = vshrl.u32 %v1375, 7
  %v1377 = vsub.s32 %v193, %v1376
  %v1378 = vrot.slane %v1369, %v1377
  %v1379 = vlaneseq
  %v1380 = vshrl.u32 %v1379, 7
  %v1381 = vsub.s32 %v193, %v1380
  %v1382 = vrot.slane %v1372, %v1381
  %v1383 = vsel %vm202, %v1382, %v1378
  %v1385 = vsel %vm205, %v1383, -inf
  %1386 = vmax.xlane.f32.xlu0 %v1385
  %v1387 = vpop.xlane.xlu0 %1386
  %v1389 = vlaneseq
  %v1390 = vshrl.u32 %v1389, 7
  %v1391 = vsub.s32 0, %v1390
  %v1392 = vrot.slane %v1387, %v1391
  %v1393 = vlaneseq
  %v1394 = vshrl.u32 %v1393, 7
  %v1395 = vsub.s32 1, %v1394
  %v1396 = vrot.slane %v1387, %v1395
  %v1399 = vsub.f32 %v1369, %v1392
  %v1400 = vsub.f32 %v1372, %v1396
  %v1401 = vmul.f32 %v1399, 1.442695
  %v1402 = vpow.pop %v1401
  %v1403 = vmul.f32 %v1400, 1.442695
  %v1404 = vpow.pop %v1403
  %1407 = vset.pattern.permute.xlu0 0
  %1408 = vperm.xlu0 %1407, %v1402
  %v1409 = vpop.permute.xlu0 %1408
  %1410 = vset.pattern.permute.xlu0 0
  %1411 = vperm.xlu0 %1410, %v1404
  %v1412 = vpop.permute.xlu0 %1411
  %v1413 = vlaneseq
  %v1414 = vshrl.u32 %v1413, 7
  %v1415 = vsub.s32 %v193, %v1414
  %v1416 = vrot.slane %v1409, %v1415
  %v1417 = vlaneseq
  %v1418 = vshrl.u32 %v1417, 7
  %v1419 = vsub.s32 %v193, %v1418
  %v1420 = vrot.slane %v1412, %v1419
  %v1421 = vsel %vm202, %v1420, %v1416
  %v1423 = vsel %vm205, %v1421, 0.0
  %1424 = vadd.xlane.f32.xlu0 %v1423
  %v1425 = vpop.xlane.xlu0 %1424
  %v1426 = vrcp.pop %v1425
  %v1428 = vlaneseq
  %v1429 = vshrl.u32 %v1428, 7
  %v1430 = vsub.s32 0, %v1429
  %v1431 = vrot.slane %v1426, %v1430
  %v1432 = vlaneseq
  %v1433 = vshrl.u32 %v1432, 7
  %v1434 = vsub.s32 1, %v1433
  %v1435 = vrot.slane %v1426, %v1434
  %v1438 = vmul.f32 %v1402, %v1431
  %v1439 = vmul.f32 %v1404, %v1435
  %1441 = vset.pattern.permute.xlu0 0
  %1442 = vperm.xlu0 %1441, %v1438
  %v1443 = vpop.permute.xlu0 %1442
  %1446 = vset.pattern.permute.xlu0 0
  %1447 = vperm.xlu0 %1446, %v1439
  %v1448 = vpop.permute.xlu0 %1447
  %v1450 = vmul.f32 %v1443, %v35
  %v1451 = vmul.f32 %v1448, %v36
  %v1452 = vsel %vm273, %v1450, 0.0
  %v1453 = vrot.slane %v1452, 4
  %v1454 = vadd.f32 %v1452, %v1453
  %v1455 = vrot.slane %v1454, 2
  %v1456 = vadd.f32 %v1454, %v1455
  %v1457 = vrot.slane %v1456, 1
  %v1458 = vadd.f32 %v1456, %v1457
  %v1459 = vsel %vm273, %v1451, 0.0
  %v1460 = vrot.slane %v1459, 4
  %v1461 = vadd.f32 %v1459, %v1460
  %v1462 = vrot.slane %v1461, 2
  %v1463 = vadd.f32 %v1461, %v1462
  %v1464 = vrot.slane %v1463, 1
  %v1465 = vadd.f32 %v1463, %v1464
  %s1466 = scalar_lea.vmem %s0, 6
  %v1467 = vld [vmem:[%s1466] sm:$0x3]
  %v1470 = vsel %vm202, %v1465, %v1458
  %v1471 = vsel %vm273, %v1470, 0
  %1473 = vmatprep.subr.mxu0 0.0
  %1474 = vmatpush1.msra.mxu0 0.0
  %1475 = vmatprep.subr.mxu0 0.0
  %1476 = vmatpush1.msra.mxu0 0.0
  %1477 = vmatprep.subr.mxu0 0.0
  %1478 = vmatpush1.msra.mxu0 0.0
  %1479 = vmatprep.subr.mxu0 0.0
  %1480 = vmatpush1.msra.mxu0 0.0
  %1481 = vmatprep.subr.mxu0 0.0
  %1482 = vmatpush1.msra.mxu0 0.0
  %1483 = vmatprep.subr.mxu0 0.0
  %1484 = vmatpush1.msra.mxu0 0.0
  %1485 = vmatprep.subr.mxu0 0.0
  %1486 = vmatpush1.msra.mxu0 0.0
  %1487 = vmatprep.subr.mxu0 0.0
  %1488 = vmatpush1.msra.mxu0 0.0
  %1489 = vmatprep.subr.mxu0 0.0
  %1490 = vmatpush1.msra.mxu0 %v52
  %1491 = vmatprep.subr.mxu0 0.0
  %1492 = vmatpush1.msra.mxu0 %v51
  %1493 = vmatprep.subr.mxu0 0.0
  %1494 = vmatpush1.msra.mxu0 %v50
  %1495 = vmatprep.subr.mxu0 0.0
  %1496 = vmatpush1.msra.mxu0 %v49
  %1497 = vmatprep.subr.mxu0 0.0
  %1498 = vmatpush1.msra.mxu0 %v48
  %1499 = vmatprep.subr.mxu0 0.0
  %1500 = vmatpush1.msra.mxu0 %v47
  %1501 = vmatprep.subr.mxu0 0.0
  %1502 = vmatpush1.msra.mxu0 %v46
  %1503 = vmatprep.subr.mxu0 0.0
  %1504 = vmatpush1.msra.mxu0 %v45
  %1505 = vmatprep.subr.mxu0 0.0
  %1506 = vmatpush2.msra.mxu0 0.0
  %1507 = vmatprep.subr.mxu0 0.0
  %1508 = vmatpush2.msra.mxu0 0.0
  %1509 = vmatprep.subr.mxu0 0.0
  %1510 = vmatpush2.msra.mxu0 0.0
  %1511 = vmatprep.subr.mxu0 0.0
  %1512 = vmatpush2.msra.mxu0 0.0
  %1513 = vmatprep.subr.mxu0 0.0
  %1514 = vmatpush2.msra.mxu0 0.0
  %1515 = vmatprep.subr.mxu0 0.0
  %1516 = vmatpush2.msra.mxu0 0.0
  %1517 = vmatprep.subr.mxu0 0.0
  %1518 = vmatpush2.msra.mxu0 0.0
  %1519 = vmatprep.subr.mxu0 0.0
  %1520 = vmatpush2.msra.mxu0 0.0
  %1521 = vmatprep.subr.mxu0 0.0
  %1522 = vmatpush2.msra.mxu0 0.0
  %1523 = vmatprep.subr.mxu0 0.0
  %1524 = vmatpush2.msra.mxu0 0.0
  %1525 = vmatprep.subr.mxu0 0.0
  %1526 = vmatpush2.msra.mxu0 0.0
  %1527 = vmatprep.subr.mxu0 0.0
  %1528 = vmatpush2.msra.mxu0 0.0
  %1529 = vmatprep.subr.mxu0 0.0
  %1530 = vmatpush2.msra.mxu0 0.0
  %1531 = vmatprep.subr.mxu0 0.0
  %1532 = vmatpush2.msra.mxu0 0.0
  %1533 = vmatprep.subr.mxu0 0.0
  %1534 = vmatpush2.msra.mxu0 0.0
  %1535 = vmatprep.subr.mxu0 0.0
  %1536 = vmatpush2.msra.mxu0 0.0
  %1537 = vmatprep.mubr.f32.mxu0 0.0
  %1538 = vmatmul.mubr.f32.gmra.mxu0 %v1471
  %v1539 = vpop.f32.mrf.mxu0
  %v1540 = vadd.f32 0.0, %v1539
  %v1541 = vpop.f32.mrf.mxu0
  %1542 = vdwg.mxu0
  %v1543 = vadd.f32 %v1467, %v1540
  %1544 = vmatprep.subr.mxu0 0.0
  %1545 = vmatpush1.msra.mxu0 0.0
  %1546 = vmatprep.subr.mxu0 0.0
  %1547 = vmatpush1.msra.mxu0 0.0
  %1548 = vmatprep.subr.mxu0 0.0
  %1549 = vmatpush1.msra.mxu0 0.0
  %1550 = vmatprep.subr.mxu0 0.0
  %1551 = vmatpush1.msra.mxu0 0.0
  %1552 = vmatprep.subr.mxu0 0.0
  %1553 = vmatpush1.msra.mxu0 0.0
  %1554 = vmatprep.subr.mxu0 0.0
  %1555 = vmatpush1.msra.mxu0 0.0
  %1556 = vmatprep.subr.mxu0 0.0
  %1557 = vmatpush1.msra.mxu0 0.0
  %1558 = vmatprep.subr.mxu0 0.0
  %1559 = vmatpush1.msra.mxu0 0.0
  %1560 = vmatprep.subr.mxu0 0.0
  %1561 = vmatpush1.msra.mxu0 0.0
  %1562 = vmatprep.subr.mxu0 0.0
  %1563 = vmatpush1.msra.mxu0 0.0
  %1564 = vmatprep.subr.mxu0 0.0
  %1565 = vmatpush1.msra.mxu0 0.0
  %1566 = vmatprep.subr.mxu0 0.0
  %1567 = vmatpush1.msra.mxu0 0.0
  %1568 = vmatprep.subr.mxu0 0.0
  %1569 = vmatpush1.msra.mxu0 %v56
  %1570 = vmatprep.subr.mxu0 0.0
  %1571 = vmatpush1.msra.mxu0 %v55
  %1572 = vmatprep.subr.mxu0 0.0
  %1573 = vmatpush1.msra.mxu0 %v54
  %1574 = vmatprep.subr.mxu0 0.0
  %1575 = vmatpush1.msra.mxu0 %v53
  %1576 = vmatprep.subr.mxu0 0.0
  %1577 = vmatpush2.msra.mxu0 0.0
  %1578 = vmatprep.subr.mxu0 0.0
  %1579 = vmatpush2.msra.mxu0 0.0
  %1580 = vmatprep.subr.mxu0 0.0
  %1581 = vmatpush2.msra.mxu0 0.0
  %1582 = vmatprep.subr.mxu0 0.0
  %1583 = vmatpush2.msra.mxu0 0.0
  %1584 = vmatprep.subr.mxu0 0.0
  %1585 = vmatpush2.msra.mxu0 0.0
  %1586 = vmatprep.subr.mxu0 0.0
  %1587 = vmatpush2.msra.mxu0 0.0
  %1588 = vmatprep.subr.mxu0 0.0
  %1589 = vmatpush2.msra.mxu0 0.0
  %1590 = vmatprep.subr.mxu0 0.0
  %1591 = vmatpush2.msra.mxu0 0.0
  %1592 = vmatprep.subr.mxu0 0.0
  %1593 = vmatpush2.msra.mxu0 0.0
  %1594 = vmatprep.subr.mxu0 0.0
  %1595 = vmatpush2.msra.mxu0 0.0
  %1596 = vmatprep.subr.mxu0 0.0
  %1597 = vmatpush2.msra.mxu0 0.0
  %1598 = vmatprep.subr.mxu0 0.0
  %1599 = vmatpush2.msra.mxu0 0.0
  %1600 = vmatprep.subr.mxu0 0.0
  %1601 = vmatpush2.msra.mxu0 0.0
  %1602 = vmatprep.subr.mxu0 0.0
  %1603 = vmatpush2.msra.mxu0 0.0
  %1604 = vmatprep.subr.mxu0 0.0
  %1605 = vmatpush2.msra.mxu0 0.0
  %1606 = vmatprep.subr.mxu0 0.0
  %1607 = vmatpush2.msra.mxu0 0.0
  %1608 = vmatprep.mubr.f32.mxu0 0.0
  %1609 = vmatmul.mubr.f32.gmra.mxu0 %v1256
  %v1610 = vpop.f32.mrf.mxu0
  %v1611 = vadd.f32 %v369, %v1610
  %v1612 = vpop.f32.mrf.mxu0
  %1613 = vdwg.mxu0
  %v1614 = vadd.f32 %v1543, %v1611
  %v1615 = vxor.u32 %v1614, 2147483648
  %v1616 = vmul.f32 %v1615, 1.442695
  %v1617 = vpow.pop %v1616
  %v1618 = vadd.f32 %v1617, 1.0
  %v1619 = vrcp.pop %v1618
  %v1620 = vmul.f32 1.0, %v1619
  %1622 = vrot.lane.b32.xlu0 %v1611, 64
  %v1623 = vpop.permute.xlu0 %1622
  %v1625 = vmul.f32 %v1620, %v1623
  %1627 = vrot.lane.b32.xlu0 %v1625, 64
  %v1628 = vpop.permute.xlu0 %1627
  %v1630 = vadd.f32 %v1543, %v1628
  %v1631 = vtanh.pop %v1630
  %v1632 = vsub.f32 1.0, %v1620
  %1634 = vrot.lane.b32.xlu0 %v1631, 96
  %v1635 = vpop.permute.xlu0 %1634
  %v1637 = vmul.f32 %v1632, %v1635
  %v1638 = vmul.f32 %v1620, %v1249
  %v1639 = vadd.f32 %v1637, %v1638
  %1641 = vrot.lane.b32.xlu0 %v1639, 96
  %v1642 = vpop.permute.xlu0 %1641
  %s1644 = scalar_lea.vmem %s10, 6
  %1645 = vst.msk [vmem:[%s1644] sm:$0x3] %vm474, %v1642
  %v1646 = vsel %vm65, %v1642, 0
  %1648 = vmatprep.subr.mxu0 0.0
  %1649 = vmatpush1.msra.mxu0 0.0
  %1650 = vmatprep.subr.mxu0 0.0
  %1651 = vmatpush1.msra.mxu0 0.0
  %1652 = vmatprep.subr.mxu0 0.0
  %1653 = vmatpush1.msra.mxu0 0.0
  %1654 = vmatprep.subr.mxu0 0.0
  %1655 = vmatpush1.msra.mxu0 0.0
  %1656 = vmatprep.subr.mxu0 0.0
  %1657 = vmatpush1.msra.mxu0 0.0
  %1658 = vmatprep.subr.mxu0 0.0
  %1659 = vmatpush1.msra.mxu0 0.0
  %1660 = vmatprep.subr.mxu0 0.0
  %1661 = vmatpush1.msra.mxu0 0.0
  %1662 = vmatprep.subr.mxu0 0.0
  %1663 = vmatpush1.msra.mxu0 0.0
  %1664 = vmatprep.subr.mxu0 0.0
  %1665 = vmatpush1.msra.mxu0 0.0
  %1666 = vmatprep.subr.mxu0 0.0
  %1667 = vmatpush1.msra.mxu0 0.0
  %1668 = vmatprep.subr.mxu0 0.0
  %1669 = vmatpush1.msra.mxu0 0.0
  %1670 = vmatprep.subr.mxu0 0.0
  %1671 = vmatpush1.msra.mxu0 0.0
  %1672 = vmatprep.subr.mxu0 0.0
  %1673 = vmatpush1.msra.mxu0 %v42
  %1674 = vmatprep.subr.mxu0 0.0
  %1675 = vmatpush1.msra.mxu0 %v41
  %1676 = vmatprep.subr.mxu0 0.0
  %1677 = vmatpush1.msra.mxu0 %v40
  %1678 = vmatprep.subr.mxu0 0.0
  %1679 = vmatpush1.msra.mxu0 %v39
  %1680 = vmatprep.subr.mxu0 0.0
  %1681 = vmatpush2.msra.mxu0 0.0
  %1682 = vmatprep.subr.mxu0 0.0
  %1683 = vmatpush2.msra.mxu0 0.0
  %1684 = vmatprep.subr.mxu0 0.0
  %1685 = vmatpush2.msra.mxu0 0.0
  %1686 = vmatprep.subr.mxu0 0.0
  %1687 = vmatpush2.msra.mxu0 0.0
  %1688 = vmatprep.subr.mxu0 0.0
  %1689 = vmatpush2.msra.mxu0 0.0
  %1690 = vmatprep.subr.mxu0 0.0
  %1691 = vmatpush2.msra.mxu0 0.0
  %1692 = vmatprep.subr.mxu0 0.0
  %1693 = vmatpush2.msra.mxu0 0.0
  %1694 = vmatprep.subr.mxu0 0.0
  %1695 = vmatpush2.msra.mxu0 0.0
  %1696 = vmatprep.subr.mxu0 0.0
  %1697 = vmatpush2.msra.mxu0 0.0
  %1698 = vmatprep.subr.mxu0 0.0
  %1699 = vmatpush2.msra.mxu0 0.0
  %1700 = vmatprep.subr.mxu0 0.0
  %1701 = vmatpush2.msra.mxu0 0.0
  %1702 = vmatprep.subr.mxu0 0.0
  %1703 = vmatpush2.msra.mxu0 0.0
  %1704 = vmatprep.subr.mxu0 0.0
  %1705 = vmatpush2.msra.mxu0 0.0
  %1706 = vmatprep.subr.mxu0 0.0
  %1707 = vmatpush2.msra.mxu0 0.0
  %1708 = vmatprep.subr.mxu0 0.0
  %1709 = vmatpush2.msra.mxu0 0.0
  %1710 = vmatprep.subr.mxu0 0.0
  %1711 = vmatpush2.msra.mxu0 0.0
  %1712 = vmatprep.mubr.f32.mxu0 0.0
  %1713 = vmatmul.mubr.f32.gmra.mxu0 %v1646
  %v1714 = vpop.f32.mrf.mxu0
  %v1715 = vadd.f32 %v63, %v1714
  %v1716 = vpop.f32.mrf.mxu0
  %1717 = vdwg.mxu0
  %v1720 = vunpack.c.l.s4 1966171168
  %v1721 = vunpack.c.0.s8 %v1720
  %v1722 = vlaneseq
  %v1723 = vshrl.u32 %v1722, 7
  %v1724 = vsub.s32 %v1721, %v1723
  %v1725 = vrot.slane %v1715, %v1724
  %v1726 = vcombine.high %v1725, %v1725
  %v1728 = vunpack.c.l.s4 1966171168
  %v1729 = vunpack.c.0.s8 %v1728
  %v1730 = vlaneseq
  %v1731 = vshrl.u32 %v1730, 7
  %v1732 = vsub.s32 %v1729, %v1731
  %v1733 = vrot.slane %v1725, %v1732
  %v1735 = vunpack.c.l.s4 1966171168
  %v1736 = vunpack.c.0.s8 %v1735
  %v1737 = vlaneseq
  %v1738 = vshrl.u32 %v1737, 7
  %v1739 = vsub.s32 %v1736, %v1738
  %v1740 = vrot.slane %v1726, %v1739
  %v1741 = vlaneseq
  %v1742 = vshrl.u32 %v1741, 7
  %v1743 = vsub.s32 0, %v1742
  %v1744 = vrot.slane %v1733, %v1743
  %v1745 = vlaneseq
  %v1746 = vshrl.u32 %v1745, 7
  %v1747 = vsub.s32 0, %v1746
  %v1748 = vrot.slane %v1740, %v1747
  %v1751 = vadd.f32 %v1744, %v37
  %v1752 = vadd.f32 %v1748, %v38
  %v1753 = vtanh.pop %v1751
  %v1754 = vtanh.pop %v1752
  %v1755 = vmul.f32 %v1753, %v180
  %v1756 = vmul.f32 %v1754, %v180
  %v1757 = vsel %vm65, %v1755, 0.0
  %1758 = vadd.xlane.f32.xlu0 %v1757
  %v1759 = vpop.xlane.xlu0 %1758
  %v1760 = vsel %vm65, %v1756, 0.0
  %1761 = vadd.xlane.f32.xlu0 %v1760
  %v1762 = vpop.xlane.xlu0 %1761
  %v1765 = vlaneseq
  %v1766 = vshrl.u32 %v1765, 7
  %v1767 = vsub.s32 %v193, %v1766
  %v1768 = vrot.slane %v1759, %v1767
  %v1769 = vlaneseq
  %v1770 = vshrl.u32 %v1769, 7
  %v1771 = vsub.s32 %v193, %v1770
  %v1772 = vrot.slane %v1762, %v1771
  %v1773 = vsel %vm202, %v1772, %v1768
  %v1775 = vsel %vm205, %v1773, -inf
  %1776 = vmax.xlane.f32.xlu0 %v1775
  %v1777 = vpop.xlane.xlu0 %1776
  %v1779 = vlaneseq
  %v1780 = vshrl.u32 %v1779, 7
  %v1781 = vsub.s32 0, %v1780
  %v1782 = vrot.slane %v1777, %v1781
  %v1783 = vlaneseq
  %v1784 = vshrl.u32 %v1783, 7
  %v1785 = vsub.s32 1, %v1784
  %v1786 = vrot.slane %v1777, %v1785
  %v1789 = vsub.f32 %v1759, %v1782
  %v1790 = vsub.f32 %v1762, %v1786
  %v1791 = vmul.f32 %v1789, 1.442695
  %v1792 = vpow.pop %v1791
  %v1793 = vmul.f32 %v1790, 1.442695
  %v1794 = vpow.pop %v1793
  %1797 = vset.pattern.permute.xlu0 0
  %1798 = vperm.xlu0 %1797, %v1792
  %v1799 = vpop.permute.xlu0 %1798
  %1800 = vset.pattern.permute.xlu0 0
  %1801 = vperm.xlu0 %1800, %v1794
  %v1802 = vpop.permute.xlu0 %1801
  %v1803 = vlaneseq
  %v1804 = vshrl.u32 %v1803, 7
  %v1805 = vsub.s32 %v193, %v1804
  %v1806 = vrot.slane %v1799, %v1805
  %v1807 = vlaneseq
  %v1808 = vshrl.u32 %v1807, 7
  %v1809 = vsub.s32 %v193, %v1808
  %v1810 = vrot.slane %v1802, %v1809
  %v1811 = vsel %vm202, %v1810, %v1806
  %v1813 = vsel %vm205, %v1811, 0.0
  %1814 = vadd.xlane.f32.xlu0 %v1813
  %v1815 = vpop.xlane.xlu0 %1814
  %v1816 = vrcp.pop %v1815
  %v1818 = vlaneseq
  %v1819 = vshrl.u32 %v1818, 7
  %v1820 = vsub.s32 0, %v1819
  %v1821 = vrot.slane %v1816, %v1820
  %v1822 = vlaneseq
  %v1823 = vshrl.u32 %v1822, 7
  %v1824 = vsub.s32 1, %v1823
  %v1825 = vrot.slane %v1816, %v1824
  %v1828 = vmul.f32 %v1792, %v1821
  %v1829 = vmul.f32 %v1794, %v1825
  %1831 = vset.pattern.permute.xlu0 0
  %1832 = vperm.xlu0 %1831, %v1828
  %v1833 = vpop.permute.xlu0 %1832
  %1836 = vset.pattern.permute.xlu0 0
  %1837 = vperm.xlu0 %1836, %v1829
  %v1838 = vpop.permute.xlu0 %1837
  %v1840 = vmul.f32 %v1833, %v35
  %v1841 = vmul.f32 %v1838, %v36
  %v1842 = vsel %vm273, %v1840, 0.0
  %v1843 = vrot.slane %v1842, 4
  %v1844 = vadd.f32 %v1842, %v1843
  %v1845 = vrot.slane %v1844, 2
  %v1846 = vadd.f32 %v1844, %v1845
  %v1847 = vrot.slane %v1846, 1
  %v1848 = vadd.f32 %v1846, %v1847
  %v1849 = vsel %vm273, %v1841, 0.0
  %v1850 = vrot.slane %v1849, 4
  %v1851 = vadd.f32 %v1849, %v1850
  %v1852 = vrot.slane %v1851, 2
  %v1853 = vadd.f32 %v1851, %v1852
  %v1854 = vrot.slane %v1853, 1
  %v1855 = vadd.f32 %v1853, %v1854
  %s1856 = scalar_lea.vmem %s0, 8
  %v1857 = vld [vmem:[%s1856] sm:$0x3]
  %v1860 = vsel %vm202, %v1855, %v1848
  %v1861 = vsel %vm273, %v1860, 0
  %1863 = vmatprep.subr.mxu0 0.0
  %1864 = vmatpush1.msra.mxu0 0.0
  %1865 = vmatprep.subr.mxu0 0.0
  %1866 = vmatpush1.msra.mxu0 0.0
  %1867 = vmatprep.subr.mxu0 0.0
  %1868 = vmatpush1.msra.mxu0 0.0
  %1869 = vmatprep.subr.mxu0 0.0
  %1870 = vmatpush1.msra.mxu0 0.0
  %1871 = vmatprep.subr.mxu0 0.0
  %1872 = vmatpush1.msra.mxu0 0.0
  %1873 = vmatprep.subr.mxu0 0.0
  %1874 = vmatpush1.msra.mxu0 0.0
  %1875 = vmatprep.subr.mxu0 0.0
  %1876 = vmatpush1.msra.mxu0 0.0
  %1877 = vmatprep.subr.mxu0 0.0
  %1878 = vmatpush1.msra.mxu0 0.0
  %1879 = vmatprep.subr.mxu0 0.0
  %1880 = vmatpush1.msra.mxu0 %v52
  %1881 = vmatprep.subr.mxu0 0.0
  %1882 = vmatpush1.msra.mxu0 %v51
  %1883 = vmatprep.subr.mxu0 0.0
  %1884 = vmatpush1.msra.mxu0 %v50
  %1885 = vmatprep.subr.mxu0 0.0
  %1886 = vmatpush1.msra.mxu0 %v49
  %1887 = vmatprep.subr.mxu0 0.0
  %1888 = vmatpush1.msra.mxu0 %v48
  %1889 = vmatprep.subr.mxu0 0.0
  %1890 = vmatpush1.msra.mxu0 %v47
  %1891 = vmatprep.subr.mxu0 0.0
  %1892 = vmatpush1.msra.mxu0 %v46
  %1893 = vmatprep.subr.mxu0 0.0
  %1894 = vmatpush1.msra.mxu0 %v45
  %1895 = vmatprep.subr.mxu0 0.0
  %1896 = vmatpush2.msra.mxu0 0.0
  %1897 = vmatprep.subr.mxu0 0.0
  %1898 = vmatpush2.msra.mxu0 0.0
  %1899 = vmatprep.subr.mxu0 0.0
  %1900 = vmatpush2.msra.mxu0 0.0
  %1901 = vmatprep.subr.mxu0 0.0
  %1902 = vmatpush2.msra.mxu0 0.0
  %1903 = vmatprep.subr.mxu0 0.0
  %1904 = vmatpush2.msra.mxu0 0.0
  %1905 = vmatprep.subr.mxu0 0.0
  %1906 = vmatpush2.msra.mxu0 0.0
  %1907 = vmatprep.subr.mxu0 0.0
  %1908 = vmatpush2.msra.mxu0 0.0
  %1909 = vmatprep.subr.mxu0 0.0
  %1910 = vmatpush2.msra.mxu0 0.0
  %1911 = vmatprep.subr.mxu0 0.0
  %1912 = vmatpush2.msra.mxu0 0.0
  %1913 = vmatprep.subr.mxu0 0.0
  %1914 = vmatpush2.msra.mxu0 0.0
  %1915 = vmatprep.subr.mxu0 0.0
  %1916 = vmatpush2.msra.mxu0 0.0
  %1917 = vmatprep.subr.mxu0 0.0
  %1918 = vmatpush2.msra.mxu0 0.0
  %1919 = vmatprep.subr.mxu0 0.0
  %1920 = vmatpush2.msra.mxu0 0.0
  %1921 = vmatprep.subr.mxu0 0.0
  %1922 = vmatpush2.msra.mxu0 0.0
  %1923 = vmatprep.subr.mxu0 0.0
  %1924 = vmatpush2.msra.mxu0 0.0
  %1925 = vmatprep.subr.mxu0 0.0
  %1926 = vmatpush2.msra.mxu0 0.0
  %1927 = vmatprep.mubr.f32.mxu0 0.0
  %1928 = vmatmul.mubr.f32.gmra.mxu0 %v1861
  %v1929 = vpop.f32.mrf.mxu0
  %v1930 = vadd.f32 0.0, %v1929
  %v1931 = vpop.f32.mrf.mxu0
  %1932 = vdwg.mxu0
  %v1933 = vadd.f32 %v1857, %v1930
  %1934 = vmatprep.subr.mxu0 0.0
  %1935 = vmatpush1.msra.mxu0 0.0
  %1936 = vmatprep.subr.mxu0 0.0
  %1937 = vmatpush1.msra.mxu0 0.0
  %1938 = vmatprep.subr.mxu0 0.0
  %1939 = vmatpush1.msra.mxu0 0.0
  %1940 = vmatprep.subr.mxu0 0.0
  %1941 = vmatpush1.msra.mxu0 0.0
  %1942 = vmatprep.subr.mxu0 0.0
  %1943 = vmatpush1.msra.mxu0 0.0
  %1944 = vmatprep.subr.mxu0 0.0
  %1945 = vmatpush1.msra.mxu0 0.0
  %1946 = vmatprep.subr.mxu0 0.0
  %1947 = vmatpush1.msra.mxu0 0.0
  %1948 = vmatprep.subr.mxu0 0.0
  %1949 = vmatpush1.msra.mxu0 0.0
  %1950 = vmatprep.subr.mxu0 0.0
  %1951 = vmatpush1.msra.mxu0 0.0
  %1952 = vmatprep.subr.mxu0 0.0
  %1953 = vmatpush1.msra.mxu0 0.0
  %1954 = vmatprep.subr.mxu0 0.0
  %1955 = vmatpush1.msra.mxu0 0.0
  %1956 = vmatprep.subr.mxu0 0.0
  %1957 = vmatpush1.msra.mxu0 0.0
  %1958 = vmatprep.subr.mxu0 0.0
  %1959 = vmatpush1.msra.mxu0 %v56
  %1960 = vmatprep.subr.mxu0 0.0
  %1961 = vmatpush1.msra.mxu0 %v55
  %1962 = vmatprep.subr.mxu0 0.0
  %1963 = vmatpush1.msra.mxu0 %v54
  %1964 = vmatprep.subr.mxu0 0.0
  %1965 = vmatpush1.msra.mxu0 %v53
  %1966 = vmatprep.subr.mxu0 0.0
  %1967 = vmatpush2.msra.mxu0 0.0
  %1968 = vmatprep.subr.mxu0 0.0
  %1969 = vmatpush2.msra.mxu0 0.0
  %1970 = vmatprep.subr.mxu0 0.0
  %1971 = vmatpush2.msra.mxu0 0.0
  %1972 = vmatprep.subr.mxu0 0.0
  %1973 = vmatpush2.msra.mxu0 0.0
  %1974 = vmatprep.subr.mxu0 0.0
  %1975 = vmatpush2.msra.mxu0 0.0
  %1976 = vmatprep.subr.mxu0 0.0
  %1977 = vmatpush2.msra.mxu0 0.0
  %1978 = vmatprep.subr.mxu0 0.0
  %1979 = vmatpush2.msra.mxu0 0.0
  %1980 = vmatprep.subr.mxu0 0.0
  %1981 = vmatpush2.msra.mxu0 0.0
  %1982 = vmatprep.subr.mxu0 0.0
  %1983 = vmatpush2.msra.mxu0 0.0
  %1984 = vmatprep.subr.mxu0 0.0
  %1985 = vmatpush2.msra.mxu0 0.0
  %1986 = vmatprep.subr.mxu0 0.0
  %1987 = vmatpush2.msra.mxu0 0.0
  %1988 = vmatprep.subr.mxu0 0.0
  %1989 = vmatpush2.msra.mxu0 0.0
  %1990 = vmatprep.subr.mxu0 0.0
  %1991 = vmatpush2.msra.mxu0 0.0
  %1992 = vmatprep.subr.mxu0 0.0
  %1993 = vmatpush2.msra.mxu0 0.0
  %1994 = vmatprep.subr.mxu0 0.0
  %1995 = vmatpush2.msra.mxu0 0.0
  %1996 = vmatprep.subr.mxu0 0.0
  %1997 = vmatpush2.msra.mxu0 0.0
  %1998 = vmatprep.mubr.f32.mxu0 0.0
  %1999 = vmatmul.mubr.f32.gmra.mxu0 %v1646
  %v2000 = vpop.f32.mrf.mxu0
  %v2001 = vadd.f32 %v369, %v2000
  %v2002 = vpop.f32.mrf.mxu0
  %2003 = vdwg.mxu0
  %v2004 = vadd.f32 %v1933, %v2001
  %v2005 = vxor.u32 %v2004, 2147483648
  %v2006 = vmul.f32 %v2005, 1.442695
  %v2007 = vpow.pop %v2006
  %v2008 = vadd.f32 %v2007, 1.0
  %v2009 = vrcp.pop %v2008
  %v2010 = vmul.f32 1.0, %v2009
  %2012 = vrot.lane.b32.xlu0 %v2001, 64
  %v2013 = vpop.permute.xlu0 %2012
  %v2015 = vmul.f32 %v2010, %v2013
  %2017 = vrot.lane.b32.xlu0 %v2015, 64
  %v2018 = vpop.permute.xlu0 %2017
  %v2020 = vadd.f32 %v1933, %v2018
  %v2021 = vtanh.pop %v2020
  %v2022 = vsub.f32 1.0, %v2010
  %2024 = vrot.lane.b32.xlu0 %v2021, 96
  %v2025 = vpop.permute.xlu0 %2024
  %v2027 = vmul.f32 %v2022, %v2025
  %v2028 = vmul.f32 %v2010, %v1639
  %v2029 = vadd.f32 %v2027, %v2028
  %2031 = vrot.lane.b32.xlu0 %v2029, 96
  %v2032 = vpop.permute.xlu0 %2031
  %s2034 = scalar_lea.vmem %s10, 8
  %2035 = vst.msk [vmem:[%s2034] sm:$0x3] %vm474, %v2032
  %v2036 = vsel %vm65, %v2032, 0
  %2038 = vmatprep.subr.mxu0 0.0
  %2039 = vmatpush1.msra.mxu0 0.0
  %2040 = vmatprep.subr.mxu0 0.0
  %2041 = vmatpush1.msra.mxu0 0.0
  %2042 = vmatprep.subr.mxu0 0.0
  %2043 = vmatpush1.msra.mxu0 0.0
  %2044 = vmatprep.subr.mxu0 0.0
  %2045 = vmatpush1.msra.mxu0 0.0
  %2046 = vmatprep.subr.mxu0 0.0
  %2047 = vmatpush1.msra.mxu0 0.0
  %2048 = vmatprep.subr.mxu0 0.0
  %2049 = vmatpush1.msra.mxu0 0.0
  %2050 = vmatprep.subr.mxu0 0.0
  %2051 = vmatpush1.msra.mxu0 0.0
  %2052 = vmatprep.subr.mxu0 0.0
  %2053 = vmatpush1.msra.mxu0 0.0
  %2054 = vmatprep.subr.mxu0 0.0
  %2055 = vmatpush1.msra.mxu0 0.0
  %2056 = vmatprep.subr.mxu0 0.0
  %2057 = vmatpush1.msra.mxu0 0.0
  %2058 = vmatprep.subr.mxu0 0.0
  %2059 = vmatpush1.msra.mxu0 0.0
  %2060 = vmatprep.subr.mxu0 0.0
  %2061 = vmatpush1.msra.mxu0 0.0
  %2062 = vmatprep.subr.mxu0 0.0
  %2063 = vmatpush1.msra.mxu0 %v42
  %2064 = vmatprep.subr.mxu0 0.0
  %2065 = vmatpush1.msra.mxu0 %v41
  %2066 = vmatprep.subr.mxu0 0.0
  %2067 = vmatpush1.msra.mxu0 %v40
  %2068 = vmatprep.subr.mxu0 0.0
  %2069 = vmatpush1.msra.mxu0 %v39
  %2070 = vmatprep.subr.mxu0 0.0
  %2071 = vmatpush2.msra.mxu0 0.0
  %2072 = vmatprep.subr.mxu0 0.0
  %2073 = vmatpush2.msra.mxu0 0.0
  %2074 = vmatprep.subr.mxu0 0.0
  %2075 = vmatpush2.msra.mxu0 0.0
  %2076 = vmatprep.subr.mxu0 0.0
  %2077 = vmatpush2.msra.mxu0 0.0
  %2078 = vmatprep.subr.mxu0 0.0
  %2079 = vmatpush2.msra.mxu0 0.0
  %2080 = vmatprep.subr.mxu0 0.0
  %2081 = vmatpush2.msra.mxu0 0.0
  %2082 = vmatprep.subr.mxu0 0.0
  %2083 = vmatpush2.msra.mxu0 0.0
  %2084 = vmatprep.subr.mxu0 0.0
  %2085 = vmatpush2.msra.mxu0 0.0
  %2086 = vmatprep.subr.mxu0 0.0
  %2087 = vmatpush2.msra.mxu0 0.0
  %2088 = vmatprep.subr.mxu0 0.0
  %2089 = vmatpush2.msra.mxu0 0.0
  %2090 = vmatprep.subr.mxu0 0.0
  %2091 = vmatpush2.msra.mxu0 0.0
  %2092 = vmatprep.subr.mxu0 0.0
  %2093 = vmatpush2.msra.mxu0 0.0
  %2094 = vmatprep.subr.mxu0 0.0
  %2095 = vmatpush2.msra.mxu0 0.0
  %2096 = vmatprep.subr.mxu0 0.0
  %2097 = vmatpush2.msra.mxu0 0.0
  %2098 = vmatprep.subr.mxu0 0.0
  %2099 = vmatpush2.msra.mxu0 0.0
  %2100 = vmatprep.subr.mxu0 0.0
  %2101 = vmatpush2.msra.mxu0 0.0
  %2102 = vmatprep.mubr.f32.mxu0 0.0
  %2103 = vmatmul.mubr.f32.gmra.mxu0 %v2036
  %v2104 = vpop.f32.mrf.mxu0
  %v2105 = vadd.f32 %v63, %v2104
  %v2106 = vpop.f32.mrf.mxu0
  %2107 = vdwg.mxu0
  %v2110 = vunpack.c.l.s4 1966171168
  %v2111 = vunpack.c.0.s8 %v2110
  %v2112 = vlaneseq
  %v2113 = vshrl.u32 %v2112, 7
  %v2114 = vsub.s32 %v2111, %v2113
  %v2115 = vrot.slane %v2105, %v2114
  %v2116 = vcombine.high %v2115, %v2115
  %v2118 = vunpack.c.l.s4 1966171168
  %v2119 = vunpack.c.0.s8 %v2118
  %v2120 = vlaneseq
  %v2121 = vshrl.u32 %v2120, 7
  %v2122 = vsub.s32 %v2119, %v2121
  %v2123 = vrot.slane %v2115, %v2122
  %v2125 = vunpack.c.l.s4 1966171168
  %v2126 = vunpack.c.0.s8 %v2125
  %v2127 = vlaneseq
  %v2128 = vshrl.u32 %v2127, 7
  %v2129 = vsub.s32 %v2126, %v2128
  %v2130 = vrot.slane %v2116, %v2129
  %v2131 = vlaneseq
  %v2132 = vshrl.u32 %v2131, 7
  %v2133 = vsub.s32 0, %v2132
  %v2134 = vrot.slane %v2123, %v2133
  %v2135 = vlaneseq
  %v2136 = vshrl.u32 %v2135, 7
  %v2137 = vsub.s32 0, %v2136
  %v2138 = vrot.slane %v2130, %v2137
  %v2141 = vadd.f32 %v2134, %v37
  %v2142 = vadd.f32 %v2138, %v38
  %v2143 = vtanh.pop %v2141
  %v2144 = vtanh.pop %v2142
  %v2145 = vmul.f32 %v2143, %v180
  %v2146 = vmul.f32 %v2144, %v180
  %v2147 = vsel %vm65, %v2145, 0.0
  %2148 = vadd.xlane.f32.xlu0 %v2147
  %v2149 = vpop.xlane.xlu0 %2148
  %v2150 = vsel %vm65, %v2146, 0.0
  %2151 = vadd.xlane.f32.xlu0 %v2150
  %v2152 = vpop.xlane.xlu0 %2151
  %v2155 = vlaneseq
  %v2156 = vshrl.u32 %v2155, 7
  %v2157 = vsub.s32 %v193, %v2156
  %v2158 = vrot.slane %v2149, %v2157
  %v2159 = vlaneseq
  %v2160 = vshrl.u32 %v2159, 7
  %v2161 = vsub.s32 %v193, %v2160
  %v2162 = vrot.slane %v2152, %v2161
  %v2163 = vsel %vm202, %v2162, %v2158
  %v2165 = vsel %vm205, %v2163, -inf
  %2166 = vmax.xlane.f32.xlu0 %v2165
  %v2167 = vpop.xlane.xlu0 %2166
  %v2169 = vlaneseq
  %v2170 = vshrl.u32 %v2169, 7
  %v2171 = vsub.s32 0, %v2170
  %v2172 = vrot.slane %v2167, %v2171
  %v2173 = vlaneseq
  %v2174 = vshrl.u32 %v2173, 7
  %v2175 = vsub.s32 1, %v2174
  %v2176 = vrot.slane %v2167, %v2175
  %v2179 = vsub.f32 %v2149, %v2172
  %v2180 = vsub.f32 %v2152, %v2176
  %v2181 = vmul.f32 %v2179, 1.442695
  %v2182 = vpow.pop %v2181
  %v2183 = vmul.f32 %v2180, 1.442695
  %v2184 = vpow.pop %v2183
  %2187 = vset.pattern.permute.xlu0 0
  %2188 = vperm.xlu0 %2187, %v2182
  %v2189 = vpop.permute.xlu0 %2188
  %2190 = vset.pattern.permute.xlu0 0
  %2191 = vperm.xlu0 %2190, %v2184
  %v2192 = vpop.permute.xlu0 %2191
  %v2193 = vlaneseq
  %v2194 = vshrl.u32 %v2193, 7
  %v2195 = vsub.s32 %v193, %v2194
  %v2196 = vrot.slane %v2189, %v2195
  %v2197 = vlaneseq
  %v2198 = vshrl.u32 %v2197, 7
  %v2199 = vsub.s32 %v193, %v2198
  %v2200 = vrot.slane %v2192, %v2199
  %v2201 = vsel %vm202, %v2200, %v2196
  %v2203 = vsel %vm205, %v2201, 0.0
  %2204 = vadd.xlane.f32.xlu0 %v2203
  %v2205 = vpop.xlane.xlu0 %2204
  %v2206 = vrcp.pop %v2205
  %v2208 = vlaneseq
  %v2209 = vshrl.u32 %v2208, 7
  %v2210 = vsub.s32 0, %v2209
  %v2211 = vrot.slane %v2206, %v2210
  %v2212 = vlaneseq
  %v2213 = vshrl.u32 %v2212, 7
  %v2214 = vsub.s32 1, %v2213
  %v2215 = vrot.slane %v2206, %v2214
  %v2218 = vmul.f32 %v2182, %v2211
  %v2219 = vmul.f32 %v2184, %v2215
  %2221 = vset.pattern.permute.xlu0 0
  %2222 = vperm.xlu0 %2221, %v2218
  %v2223 = vpop.permute.xlu0 %2222
  %2226 = vset.pattern.permute.xlu0 0
  %2227 = vperm.xlu0 %2226, %v2219
  %v2228 = vpop.permute.xlu0 %2227
  %v2230 = vmul.f32 %v2223, %v35
  %v2231 = vmul.f32 %v2228, %v36
  %v2232 = vsel %vm273, %v2230, 0.0
  %v2233 = vrot.slane %v2232, 4
  %v2234 = vadd.f32 %v2232, %v2233
  %v2235 = vrot.slane %v2234, 2
  %v2236 = vadd.f32 %v2234, %v2235
  %v2237 = vrot.slane %v2236, 1
  %v2238 = vadd.f32 %v2236, %v2237
  %v2239 = vsel %vm273, %v2231, 0.0
  %v2240 = vrot.slane %v2239, 4
  %v2241 = vadd.f32 %v2239, %v2240
  %v2242 = vrot.slane %v2241, 2
  %v2243 = vadd.f32 %v2241, %v2242
  %v2244 = vrot.slane %v2243, 1
  %v2245 = vadd.f32 %v2243, %v2244
  %s2246 = scalar_lea.vmem %s0, 10
  %v2247 = vld [vmem:[%s2246] sm:$0x3]
  %v2250 = vsel %vm202, %v2245, %v2238
  %v2251 = vsel %vm273, %v2250, 0
  %2253 = vmatprep.subr.mxu0 0.0
  %2254 = vmatpush1.msra.mxu0 0.0
  %2255 = vmatprep.subr.mxu0 0.0
  %2256 = vmatpush1.msra.mxu0 0.0
  %2257 = vmatprep.subr.mxu0 0.0
  %2258 = vmatpush1.msra.mxu0 0.0
  %2259 = vmatprep.subr.mxu0 0.0
  %2260 = vmatpush1.msra.mxu0 0.0
  %2261 = vmatprep.subr.mxu0 0.0
  %2262 = vmatpush1.msra.mxu0 0.0
  %2263 = vmatprep.subr.mxu0 0.0
  %2264 = vmatpush1.msra.mxu0 0.0
  %2265 = vmatprep.subr.mxu0 0.0
  %2266 = vmatpush1.msra.mxu0 0.0
  %2267 = vmatprep.subr.mxu0 0.0
  %2268 = vmatpush1.msra.mxu0 0.0
  %2269 = vmatprep.subr.mxu0 0.0
  %2270 = vmatpush1.msra.mxu0 %v52
  %2271 = vmatprep.subr.mxu0 0.0
  %2272 = vmatpush1.msra.mxu0 %v51
  %2273 = vmatprep.subr.mxu0 0.0
  %2274 = vmatpush1.msra.mxu0 %v50
  %2275 = vmatprep.subr.mxu0 0.0
  %2276 = vmatpush1.msra.mxu0 %v49
  %2277 = vmatprep.subr.mxu0 0.0
  %2278 = vmatpush1.msra.mxu0 %v48
  %2279 = vmatprep.subr.mxu0 0.0
  %2280 = vmatpush1.msra.mxu0 %v47
  %2281 = vmatprep.subr.mxu0 0.0
  %2282 = vmatpush1.msra.mxu0 %v46
  %2283 = vmatprep.subr.mxu0 0.0
  %2284 = vmatpush1.msra.mxu0 %v45
  %2285 = vmatprep.subr.mxu0 0.0
  %2286 = vmatpush2.msra.mxu0 0.0
  %2287 = vmatprep.subr.mxu0 0.0
  %2288 = vmatpush2.msra.mxu0 0.0
  %2289 = vmatprep.subr.mxu0 0.0
  %2290 = vmatpush2.msra.mxu0 0.0
  %2291 = vmatprep.subr.mxu0 0.0
  %2292 = vmatpush2.msra.mxu0 0.0
  %2293 = vmatprep.subr.mxu0 0.0
  %2294 = vmatpush2.msra.mxu0 0.0
  %2295 = vmatprep.subr.mxu0 0.0
  %2296 = vmatpush2.msra.mxu0 0.0
  %2297 = vmatprep.subr.mxu0 0.0
  %2298 = vmatpush2.msra.mxu0 0.0
  %2299 = vmatprep.subr.mxu0 0.0
  %2300 = vmatpush2.msra.mxu0 0.0
  %2301 = vmatprep.subr.mxu0 0.0
  %2302 = vmatpush2.msra.mxu0 0.0
  %2303 = vmatprep.subr.mxu0 0.0
  %2304 = vmatpush2.msra.mxu0 0.0
  %2305 = vmatprep.subr.mxu0 0.0
  %2306 = vmatpush2.msra.mxu0 0.0
  %2307 = vmatprep.subr.mxu0 0.0
  %2308 = vmatpush2.msra.mxu0 0.0
  %2309 = vmatprep.subr.mxu0 0.0
  %2310 = vmatpush2.msra.mxu0 0.0
  %2311 = vmatprep.subr.mxu0 0.0
  %2312 = vmatpush2.msra.mxu0 0.0
  %2313 = vmatprep.subr.mxu0 0.0
  %2314 = vmatpush2.msra.mxu0 0.0
  %2315 = vmatprep.subr.mxu0 0.0
  %2316 = vmatpush2.msra.mxu0 0.0
  %2317 = vmatprep.mubr.f32.mxu0 0.0
  %2318 = vmatmul.mubr.f32.gmra.mxu0 %v2251
  %v2319 = vpop.f32.mrf.mxu0
  %v2320 = vadd.f32 0.0, %v2319
  %v2321 = vpop.f32.mrf.mxu0
  %2322 = vdwg.mxu0
  %v2323 = vadd.f32 %v2247, %v2320
  %2324 = vmatprep.subr.mxu0 0.0
  %2325 = vmatpush1.msra.mxu0 0.0
  %2326 = vmatprep.subr.mxu0 0.0
  %2327 = vmatpush1.msra.mxu0 0.0
  %2328 = vmatprep.subr.mxu0 0.0
  %2329 = vmatpush1.msra.mxu0 0.0
  %2330 = vmatprep.subr.mxu0 0.0
  %2331 = vmatpush1.msra.mxu0 0.0
  %2332 = vmatprep.subr.mxu0 0.0
  %2333 = vmatpush1.msra.mxu0 0.0
  %2334 = vmatprep.subr.mxu0 0.0
  %2335 = vmatpush1.msra.mxu0 0.0
  %2336 = vmatprep.subr.mxu0 0.0
  %2337 = vmatpush1.msra.mxu0 0.0
  %2338 = vmatprep.subr.mxu0 0.0
  %2339 = vmatpush1.msra.mxu0 0.0
  %2340 = vmatprep.subr.mxu0 0.0
  %2341 = vmatpush1.msra.mxu0 0.0
  %2342 = vmatprep.subr.mxu0 0.0
  %2343 = vmatpush1.msra.mxu0 0.0
  %2344 = vmatprep.subr.mxu0 0.0
  %2345 = vmatpush1.msra.mxu0 0.0
  %2346 = vmatprep.subr.mxu0 0.0
  %2347 = vmatpush1.msra.mxu0 0.0
  %2348 = vmatprep.subr.mxu0 0.0
  %2349 = vmatpush1.msra.mxu0 %v56
  %2350 = vmatprep.subr.mxu0 0.0
  %2351 = vmatpush1.msra.mxu0 %v55
  %2352 = vmatprep.subr.mxu0 0.0
  %2353 = vmatpush1.msra.mxu0 %v54
  %2354 = vmatprep.subr.mxu0 0.0
  %2355 = vmatpush1.msra.mxu0 %v53
  %2356 = vmatprep.subr.mxu0 0.0
  %2357 = vmatpush2.msra.mxu0 0.0
  %2358 = vmatprep.subr.mxu0 0.0
  %2359 = vmatpush2.msra.mxu0 0.0
  %2360 = vmatprep.subr.mxu0 0.0
  %2361 = vmatpush2.msra.mxu0 0.0
  %2362 = vmatprep.subr.mxu0 0.0
  %2363 = vmatpush2.msra.mxu0 0.0
  %2364 = vmatprep.subr.mxu0 0.0
  %2365 = vmatpush2.msra.mxu0 0.0
  %2366 = vmatprep.subr.mxu0 0.0
  %2367 = vmatpush2.msra.mxu0 0.0
  %2368 = vmatprep.subr.mxu0 0.0
  %2369 = vmatpush2.msra.mxu0 0.0
  %2370 = vmatprep.subr.mxu0 0.0
  %2371 = vmatpush2.msra.mxu0 0.0
  %2372 = vmatprep.subr.mxu0 0.0
  %2373 = vmatpush2.msra.mxu0 0.0
  %2374 = vmatprep.subr.mxu0 0.0
  %2375 = vmatpush2.msra.mxu0 0.0
  %2376 = vmatprep.subr.mxu0 0.0
  %2377 = vmatpush2.msra.mxu0 0.0
  %2378 = vmatprep.subr.mxu0 0.0
  %2379 = vmatpush2.msra.mxu0 0.0
  %2380 = vmatprep.subr.mxu0 0.0
  %2381 = vmatpush2.msra.mxu0 0.0
  %2382 = vmatprep.subr.mxu0 0.0
  %2383 = vmatpush2.msra.mxu0 0.0
  %2384 = vmatprep.subr.mxu0 0.0
  %2385 = vmatpush2.msra.mxu0 0.0
  %2386 = vmatprep.subr.mxu0 0.0
  %2387 = vmatpush2.msra.mxu0 0.0
  %2388 = vmatprep.mubr.f32.mxu0 0.0
  %2389 = vmatmul.mubr.f32.gmra.mxu0 %v2036
  %v2390 = vpop.f32.mrf.mxu0
  %v2391 = vadd.f32 %v369, %v2390
  %v2392 = vpop.f32.mrf.mxu0
  %2393 = vdwg.mxu0
  %v2394 = vadd.f32 %v2323, %v2391
  %v2395 = vxor.u32 %v2394, 2147483648
  %v2396 = vmul.f32 %v2395, 1.442695
  %v2397 = vpow.pop %v2396
  %v2398 = vadd.f32 %v2397, 1.0
  %v2399 = vrcp.pop %v2398
  %v2400 = vmul.f32 1.0, %v2399
  %2402 = vrot.lane.b32.xlu0 %v2391, 64
  %v2403 = vpop.permute.xlu0 %2402
  %v2405 = vmul.f32 %v2400, %v2403
  %2407 = vrot.lane.b32.xlu0 %v2405, 64
  %v2408 = vpop.permute.xlu0 %2407
  %v2410 = vadd.f32 %v2323, %v2408
  %v2411 = vtanh.pop %v2410
  %v2412 = vsub.f32 1.0, %v2400
  %2414 = vrot.lane.b32.xlu0 %v2411, 96
  %v2415 = vpop.permute.xlu0 %2414
  %v2417 = vmul.f32 %v2412, %v2415
  %v2418 = vmul.f32 %v2400, %v2029
  %v2419 = vadd.f32 %v2417, %v2418
  %2421 = vrot.lane.b32.xlu0 %v2419, 96
  %v2422 = vpop.permute.xlu0 %2421
  %s2424 = scalar_lea.vmem %s10, 10
  %2425 = vst.msk [vmem:[%s2424] sm:$0x3] %vm474, %v2422
  // Predicated region
  $region42: #{_lambda_.7} parent=0 // pred_check
    _
  $region43: #{_lambda_.7} parent=0 // pred_check_branch
    %2427 = sbr.rel (0) target = $region45
  $region44: #{_lambda_.7} parent=0 // pred_region
    _
  $region45: #{_lambda_.7} parent=0 // pred_fallthru
    _
  // Predicated region
  $region46: #{_lambda_.7} parent=0 // pred_check
    _
  $region47: #{_lambda_.7} parent=0 // pred_check_branch
    %2429 = sbr.rel (0) target = $region49
  $region48: #{_lambda_.7} parent=0 // pred_region
    _
  $region49: #{_lambda_.7} parent=0 // pred_fallthru
    _

</llo_original>
